<compile_context>
chip_gen: v5e
topology: v5e:2x2
jax: 0.10.0
libtpu: 0.0.40
codegen_flags: <defaults>
</compile_context>

<pallas_src>
import functools

import jax
import jax.numpy as jnp
from jax.experimental import pallas as pl
from jax.experimental.pallas import tpu as pltpu


# ----------------------------------------------------------------------------
# In-kernel helpers
# ----------------------------------------------------------------------------

def _ln(x, g, b, eps):
    """PyTorch LayerNorm semantics: biased variance, eps inside rsqrt."""
    mean = jnp.mean(x, axis=-1, keepdims=True)
    var = jnp.mean(jnp.square(x - mean), axis=-1, keepdims=True)
    return (x - mean) * jax.lax.rsqrt(var + eps) * g + b


# ----------------------------------------------------------------------------
# Fused whole-network kernel (one batch element per grid step)
# ----------------------------------------------------------------------------

def _vivit_kernel(p_ref, w_emb_ref, base_ref,
                  ln1_g_ref, ln1_b_ref, w_qkv_ref, w_out_ref, b_out_ref,
                  ln2_g_ref, ln2_b_ref, w_fc1_ref, b_fc1_ref, w_fc2_ref,
                  b_fc2_ref, fin_g_ref, fin_b_ref, hg_ref, hb_ref,
                  w_head_ref, b_head_ref, o_ref, *, depth, heads, eps):
    f32 = jnp.float32
    bf16 = jnp.bfloat16

    # ---- tubelet embedding: (N, PD) @ (PD, dim) + (cls | pos + conv-bias) ----
    # Row 0 of p_ref is a zero patch (cls slot), so row 0 of the matmul is 0 and
    # base_ref row 0 supplies the cls token exactly.
    x = jnp.dot(p_ref[0], w_emb_ref[...], preferred_element_type=f32)
    x = x + base_ref[...]                                     # (N, dim) f32

    n_tok, dim = x.shape
    d = dim // heads
    scale = float(d) ** -0.5

    for l in range(depth):                 # static unroll; depth is small here
        # ---- pre-norm + multi-head self-attention ----
        h = _ln(x, ln1_g_ref[l], ln1_b_ref[l], eps)
        # Fused QKV projection: one lane-dense (N, 3*dim) MXU pass.
        qkv = jnp.dot(h.astype(bf16), w_qkv_ref[l], preferred_element_type=f32)
        # Fold the softmax scale into q (N*dim muls instead of N^2 per head).
        q_all = (qkv[:, :dim] * scale).astype(bf16)
        k_all = qkv[:, dim:2 * dim].astype(bf16)
        v_all = qkv[:, 2 * dim:].astype(bf16)
        w_out_l = w_out_ref[l]                                # (dim, dim) bf16

        # TODO(synk): for realistic head counts (>=8), convert to lax.fori_loop
        #             with a VMEM scratch accumulator to bound vreg pressure.
        proj = jnp.zeros((n_tok, dim), f32)
        for hd in range(heads):
            lo = hd * d
            q = q_all[:, lo:lo + d]
            k = k_all[:, lo:lo + d]
            v = v_all[:, lo:lo + d]
            # q @ k^T by contracting the head dim directly (no transpose copy).
            s = jax.lax.dot_general(q, k, (((1,), (1,)), ((), ())),
                                    preferred_element_type=f32)
            s = s - jnp.max(s, axis=-1, keepdims=True)
            p = jnp.exp(s)
            p = p * pl.reciprocal(jnp.sum(p, axis=-1, keepdims=True),
                                  approx=True)
            o_h = jnp.dot(p.astype(bf16), v, preferred_element_type=f32)
            # Head-concat + out-projection folded into per-head accumulation
            # (output of every matmul stays dim-wide / lane-dense).
            proj = proj + jnp.dot(o_h.astype(bf16), w_out_l[lo:lo + d, :],
                                  preferred_element_type=f32)

        x = x + proj + b_out_ref[l]                           # residual 1

        # ---- pre-norm + MLP ----
        h2 = _ln(x, ln2_g_ref[l], ln2_b_ref[l], eps)
        f = jnp.dot(h2.astype(bf16), w_fc1_ref[l],
                    preferred_element_type=f32) + b_fc1_ref[l]
        f = jax.nn.gelu(f, approximate=True)      # tanh GELU -> EUP slot
        f2 = jnp.dot(f.astype(bf16), w_fc2_ref[l],
                     preferred_element_type=f32) + b_fc2_ref[l]
        x = x + f2                                            # residual 2

    # ---- final transformer LN -> 'first' token pool -> head LN -> linear ----
    cls_tok = x[0:1, :]          # LayerNorm is row-wise, so post-slice is exact
    cls_tok = _ln(cls_tok, fin_g_ref[...], fin_b_ref[...], eps)
    cls_tok = _ln(cls_tok, hg_ref[...], hb_ref[...], eps)
    logits = jnp.dot(cls_tok.astype(bf16), w_head_ref[...],
                     preferred_element_type=f32) + b_head_ref[...]
    o_ref[0] = logits.astype(o_ref.dtype)


def _vivit_pallas(patches, base, params, cfg):
    B, N, PD = patches.shape
    dim, heads, depth = cfg["dim"], cfg["heads"], cfg["depth"]
    hid = dim * cfg["ff_mult"]
    ncls = cfg["num_classes"]

    kernel = functools.partial(_vivit_kernel, depth=depth, heads=heads,
                               eps=1e-5)

    def rep2(bi):
        return (0, 0)

    def rep3(bi):
        return (0, 0, 0)

    out = pl.pallas_call(
        kernel,
        out_shape=jax.ShapeDtypeStruct((B, 1, ncls), jnp.float32),
        grid=(B,),
        in_specs=[
            pl.BlockSpec((1, N, PD), lambda bi: (bi, 0, 0)),   # patches (bf16)
            pl.BlockSpec((PD, dim), rep2),                     # w_embed
            pl.BlockSpec((N, dim), rep2),                      # base = cls|pos+b
            pl.BlockSpec((depth, 1, dim), rep3),               # ln1_g
            pl.BlockSpec((depth, 1, dim), rep3),               # ln1_b
            pl.BlockSpec((depth, dim, 3 * dim), rep3),         # w_qkv (fused)
            pl.BlockSpec((depth, dim, dim), rep3),             # w_out
            pl.BlockSpec((depth, 1, dim), rep3),               # b_out
            pl.BlockSpec((depth, 1, dim), rep3),               # ln2_g
            pl.BlockSpec((depth, 1, dim), rep3),               # ln2_b
            pl.BlockSpec((depth, dim, hid), rep3),             # w_fc1
            pl.BlockSpec((depth, 1, hid), rep3),               # b_fc1
            pl.BlockSpec((depth, hid, dim), rep3),             # w_fc2
            pl.BlockSpec((depth, 1, dim), rep3),               # b_fc2
            pl.BlockSpec((1, dim), rep2),                      # final_ln_g
            pl.BlockSpec((1, dim), rep2),                      # final_ln_b
            pl.BlockSpec((1, dim), rep2),                      # head_ln_g
            pl.BlockSpec((1, dim), rep2),                      # head_ln_b
            pl.BlockSpec((dim, ncls), rep2),                   # w_head
            pl.BlockSpec((1, ncls), rep2),                     # b_head
        ],
        out_specs=pl.BlockSpec((1, 1, ncls), lambda bi: (bi, 0, 0)),
        compiler_params=pltpu.CompilerParams(
            dimension_semantics=("parallel",),
            vmem_limit_bytes=32 * 1024 * 1024),
    )(patches, params["w_embed"], base,
      params["ln1_g"], params["ln1_b"], params["w_qkv"], params["w_out"],
      params["b_out"], params["ln2_g"], params["ln2_b"], params["w_fc1"],
      params["b_fc1"], params["w_fc2"], params["b_fc2"],
      params["final_ln_g"], params["final_ln_b"],
      params["head_ln_g"], params["head_ln_b"],
      params["w_head"], params["b_head"])
    return out[:, 0, :]


# ----------------------------------------------------------------------------
# Forward pass (JAX glue = layout plumbing only)
# ----------------------------------------------------------------------------

def vivit_forward(x, params, cfg):
    """vivit_model == 1 forward. x: (B, C, T, H, W) float32."""
    B, C, T, H, W = x.shape
    pt, ph, pw = cfg["tubelet"]
    t, gh, gw = T // pt, H // ph, W // pw

    # Conv3d(stride == kernel) == non-overlapping patch extraction + matmul.
    patches = x.reshape(B, C, t, pt, gh, ph, gw, pw)
    patches = patches.transpose(0, 2, 4, 6, 1, 3, 5, 7)
    patches = patches.reshape(B, t * gh * gw, C * pt * ph * pw)
    # Prepend a zero "patch" row for the cls slot (zero @ W == 0) and cast the
    # only large HBM input to bf16 to halve its DMA bytes.
    patches = jnp.pad(patches, ((0, 0), (1, 0), (0, 0))).astype(jnp.bfloat16)
    # Row 0: cls token; rows 1..: pos_embed + conv bias (both are applied
    # before the cls concat in the PyTorch model, so this is exact).
    base = jnp.concatenate(
        [params["cls_token"], params["pos_embed"] + params["b_embed"]], axis=0)
    return _vivit_pallas(patches, base, params, cfg)     # (B, num_classes)


# ----------------------------------------------------------------------------
# Deterministic parameter init (matmul weights stored bf16, rest fp32)
# ----------------------------------------------------------------------------

def init_params(key, cfg):
    dim, heads, depth = cfg["dim"], cfg["heads"], cfg["depth"]
    hid = dim * cfg["ff_mult"]
    C = cfg["in_chans"]
    pt, ph, pw = cfg["tubelet"]
    patch_dim = C * pt * ph * pw
    t = cfg["num_frames"] // pt
    n = (cfg["image_size"] // ph) * (cfg["image_size"] // pw)
    ncls = cfg["num_classes"]

    def wgt(k, shape, scale=0.02):
        return (scale * jax.random.normal(k, shape, dtype=jnp.float32)
                ).astype(jnp.bfloat16)

    ks = jax.random.split(key, 4 + 4 * depth)
    params = {
        "w_embed": wgt(ks[0], (patch_dim, dim)),
        "b_embed": jnp.zeros((1, dim), jnp.float32),
        "pos_embed": jax.random.normal(ks[1], (t * n, dim), dtype=jnp.float32),
        "cls_token": jax.random.normal(ks[2], (1, dim), dtype=jnp.float32),
        "final_ln_g": jnp.ones((1, dim), jnp.float32),
        "final_ln_b": jnp.zeros((1, dim), jnp.float32),
        "head_ln_g": jnp.ones((1, dim), jnp.float32),
        "head_ln_b": jnp.zeros((1, dim), jnp.float32),
        "w_head": wgt(ks[3], (dim, ncls)),
        "b_head": jnp.zeros((1, ncls), jnp.float32),
        # Per-layer params stacked along a leading depth axis so the fused
        # kernel indexes them with a static layer index.
        "ln1_g": jnp.ones((depth, 1, dim), jnp.float32),
        "ln1_b": jnp.zeros((depth, 1, dim), jnp.float32),
        "b_out": jnp.zeros((depth, 1, dim), jnp.float32),
        "ln2_g": jnp.ones((depth, 1, dim), jnp.float32),
        "ln2_b": jnp.zeros((depth, 1, dim), jnp.float32),
        "b_fc1": jnp.zeros((depth, 1, hid), jnp.float32),
        "b_fc2": jnp.zeros((depth, 1, dim), jnp.float32),
        # Columns of w_qkv ordered [qkv, head, d] to match the PyTorch reshape.
        "w_qkv": jnp.stack([wgt(ks[4 + 4 * i], (dim, 3 * dim))
                            for i in range(depth)]),
        "w_out": jnp.stack([wgt(ks[5 + 4 * i], (dim, dim))
                            for i in range(depth)]),
        "w_fc1": jnp.stack([wgt(ks[6 + 4 * i], (dim, hid))
                            for i in range(depth)]),
        "w_fc2": jnp.stack([wgt(ks[7 + 4 * i], (hid, dim))
                            for i in range(depth)]),
    }
    return params


# ----------------------------------------------------------------------------
# Main
# ----------------------------------------------------------------------------

if __name__ == "__main__":
    cfg = {
        "num_classes": 10,
        "in_chans": 3,
        "image_size": 16,       # crop_size
        "num_frames": 8,        # clip_len
        "tubelet": (4, 8, 8),   # patch_size
        "dim": 32,              # embed_dim
        "depth": 2,             # s_depth
        "heads": 4,             # s_heads
        "ff_mult": 2,
        # dropout / emb_dropout = 0.0, pool_type = 'first', vivit_model = 1
    }

    key = jax.random.PRNGKey(0)
    k_param, k_x = jax.random.split(key)
    params = init_params(k_param, cfg)

    B = 2
    x = jax.random.normal(
        k_x,
        (B, cfg["in_chans"], cfg["num_frames"], cfg["image_size"],
         cfg["image_size"]),
        dtype=jnp.float32)

    fwd = jax.jit(lambda xx, pp: vivit_forward(xx, pp, cfg))
    logits = jax.block_until_ready(fwd(x, params))

    assert logits.shape == (B, cfg["num_classes"])
    assert bool(jnp.all(jnp.isfinite(logits)))
    print("KERNEL_OK")
</pallas_src>

<mosaic_0001>
module attributes {stable_mosaic.version = 11 : i64} {
  func.func @_vivit_kernel(%arg0: i32, %arg1: memref<1x9x768xbf16, #tpu.memory_space<vmem>>, %arg2: memref<768x32xbf16, #tpu.memory_space<vmem>>, %arg3: memref<9x32xf32, #tpu.memory_space<vmem>>, %arg4: memref<2x1x32xf32, #tpu.memory_space<vmem>>, %arg5: memref<2x1x32xf32, #tpu.memory_space<vmem>>, %arg6: memref<2x32x96xbf16, #tpu.memory_space<vmem>>, %arg7: memref<2x32x32xbf16, #tpu.memory_space<vmem>>, %arg8: memref<2x1x32xf32, #tpu.memory_space<vmem>>, %arg9: memref<2x1x32xf32, #tpu.memory_space<vmem>>, %arg10: memref<2x1x32xf32, #tpu.memory_space<vmem>>, %arg11: memref<2x32x64xbf16, #tpu.memory_space<vmem>>, %arg12: memref<2x1x64xf32, #tpu.memory_space<vmem>>, %arg13: memref<2x64x32xbf16, #tpu.memory_space<vmem>>, %arg14: memref<2x1x32xf32, #tpu.memory_space<vmem>>, %arg15: memref<1x32xf32, #tpu.memory_space<vmem>>, %arg16: memref<1x32xf32, #tpu.memory_space<vmem>>, %arg17: memref<1x32xf32, #tpu.memory_space<vmem>>, %arg18: memref<1x32xf32, #tpu.memory_space<vmem>>, %arg19: memref<32x10xbf16, #tpu.memory_space<vmem>>, %arg20: memref<1x10xf32, #tpu.memory_space<vmem>>, %arg21: memref<1x1x10xf32, #tpu.memory_space<vmem>>) attributes {dimension_semantics = [#tpu.dimension_semantics<parallel>], iteration_bounds = array<i64: 2>, scalar_prefetch = 0 : i64, scratch_operands = 0 : i64, tpu.core_type = #tpu.core_type<tc>, window_params = [{transform_indices = @transform_0, window_bounds = array<i64: 1, 9, 768>}, {pipeline_mode = #tpu.pipeline_mode<synchronous>, transform_indices = @transform_1, window_bounds = array<i64: 768, 32>}, {pipeline_mode = #tpu.pipeline_mode<synchronous>, transform_indices = @transform_2, window_bounds = array<i64: 9, 32>}, {pipeline_mode = #tpu.pipeline_mode<synchronous>, transform_indices = @transform_3, window_bounds = array<i64: 2, 1, 32>}, {pipeline_mode = #tpu.pipeline_mode<synchronous>, transform_indices = @transform_4, window_bounds = array<i64: 2, 1, 32>}, {pipeline_mode = #tpu.pipeline_mode<synchronous>, transform_indices = @transform_5, window_bounds = array<i64: 2, 32, 96>}, {pipeline_mode = #tpu.pipeline_mode<synchronous>, transform_indices = @transform_6, window_bounds = array<i64: 2, 32, 32>}, {pipeline_mode = #tpu.pipeline_mode<synchronous>, transform_indices = @transform_7, window_bounds = array<i64: 2, 1, 32>}, {pipeline_mode = #tpu.pipeline_mode<synchronous>, transform_indices = @transform_8, window_bounds = array<i64: 2, 1, 32>}, {pipeline_mode = #tpu.pipeline_mode<synchronous>, transform_indices = @transform_9, window_bounds = array<i64: 2, 1, 32>}, {pipeline_mode = #tpu.pipeline_mode<synchronous>, transform_indices = @transform_10, window_bounds = array<i64: 2, 32, 64>}, {pipeline_mode = #tpu.pipeline_mode<synchronous>, transform_indices = @transform_11, window_bounds = array<i64: 2, 1, 64>}, {pipeline_mode = #tpu.pipeline_mode<synchronous>, transform_indices = @transform_12, window_bounds = array<i64: 2, 64, 32>}, {pipeline_mode = #tpu.pipeline_mode<synchronous>, transform_indices = @transform_13, window_bounds = array<i64: 2, 1, 32>}, {pipeline_mode = #tpu.pipeline_mode<synchronous>, transform_indices = @transform_14, window_bounds = array<i64: 1, 32>}, {pipeline_mode = #tpu.pipeline_mode<synchronous>, transform_indices = @transform_15, window_bounds = array<i64: 1, 32>}, {pipeline_mode = #tpu.pipeline_mode<synchronous>, transform_indices = @transform_16, window_bounds = array<i64: 1, 32>}, {pipeline_mode = #tpu.pipeline_mode<synchronous>, transform_indices = @transform_17, window_bounds = array<i64: 1, 32>}, {pipeline_mode = #tpu.pipeline_mode<synchronous>, transform_indices = @transform_18, window_bounds = array<i64: 32, 10>}, {pipeline_mode = #tpu.pipeline_mode<synchronous>, transform_indices = @transform_19, window_bounds = array<i64: 1, 10>}, {transform_indices = @transform_20, window_bounds = array<i64: 1, 1, 10>}]} {
    %c0 = arith.constant 0 : index
    %c0_0 = arith.constant 0 : index
    %c0_1 = arith.constant 0 : index
    %0 = vector.load %arg1[%c0, %c0_0, %c0_1] : memref<1x9x768xbf16, #tpu.memory_space<vmem>>, vector<1x9x768xbf16>
    %1 = vector.shape_cast %0 : vector<1x9x768xbf16> to vector<9x768xbf16>
    %c0_2 = arith.constant 0 : index
    %c0_3 = arith.constant 0 : index
    %2 = vector.load %arg2[%c0_2, %c0_3] : memref<768x32xbf16, #tpu.memory_space<vmem>>, vector<768x32xbf16>
    %cst = arith.constant dense<0.000000e+00> : vector<9x32xf32>
    %3 = tpu.matmul %1, %2, %cst {dimension_numbers = #tpu.dot_dimension_numbers<[1], [0], [0], [1], [0, 0, 1, 1], [], []>} : vector<9x768xbf16>, vector<768x32xbf16>, vector<9x32xf32> -> vector<9x32xf32>
    %c0_4 = arith.constant 0 : index
    %c0_5 = arith.constant 0 : index
    %4 = vector.load %arg3[%c0_4, %c0_5] : memref<9x32xf32, #tpu.memory_space<vmem>>, vector<9x32xf32>
    %5 = arith.addf %3, %4 : vector<9x32xf32>
    %c0_6 = arith.constant 0 : index
    %c0_7 = arith.constant 0 : index
    %c0_8 = arith.constant 0 : index
    %6 = vector.load %arg4[%c0_6, %c0_7, %c0_8] : memref<2x1x32xf32, #tpu.memory_space<vmem>>, vector<1x1x32xf32>
    %7 = vector.shape_cast %6 : vector<1x1x32xf32> to vector<1x32xf32>
    %c0_9 = arith.constant 0 : index
    %c0_10 = arith.constant 0 : index
    %c0_11 = arith.constant 0 : index
    %8 = vector.load %arg5[%c0_9, %c0_10, %c0_11] : memref<2x1x32xf32, #tpu.memory_space<vmem>>, vector<1x1x32xf32>
    %9 = vector.shape_cast %8 : vector<1x1x32xf32> to vector<1x32xf32>
    %cst_12 = arith.constant dense<0.000000e+00> : vector<9xf32>
    %10 = vector.multi_reduction <add>, %5, %cst_12 [1] : vector<9x32xf32> to vector<9xf32>
    %11 = vector.shape_cast %10 : vector<9xf32> to vector<9x1xf32>
    %cst_13 = arith.constant 3.200000e+01 : f32
    %12 = vector.broadcast %cst_13 : f32 to vector<9x1xf32>
    %13 = arith.divf %11, %12 : vector<9x1xf32>
    %14 = vector.broadcast %13 : vector<9x1xf32> to vector<9x32xf32>
    %15 = arith.subf %5, %14 : vector<9x32xf32>
    %16 = arith.mulf %15, %15 : vector<9x32xf32>
    %cst_14 = arith.constant dense<0.000000e+00> : vector<9xf32>
    %17 = vector.multi_reduction <add>, %16, %cst_14 [1] : vector<9x32xf32> to vector<9xf32>
    %18 = vector.shape_cast %17 : vector<9xf32> to vector<9x1xf32>
    %cst_15 = arith.constant 3.200000e+01 : f32
    %19 = vector.broadcast %cst_15 : f32 to vector<9x1xf32>
    %20 = arith.divf %18, %19 : vector<9x1xf32>
    %21 = vector.broadcast %13 : vector<9x1xf32> to vector<9x32xf32>
    %22 = arith.subf %5, %21 : vector<9x32xf32>
    %cst_16 = arith.constant 9.99999974E-6 : f32
    %23 = vector.broadcast %cst_16 : f32 to vector<9x1xf32>
    %24 = arith.addf %20, %23 : vector<9x1xf32>
    %25 = math.rsqrt %24 : vector<9x1xf32>
    %26 = vector.broadcast %25 : vector<9x1xf32> to vector<9x32xf32>
    %27 = arith.mulf %22, %26 : vector<9x32xf32>
    %28 = vector.broadcast %7 : vector<1x32xf32> to vector<9x32xf32>
    %29 = arith.mulf %27, %28 : vector<9x32xf32>
    %30 = vector.broadcast %9 : vector<1x32xf32> to vector<9x32xf32>
    %31 = arith.addf %29, %30 : vector<9x32xf32>
    %32 = arith.truncf %31 : vector<9x32xf32> to vector<9x32xbf16>
    %c0_17 = arith.constant 0 : index
    %c0_18 = arith.constant 0 : index
    %c0_19 = arith.constant 0 : index
    %33 = vector.load %arg6[%c0_17, %c0_18, %c0_19] : memref<2x32x96xbf16, #tpu.memory_space<vmem>>, vector<1x32x96xbf16>
    %34 = vector.shape_cast %33 : vector<1x32x96xbf16> to vector<32x96xbf16>
    %cst_20 = arith.constant dense<0.000000e+00> : vector<9x96xf32>
    %35 = tpu.matmul %32, %34, %cst_20 {dimension_numbers = #tpu.dot_dimension_numbers<[1], [0], [0], [1], [0, 0, 1, 1], [], []>} : vector<9x32xbf16>, vector<32x96xbf16>, vector<9x96xf32> -> vector<9x96xf32>
    %36 = vector.extract_strided_slice %35 {offsets = [0, 0], sizes = [9, 32], strides = [1, 1]} : vector<9x96xf32> to vector<9x32xf32>
    %cst_21 = arith.constant 0.353553385 : f32
    %37 = vector.broadcast %cst_21 : f32 to vector<9x32xf32>
    %38 = arith.mulf %36, %37 : vector<9x32xf32>
    %39 = arith.truncf %38 : vector<9x32xf32> to vector<9x32xbf16>
    %40 = vector.extract_strided_slice %35 {offsets = [0, 32], sizes = [9, 32], strides = [1, 1]} : vector<9x96xf32> to vector<9x32xf32>
    %41 = arith.truncf %40 : vector<9x32xf32> to vector<9x32xbf16>
    %42 = vector.extract_strided_slice %35 {offsets = [0, 64], sizes = [9, 32], strides = [1, 1]} : vector<9x96xf32> to vector<9x32xf32>
    %43 = arith.truncf %42 : vector<9x32xf32> to vector<9x32xbf16>
    %c0_22 = arith.constant 0 : index
    %c0_23 = arith.constant 0 : index
    %c0_24 = arith.constant 0 : index
    %44 = vector.load %arg7[%c0_22, %c0_23, %c0_24] : memref<2x32x32xbf16, #tpu.memory_space<vmem>>, vector<1x32x32xbf16>
    %45 = vector.shape_cast %44 : vector<1x32x32xbf16> to vector<32x32xbf16>
    %cst_25 = arith.constant 0.000000e+00 : f32
    %46 = vector.broadcast %cst_25 : f32 to vector<9x32xf32>
    %47 = vector.extract_strided_slice %39 {offsets = [0, 0], sizes = [9, 8], strides = [1, 1]} : vector<9x32xbf16> to vector<9x8xbf16>
    %48 = vector.extract_strided_slice %41 {offsets = [0, 0], sizes = [9, 8], strides = [1, 1]} : vector<9x32xbf16> to vector<9x8xbf16>
    %49 = vector.extract_strided_slice %43 {offsets = [0, 0], sizes = [9, 8], strides = [1, 1]} : vector<9x32xbf16> to vector<9x8xbf16>
    %cst_26 = arith.constant dense<0.000000e+00> : vector<9x9xf32>
    %50 = tpu.matmul %47, %48, %cst_26 {dimension_numbers = #tpu.dot_dimension_numbers<[1], [1], [0], [0], [0, 0, 1, 0], [], []>} : vector<9x8xbf16>, vector<9x8xbf16>, vector<9x9xf32> -> vector<9x9xf32>
    %cst_27 = arith.constant dense<0xFF800000> : vector<9xf32>
    %51 = vector.multi_reduction <maximumf>, %50, %cst_27 [1] : vector<9x9xf32> to vector<9xf32>
    %52 = vector.shape_cast %51 : vector<9xf32> to vector<9x1xf32>
    %53 = vector.broadcast %52 : vector<9x1xf32> to vector<9x9xf32>
    %54 = arith.subf %50, %53 : vector<9x9xf32>
    %55 = math.exp %54 : vector<9x9xf32>
    %cst_28 = arith.constant dense<0.000000e+00> : vector<9xf32>
    %56 = vector.multi_reduction <add>, %55, %cst_28 [1] : vector<9x9xf32> to vector<9xf32>
    %57 = vector.shape_cast %56 : vector<9xf32> to vector<9x1xf32>
    %58 = tpu.reciprocal %57 {approx = true} : vector<9x1xf32> -> vector<9x1xf32>
    %59 = vector.broadcast %58 : vector<9x1xf32> to vector<9x9xf32>
    %60 = arith.mulf %55, %59 : vector<9x9xf32>
    %61 = arith.truncf %60 : vector<9x9xf32> to vector<9x9xbf16>
    %cst_29 = arith.constant dense<0.000000e+00> : vector<9x8xf32>
    %62 = tpu.matmul %61, %49, %cst_29 {dimension_numbers = #tpu.dot_dimension_numbers<[1], [0], [0], [1], [0, 0, 1, 1], [], []>} : vector<9x9xbf16>, vector<9x8xbf16>, vector<9x8xf32> -> vector<9x8xf32>
    %63 = arith.truncf %62 : vector<9x8xf32> to vector<9x8xbf16>
    %64 = vector.extract_strided_slice %45 {offsets = [0, 0], sizes = [8, 32], strides = [1, 1]} : vector<32x32xbf16> to vector<8x32xbf16>
    %cst_30 = arith.constant dense<0.000000e+00> : vector<9x32xf32>
    %65 = tpu.matmul %63, %64, %cst_30 {dimension_numbers = #tpu.dot_dimension_numbers<[1], [0], [0], [1], [0, 0, 1, 1], [], []>} : vector<9x8xbf16>, vector<8x32xbf16>, vector<9x32xf32> -> vector<9x32xf32>
    %66 = arith.addf %46, %65 : vector<9x32xf32>
    %67 = vector.extract_strided_slice %39 {offsets = [0, 8], sizes = [9, 8], strides = [1, 1]} : vector<9x32xbf16> to vector<9x8xbf16>
    %68 = vector.extract_strided_slice %41 {offsets = [0, 8], sizes = [9, 8], strides = [1, 1]} : vector<9x32xbf16> to vector<9x8xbf16>
    %69 = vector.extract_strided_slice %43 {offsets = [0, 8], sizes = [9, 8], strides = [1, 1]} : vector<9x32xbf16> to vector<9x8xbf16>
    %cst_31 = arith.constant dense<0.000000e+00> : vector<9x9xf32>
    %70 = tpu.matmul %67, %68, %cst_31 {dimension_numbers = #tpu.dot_dimension_numbers<[1], [1], [0], [0], [0, 0, 1, 0], [], []>} : vector<9x8xbf16>, vector<9x8xbf16>, vector<9x9xf32> -> vector<9x9xf32>
    %cst_32 = arith.constant dense<0xFF800000> : vector<9xf32>
    %71 = vector.multi_reduction <maximumf>, %70, %cst_32 [1] : vector<9x9xf32> to vector<9xf32>
    %72 = vector.shape_cast %71 : vector<9xf32> to vector<9x1xf32>
    %73 = vector.broadcast %72 : vector<9x1xf32> to vector<9x9xf32>
    %74 = arith.subf %70, %73 : vector<9x9xf32>
    %75 = math.exp %74 : vector<9x9xf32>
    %cst_33 = arith.constant dense<0.000000e+00> : vector<9xf32>
    %76 = vector.multi_reduction <add>, %75, %cst_33 [1] : vector<9x9xf32> to vector<9xf32>
    %77 = vector.shape_cast %76 : vector<9xf32> to vector<9x1xf32>
    %78 = tpu.reciprocal %77 {approx = true} : vector<9x1xf32> -> vector<9x1xf32>
    %79 = vector.broadcast %78 : vector<9x1xf32> to vector<9x9xf32>
    %80 = arith.mulf %75, %79 : vector<9x9xf32>
    %81 = arith.truncf %80 : vector<9x9xf32> to vector<9x9xbf16>
    %cst_34 = arith.constant dense<0.000000e+00> : vector<9x8xf32>
    %82 = tpu.matmul %81, %69, %cst_34 {dimension_numbers = #tpu.dot_dimension_numbers<[1], [0], [0], [1], [0, 0, 1, 1], [], []>} : vector<9x9xbf16>, vector<9x8xbf16>, vector<9x8xf32> -> vector<9x8xf32>
    %83 = arith.truncf %82 : vector<9x8xf32> to vector<9x8xbf16>
    %84 = vector.extract_strided_slice %45 {offsets = [8, 0], sizes = [8, 32], strides = [1, 1]} : vector<32x32xbf16> to vector<8x32xbf16>
    %cst_35 = arith.constant dense<0.000000e+00> : vector<9x32xf32>
    %85 = tpu.matmul %83, %84, %cst_35 {dimension_numbers = #tpu.dot_dimension_numbers<[1], [0], [0], [1], [0, 0, 1, 1], [], []>} : vector<9x8xbf16>, vector<8x32xbf16>, vector<9x32xf32> -> vector<9x32xf32>
    %86 = arith.addf %66, %85 : vector<9x32xf32>
    %87 = vector.extract_strided_slice %39 {offsets = [0, 16], sizes = [9, 8], strides = [1, 1]} : vector<9x32xbf16> to vector<9x8xbf16>
    %88 = vector.extract_strided_slice %41 {offsets = [0, 16], sizes = [9, 8], strides = [1, 1]} : vector<9x32xbf16> to vector<9x8xbf16>
    %89 = vector.extract_strided_slice %43 {offsets = [0, 16], sizes = [9, 8], strides = [1, 1]} : vector<9x32xbf16> to vector<9x8xbf16>
    %cst_36 = arith.constant dense<0.000000e+00> : vector<9x9xf32>
    %90 = tpu.matmul %87, %88, %cst_36 {dimension_numbers = #tpu.dot_dimension_numbers<[1], [1], [0], [0], [0, 0, 1, 0], [], []>} : vector<9x8xbf16>, vector<9x8xbf16>, vector<9x9xf32> -> vector<9x9xf32>
    %cst_37 = arith.constant dense<0xFF800000> : vector<9xf32>
    %91 = vector.multi_reduction <maximumf>, %90, %cst_37 [1] : vector<9x9xf32> to vector<9xf32>
    %92 = vector.shape_cast %91 : vector<9xf32> to vector<9x1xf32>
    %93 = vector.broadcast %92 : vector<9x1xf32> to vector<9x9xf32>
    %94 = arith.subf %90, %93 : vector<9x9xf32>
    %95 = math.exp %94 : vector<9x9xf32>
    %cst_38 = arith.constant dense<0.000000e+00> : vector<9xf32>
    %96 = vector.multi_reduction <add>, %95, %cst_38 [1] : vector<9x9xf32> to vector<9xf32>
    %97 = vector.shape_cast %96 : vector<9xf32> to vector<9x1xf32>
    %98 = tpu.reciprocal %97 {approx = true} : vector<9x1xf32> -> vector<9x1xf32>
    %99 = vector.broadcast %98 : vector<9x1xf32> to vector<9x9xf32>
    %100 = arith.mulf %95, %99 : vector<9x9xf32>
    %101 = arith.truncf %100 : vector<9x9xf32> to vector<9x9xbf16>
    %cst_39 = arith.constant dense<0.000000e+00> : vector<9x8xf32>
    %102 = tpu.matmul %101, %89, %cst_39 {dimension_numbers = #tpu.dot_dimension_numbers<[1], [0], [0], [1], [0, 0, 1, 1], [], []>} : vector<9x9xbf16>, vector<9x8xbf16>, vector<9x8xf32> -> vector<9x8xf32>
    %103 = arith.truncf %102 : vector<9x8xf32> to vector<9x8xbf16>
    %104 = vector.extract_strided_slice %45 {offsets = [16, 0], sizes = [8, 32], strides = [1, 1]} : vector<32x32xbf16> to vector<8x32xbf16>
    %cst_40 = arith.constant dense<0.000000e+00> : vector<9x32xf32>
    %105 = tpu.matmul %103, %104, %cst_40 {dimension_numbers = #tpu.dot_dimension_numbers<[1], [0], [0], [1], [0, 0, 1, 1], [], []>} : vector<9x8xbf16>, vector<8x32xbf16>, vector<9x32xf32> -> vector<9x32xf32>
    %106 = arith.addf %86, %105 : vector<9x32xf32>
    %107 = vector.extract_strided_slice %39 {offsets = [0, 24], sizes = [9, 8], strides = [1, 1]} : vector<9x32xbf16> to vector<9x8xbf16>
    %108 = vector.extract_strided_slice %41 {offsets = [0, 24], sizes = [9, 8], strides = [1, 1]} : vector<9x32xbf16> to vector<9x8xbf16>
    %109 = vector.extract_strided_slice %43 {offsets = [0, 24], sizes = [9, 8], strides = [1, 1]} : vector<9x32xbf16> to vector<9x8xbf16>
    %cst_41 = arith.constant dense<0.000000e+00> : vector<9x9xf32>
    %110 = tpu.matmul %107, %108, %cst_41 {dimension_numbers = #tpu.dot_dimension_numbers<[1], [1], [0], [0], [0, 0, 1, 0], [], []>} : vector<9x8xbf16>, vector<9x8xbf16>, vector<9x9xf32> -> vector<9x9xf32>
    %cst_42 = arith.constant dense<0xFF800000> : vector<9xf32>
    %111 = vector.multi_reduction <maximumf>, %110, %cst_42 [1] : vector<9x9xf32> to vector<9xf32>
    %112 = vector.shape_cast %111 : vector<9xf32> to vector<9x1xf32>
    %113 = vector.broadcast %112 : vector<9x1xf32> to vector<9x9xf32>
    %114 = arith.subf %110, %113 : vector<9x9xf32>
    %115 = math.exp %114 : vector<9x9xf32>
    %cst_43 = arith.constant dense<0.000000e+00> : vector<9xf32>
    %116 = vector.multi_reduction <add>, %115, %cst_43 [1] : vector<9x9xf32> to vector<9xf32>
    %117 = vector.shape_cast %116 : vector<9xf32> to vector<9x1xf32>
    %118 = tpu.reciprocal %117 {approx = true} : vector<9x1xf32> -> vector<9x1xf32>
    %119 = vector.broadcast %118 : vector<9x1xf32> to vector<9x9xf32>
    %120 = arith.mulf %115, %119 : vector<9x9xf32>
    %121 = arith.truncf %120 : vector<9x9xf32> to vector<9x9xbf16>
    %cst_44 = arith.constant dense<0.000000e+00> : vector<9x8xf32>
    %122 = tpu.matmul %121, %109, %cst_44 {dimension_numbers = #tpu.dot_dimension_numbers<[1], [0], [0], [1], [0, 0, 1, 1], [], []>} : vector<9x9xbf16>, vector<9x8xbf16>, vector<9x8xf32> -> vector<9x8xf32>
    %123 = arith.truncf %122 : vector<9x8xf32> to vector<9x8xbf16>
    %124 = vector.extract_strided_slice %45 {offsets = [24, 0], sizes = [8, 32], strides = [1, 1]} : vector<32x32xbf16> to vector<8x32xbf16>
    %cst_45 = arith.constant dense<0.000000e+00> : vector<9x32xf32>
    %125 = tpu.matmul %123, %124, %cst_45 {dimension_numbers = #tpu.dot_dimension_numbers<[1], [0], [0], [1], [0, 0, 1, 1], [], []>} : vector<9x8xbf16>, vector<8x32xbf16>, vector<9x32xf32> -> vector<9x32xf32>
    %126 = arith.addf %106, %125 : vector<9x32xf32>
    %127 = arith.addf %5, %126 : vector<9x32xf32>
    %c0_46 = arith.constant 0 : index
    %c0_47 = arith.constant 0 : index
    %c0_48 = arith.constant 0 : index
    %128 = vector.load %arg8[%c0_46, %c0_47, %c0_48] : memref<2x1x32xf32, #tpu.memory_space<vmem>>, vector<1x1x32xf32>
    %129 = vector.shape_cast %128 : vector<1x1x32xf32> to vector<1x32xf32>
    %130 = vector.broadcast %129 : vector<1x32xf32> to vector<9x32xf32>
    %131 = arith.addf %127, %130 : vector<9x32xf32>
    %c0_49 = arith.constant 0 : index
    %c0_50 = arith.constant 0 : index
    %c0_51 = arith.constant 0 : index
    %132 = vector.load %arg9[%c0_49, %c0_50, %c0_51] : memref<2x1x32xf32, #tpu.memory_space<vmem>>, vector<1x1x32xf32>
    %133 = vector.shape_cast %132 : vector<1x1x32xf32> to vector<1x32xf32>
    %c0_52 = arith.constant 0 : index
    %c0_53 = arith.constant 0 : index
    %c0_54 = arith.constant 0 : index
    %134 = vector.load %arg10[%c0_52, %c0_53, %c0_54] : memref<2x1x32xf32, #tpu.memory_space<vmem>>, vector<1x1x32xf32>
    %135 = vector.shape_cast %134 : vector<1x1x32xf32> to vector<1x32xf32>
    %cst_55 = arith.constant dense<0.000000e+00> : vector<9xf32>
    %136 = vector.multi_reduction <add>, %131, %cst_55 [1] : vector<9x32xf32> to vector<9xf32>
    %137 = vector.shape_cast %136 : vector<9xf32> to vector<9x1xf32>
    %cst_56 = arith.constant 3.200000e+01 : f32
    %138 = vector.broadcast %cst_56 : f32 to vector<9x1xf32>
    %139 = arith.divf %137, %138 : vector<9x1xf32>
    %140 = vector.broadcast %139 : vector<9x1xf32> to vector<9x32xf32>
    %141 = arith.subf %131, %140 : vector<9x32xf32>
    %142 = arith.mulf %141, %141 : vector<9x32xf32>
    %cst_57 = arith.constant dense<0.000000e+00> : vector<9xf32>
    %143 = vector.multi_reduction <add>, %142, %cst_57 [1] : vector<9x32xf32> to vector<9xf32>
    %144 = vector.shape_cast %143 : vector<9xf32> to vector<9x1xf32>
    %cst_58 = arith.constant 3.200000e+01 : f32
    %145 = vector.broadcast %cst_58 : f32 to vector<9x1xf32>
    %146 = arith.divf %144, %145 : vector<9x1xf32>
    %147 = vector.broadcast %139 : vector<9x1xf32> to vector<9x32xf32>
    %148 = arith.subf %131, %147 : vector<9x32xf32>
    %cst_59 = arith.constant 9.99999974E-6 : f32
    %149 = vector.broadcast %cst_59 : f32 to vector<9x1xf32>
    %150 = arith.addf %146, %149 : vector<9x1xf32>
    %151 = math.rsqrt %150 : vector<9x1xf32>
    %152 = vector.broadcast %151 : vector<9x1xf32> to vector<9x32xf32>
    %153 = arith.mulf %148, %152 : vector<9x32xf32>
    %154 = vector.broadcast %133 : vector<1x32xf32> to vector<9x32xf32>
    %155 = arith.mulf %153, %154 : vector<9x32xf32>
    %156 = vector.broadcast %135 : vector<1x32xf32> to vector<9x32xf32>
    %157 = arith.addf %155, %156 : vector<9x32xf32>
    %158 = arith.truncf %157 : vector<9x32xf32> to vector<9x32xbf16>
    %c0_60 = arith.constant 0 : index
    %c0_61 = arith.constant 0 : index
    %c0_62 = arith.constant 0 : index
    %159 = vector.load %arg11[%c0_60, %c0_61, %c0_62] : memref<2x32x64xbf16, #tpu.memory_space<vmem>>, vector<1x32x64xbf16>
    %160 = vector.shape_cast %159 : vector<1x32x64xbf16> to vector<32x64xbf16>
    %cst_63 = arith.constant dense<0.000000e+00> : vector<9x64xf32>
    %161 = tpu.matmul %158, %160, %cst_63 {dimension_numbers = #tpu.dot_dimension_numbers<[1], [0], [0], [1], [0, 0, 1, 1], [], []>} : vector<9x32xbf16>, vector<32x64xbf16>, vector<9x64xf32> -> vector<9x64xf32>
    %c0_64 = arith.constant 0 : index
    %c0_65 = arith.constant 0 : index
    %c0_66 = arith.constant 0 : index
    %162 = vector.load %arg12[%c0_64, %c0_65, %c0_66] : memref<2x1x64xf32, #tpu.memory_space<vmem>>, vector<1x1x64xf32>
    %163 = vector.shape_cast %162 : vector<1x1x64xf32> to vector<1x64xf32>
    %164 = vector.broadcast %163 : vector<1x64xf32> to vector<9x64xf32>
    %165 = arith.addf %161, %164 : vector<9x64xf32>
    %166 = arith.mulf %165, %165 : vector<9x64xf32>
    %167 = arith.mulf %165, %166 : vector<9x64xf32>
    %cst_67 = arith.constant 4.471500e-02 : f32
    %168 = vector.broadcast %cst_67 : f32 to vector<9x64xf32>
    %169 = arith.mulf %168, %167 : vector<9x64xf32>
    %170 = arith.addf %165, %169 : vector<9x64xf32>
    %cst_68 = arith.constant 0.797884583 : f32
    %171 = vector.broadcast %cst_68 : f32 to vector<9x64xf32>
    %172 = arith.mulf %171, %170 : vector<9x64xf32>
    %173 = math.tanh %172 : vector<9x64xf32>
    %cst_69 = arith.constant 1.000000e+00 : f32
    %174 = vector.broadcast %cst_69 : f32 to vector<9x64xf32>
    %175 = arith.addf %174, %173 : vector<9x64xf32>
    %cst_70 = arith.constant 5.000000e-01 : f32
    %176 = vector.broadcast %cst_70 : f32 to vector<9x64xf32>
    %177 = arith.mulf %176, %175 : vector<9x64xf32>
    %178 = arith.mulf %165, %177 : vector<9x64xf32>
    %179 = arith.truncf %178 : vector<9x64xf32> to vector<9x64xbf16>
    %c0_71 = arith.constant 0 : index
    %c0_72 = arith.constant 0 : index
    %c0_73 = arith.constant 0 : index
    %180 = vector.load %arg13[%c0_71, %c0_72, %c0_73] : memref<2x64x32xbf16, #tpu.memory_space<vmem>>, vector<1x64x32xbf16>
    %181 = vector.shape_cast %180 : vector<1x64x32xbf16> to vector<64x32xbf16>
    %cst_74 = arith.constant dense<0.000000e+00> : vector<9x32xf32>
    %182 = tpu.matmul %179, %181, %cst_74 {dimension_numbers = #tpu.dot_dimension_numbers<[1], [0], [0], [1], [0, 0, 1, 1], [], []>} : vector<9x64xbf16>, vector<64x32xbf16>, vector<9x32xf32> -> vector<9x32xf32>
    %c0_75 = arith.constant 0 : index
    %c0_76 = arith.constant 0 : index
    %c0_77 = arith.constant 0 : index
    %183 = vector.load %arg14[%c0_75, %c0_76, %c0_77] : memref<2x1x32xf32, #tpu.memory_space<vmem>>, vector<1x1x32xf32>
    %184 = vector.shape_cast %183 : vector<1x1x32xf32> to vector<1x32xf32>
    %185 = vector.broadcast %184 : vector<1x32xf32> to vector<9x32xf32>
    %186 = arith.addf %182, %185 : vector<9x32xf32>
    %187 = arith.addf %131, %186 : vector<9x32xf32>
    %c1 = arith.constant 1 : index
    %c0_78 = arith.constant 0 : index
    %c0_79 = arith.constant 0 : index
    %188 = vector.load %arg4[%c1, %c0_78, %c0_79] : memref<2x1x32xf32, #tpu.memory_space<vmem>>, vector<1x1x32xf32>
    %189 = vector.shape_cast %188 : vector<1x1x32xf32> to vector<1x32xf32>
    %c1_80 = arith.constant 1 : index
    %c0_81 = arith.constant 0 : index
    %c0_82 = arith.constant 0 : index
    %190 = vector.load %arg5[%c1_80, %c0_81, %c0_82] : memref<2x1x32xf32, #tpu.memory_space<vmem>>, vector<1x1x32xf32>
    %191 = vector.shape_cast %190 : vector<1x1x32xf32> to vector<1x32xf32>
    %cst_83 = arith.constant dense<0.000000e+00> : vector<9xf32>
    %192 = vector.multi_reduction <add>, %187, %cst_83 [1] : vector<9x32xf32> to vector<9xf32>
    %193 = vector.shape_cast %192 : vector<9xf32> to vector<9x1xf32>
    %cst_84 = arith.constant 3.200000e+01 : f32
    %194 = vector.broadcast %cst_84 : f32 to vector<9x1xf32>
    %195 = arith.divf %193, %194 : vector<9x1xf32>
    %196 = vector.broadcast %195 : vector<9x1xf32> to vector<9x32xf32>
    %197 = arith.subf %187, %196 : vector<9x32xf32>
    %198 = arith.mulf %197, %197 : vector<9x32xf32>
    %cst_85 = arith.constant dense<0.000000e+00> : vector<9xf32>
    %199 = vector.multi_reduction <add>, %198, %cst_85 [1] : vector<9x32xf32> to vector<9xf32>
    %200 = vector.shape_cast %199 : vector<9xf32> to vector<9x1xf32>
    %cst_86 = arith.constant 3.200000e+01 : f32
    %201 = vector.broadcast %cst_86 : f32 to vector<9x1xf32>
    %202 = arith.divf %200, %201 : vector<9x1xf32>
    %203 = vector.broadcast %195 : vector<9x1xf32> to vector<9x32xf32>
    %204 = arith.subf %187, %203 : vector<9x32xf32>
    %cst_87 = arith.constant 9.99999974E-6 : f32
    %205 = vector.broadcast %cst_87 : f32 to vector<9x1xf32>
    %206 = arith.addf %202, %205 : vector<9x1xf32>
    %207 = math.rsqrt %206 : vector<9x1xf32>
    %208 = vector.broadcast %207 : vector<9x1xf32> to vector<9x32xf32>
    %209 = arith.mulf %204, %208 : vector<9x32xf32>
    %210 = vector.broadcast %189 : vector<1x32xf32> to vector<9x32xf32>
    %211 = arith.mulf %209, %210 : vector<9x32xf32>
    %212 = vector.broadcast %191 : vector<1x32xf32> to vector<9x32xf32>
    %213 = arith.addf %211, %212 : vector<9x32xf32>
    %214 = arith.truncf %213 : vector<9x32xf32> to vector<9x32xbf16>
    %c1_88 = arith.constant 1 : index
    %c0_89 = arith.constant 0 : index
    %c0_90 = arith.constant 0 : index
    %215 = vector.load %arg6[%c1_88, %c0_89, %c0_90] : memref<2x32x96xbf16, #tpu.memory_space<vmem>>, vector<1x32x96xbf16>
    %216 = vector.shape_cast %215 : vector<1x32x96xbf16> to vector<32x96xbf16>
    %cst_91 = arith.constant dense<0.000000e+00> : vector<9x96xf32>
    %217 = tpu.matmul %214, %216, %cst_91 {dimension_numbers = #tpu.dot_dimension_numbers<[1], [0], [0], [1], [0, 0, 1, 1], [], []>} : vector<9x32xbf16>, vector<32x96xbf16>, vector<9x96xf32> -> vector<9x96xf32>
    %218 = vector.extract_strided_slice %217 {offsets = [0, 0], sizes = [9, 32], strides = [1, 1]} : vector<9x96xf32> to vector<9x32xf32>
    %cst_92 = arith.constant 0.353553385 : f32
    %219 = vector.broadcast %cst_92 : f32 to vector<9x32xf32>
    %220 = arith.mulf %218, %219 : vector<9x32xf32>
    %221 = arith.truncf %220 : vector<9x32xf32> to vector<9x32xbf16>
    %222 = vector.extract_strided_slice %217 {offsets = [0, 32], sizes = [9, 32], strides = [1, 1]} : vector<9x96xf32> to vector<9x32xf32>
    %223 = arith.truncf %222 : vector<9x32xf32> to vector<9x32xbf16>
    %224 = vector.extract_strided_slice %217 {offsets = [0, 64], sizes = [9, 32], strides = [1, 1]} : vector<9x96xf32> to vector<9x32xf32>
    %225 = arith.truncf %224 : vector<9x32xf32> to vector<9x32xbf16>
    %c1_93 = arith.constant 1 : index
    %c0_94 = arith.constant 0 : index
    %c0_95 = arith.constant 0 : index
    %226 = vector.load %arg7[%c1_93, %c0_94, %c0_95] : memref<2x32x32xbf16, #tpu.memory_space<vmem>>, vector<1x32x32xbf16>
    %227 = vector.shape_cast %226 : vector<1x32x32xbf16> to vector<32x32xbf16>
    %cst_96 = arith.constant 0.000000e+00 : f32
    %228 = vector.broadcast %cst_96 : f32 to vector<9x32xf32>
    %229 = vector.extract_strided_slice %221 {offsets = [0, 0], sizes = [9, 8], strides = [1, 1]} : vector<9x32xbf16> to vector<9x8xbf16>
    %230 = vector.extract_strided_slice %223 {offsets = [0, 0], sizes = [9, 8], strides = [1, 1]} : vector<9x32xbf16> to vector<9x8xbf16>
    %231 = vector.extract_strided_slice %225 {offsets = [0, 0], sizes = [9, 8], strides = [1, 1]} : vector<9x32xbf16> to vector<9x8xbf16>
    %cst_97 = arith.constant dense<0.000000e+00> : vector<9x9xf32>
    %232 = tpu.matmul %229, %230, %cst_97 {dimension_numbers = #tpu.dot_dimension_numbers<[1], [1], [0], [0], [0, 0, 1, 0], [], []>} : vector<9x8xbf16>, vector<9x8xbf16>, vector<9x9xf32> -> vector<9x9xf32>
    %cst_98 = arith.constant dense<0xFF800000> : vector<9xf32>
    %233 = vector.multi_reduction <maximumf>, %232, %cst_98 [1] : vector<9x9xf32> to vector<9xf32>
    %234 = vector.shape_cast %233 : vector<9xf32> to vector<9x1xf32>
    %235 = vector.broadcast %234 : vector<9x1xf32> to vector<9x9xf32>
    %236 = arith.subf %232, %235 : vector<9x9xf32>
    %237 = math.exp %236 : vector<9x9xf32>
    %cst_99 = arith.constant dense<0.000000e+00> : vector<9xf32>
    %238 = vector.multi_reduction <add>, %237, %cst_99 [1] : vector<9x9xf32> to vector<9xf32>
    %239 = vector.shape_cast %238 : vector<9xf32> to vector<9x1xf32>
    %240 = tpu.reciprocal %239 {approx = true} : vector<9x1xf32> -> vector<9x1xf32>
    %241 = vector.broadcast %240 : vector<9x1xf32> to vector<9x9xf32>
    %242 = arith.mulf %237, %241 : vector<9x9xf32>
    %243 = arith.truncf %242 : vector<9x9xf32> to vector<9x9xbf16>
    %cst_100 = arith.constant dense<0.000000e+00> : vector<9x8xf32>
    %244 = tpu.matmul %243, %231, %cst_100 {dimension_numbers = #tpu.dot_dimension_numbers<[1], [0], [0], [1], [0, 0, 1, 1], [], []>} : vector<9x9xbf16>, vector<9x8xbf16>, vector<9x8xf32> -> vector<9x8xf32>
    %245 = arith.truncf %244 : vector<9x8xf32> to vector<9x8xbf16>
    %246 = vector.extract_strided_slice %227 {offsets = [0, 0], sizes = [8, 32], strides = [1, 1]} : vector<32x32xbf16> to vector<8x32xbf16>
    %cst_101 = arith.constant dense<0.000000e+00> : vector<9x32xf32>
    %247 = tpu.matmul %245, %246, %cst_101 {dimension_numbers = #tpu.dot_dimension_numbers<[1], [0], [0], [1], [0, 0, 1, 1], [], []>} : vector<9x8xbf16>, vector<8x32xbf16>, vector<9x32xf32> -> vector<9x32xf32>
    %248 = arith.addf %228, %247 : vector<9x32xf32>
    %249 = vector.extract_strided_slice %221 {offsets = [0, 8], sizes = [9, 8], strides = [1, 1]} : vector<9x32xbf16> to vector<9x8xbf16>
    %250 = vector.extract_strided_slice %223 {offsets = [0, 8], sizes = [9, 8], strides = [1, 1]} : vector<9x32xbf16> to vector<9x8xbf16>
    %251 = vector.extract_strided_slice %225 {offsets = [0, 8], sizes = [9, 8], strides = [1, 1]} : vector<9x32xbf16> to vector<9x8xbf16>
    %cst_102 = arith.constant dense<0.000000e+00> : vector<9x9xf32>
    %252 = tpu.matmul %249, %250, %cst_102 {dimension_numbers = #tpu.dot_dimension_numbers<[1], [1], [0], [0], [0, 0, 1, 0], [], []>} : vector<9x8xbf16>, vector<9x8xbf16>, vector<9x9xf32> -> vector<9x9xf32>
    %cst_103 = arith.constant dense<0xFF800000> : vector<9xf32>
    %253 = vector.multi_reduction <maximumf>, %252, %cst_103 [1] : vector<9x9xf32> to vector<9xf32>
    %254 = vector.shape_cast %253 : vector<9xf32> to vector<9x1xf32>
    %255 = vector.broadcast %254 : vector<9x1xf32> to vector<9x9xf32>
    %256 = arith.subf %252, %255 : vector<9x9xf32>
    %257 = math.exp %256 : vector<9x9xf32>
    %cst_104 = arith.constant dense<0.000000e+00> : vector<9xf32>
    %258 = vector.multi_reduction <add>, %257, %cst_104 [1] : vector<9x9xf32> to vector<9xf32>
    %259 = vector.shape_cast %258 : vector<9xf32> to vector<9x1xf32>
    %260 = tpu.reciprocal %259 {approx = true} : vector<9x1xf32> -> vector<9x1xf32>
    %261 = vector.broadcast %260 : vector<9x1xf32> to vector<9x9xf32>
    %262 = arith.mulf %257, %261 : vector<9x9xf32>
    %263 = arith.truncf %262 : vector<9x9xf32> to vector<9x9xbf16>
    %cst_105 = arith.constant dense<0.000000e+00> : vector<9x8xf32>
    %264 = tpu.matmul %263, %251, %cst_105 {dimension_numbers = #tpu.dot_dimension_numbers<[1], [0], [0], [1], [0, 0, 1, 1], [], []>} : vector<9x9xbf16>, vector<9x8xbf16>, vector<9x8xf32> -> vector<9x8xf32>
    %265 = arith.truncf %264 : vector<9x8xf32> to vector<9x8xbf16>
    %266 = vector.extract_strided_slice %227 {offsets = [8, 0], sizes = [8, 32], strides = [1, 1]} : vector<32x32xbf16> to vector<8x32xbf16>
    %cst_106 = arith.constant dense<0.000000e+00> : vector<9x32xf32>
    %267 = tpu.matmul %265, %266, %cst_106 {dimension_numbers = #tpu.dot_dimension_numbers<[1], [0], [0], [1], [0, 0, 1, 1], [], []>} : vector<9x8xbf16>, vector<8x32xbf16>, vector<9x32xf32> -> vector<9x32xf32>
    %268 = arith.addf %248, %267 : vector<9x32xf32>
    %269 = vector.extract_strided_slice %221 {offsets = [0, 16], sizes = [9, 8], strides = [1, 1]} : vector<9x32xbf16> to vector<9x8xbf16>
    %270 = vector.extract_strided_slice %223 {offsets = [0, 16], sizes = [9, 8], strides = [1, 1]} : vector<9x32xbf16> to vector<9x8xbf16>
    %271 = vector.extract_strided_slice %225 {offsets = [0, 16], sizes = [9, 8], strides = [1, 1]} : vector<9x32xbf16> to vector<9x8xbf16>
    %cst_107 = arith.constant dense<0.000000e+00> : vector<9x9xf32>
    %272 = tpu.matmul %269, %270, %cst_107 {dimension_numbers = #tpu.dot_dimension_numbers<[1], [1], [0], [0], [0, 0, 1, 0], [], []>} : vector<9x8xbf16>, vector<9x8xbf16>, vector<9x9xf32> -> vector<9x9xf32>
    %cst_108 = arith.constant dense<0xFF800000> : vector<9xf32>
    %273 = vector.multi_reduction <maximumf>, %272, %cst_108 [1] : vector<9x9xf32> to vector<9xf32>
    %274 = vector.shape_cast %273 : vector<9xf32> to vector<9x1xf32>
    %275 = vector.broadcast %274 : vector<9x1xf32> to vector<9x9xf32>
    %276 = arith.subf %272, %275 : vector<9x9xf32>
    %277 = math.exp %276 : vector<9x9xf32>
    %cst_109 = arith.constant dense<0.000000e+00> : vector<9xf32>
    %278 = vector.multi_reduction <add>, %277, %cst_109 [1] : vector<9x9xf32> to vector<9xf32>
    %279 = vector.shape_cast %278 : vector<9xf32> to vector<9x1xf32>
    %280 = tpu.reciprocal %279 {approx = true} : vector<9x1xf32> -> vector<9x1xf32>
    %281 = vector.broadcast %280 : vector<9x1xf32> to vector<9x9xf32>
    %282 = arith.mulf %277, %281 : vector<9x9xf32>
    %283 = arith.truncf %282 : vector<9x9xf32> to vector<9x9xbf16>
    %cst_110 = arith.constant dense<0.000000e+00> : vector<9x8xf32>
    %284 = tpu.matmul %283, %271, %cst_110 {dimension_numbers = #tpu.dot_dimension_numbers<[1], [0], [0], [1], [0, 0, 1, 1], [], []>} : vector<9x9xbf16>, vector<9x8xbf16>, vector<9x8xf32> -> vector<9x8xf32>
    %285 = arith.truncf %284 : vector<9x8xf32> to vector<9x8xbf16>
    %286 = vector.extract_strided_slice %227 {offsets = [16, 0], sizes = [8, 32], strides = [1, 1]} : vector<32x32xbf16> to vector<8x32xbf16>
    %cst_111 = arith.constant dense<0.000000e+00> : vector<9x32xf32>
    %287 = tpu.matmul %285, %286, %cst_111 {dimension_numbers = #tpu.dot_dimension_numbers<[1], [0], [0], [1], [0, 0, 1, 1], [], []>} : vector<9x8xbf16>, vector<8x32xbf16>, vector<9x32xf32> -> vector<9x32xf32>
    %288 = arith.addf %268, %287 : vector<9x32xf32>
    %289 = vector.extract_strided_slice %221 {offsets = [0, 24], sizes = [9, 8], strides = [1, 1]} : vector<9x32xbf16> to vector<9x8xbf16>
    %290 = vector.extract_strided_slice %223 {offsets = [0, 24], sizes = [9, 8], strides = [1, 1]} : vector<9x32xbf16> to vector<9x8xbf16>
    %291 = vector.extract_strided_slice %225 {offsets = [0, 24], sizes = [9, 8], strides = [1, 1]} : vector<9x32xbf16> to vector<9x8xbf16>
    %cst_112 = arith.constant dense<0.000000e+00> : vector<9x9xf32>
    %292 = tpu.matmul %289, %290, %cst_112 {dimension_numbers = #tpu.dot_dimension_numbers<[1], [1], [0], [0], [0, 0, 1, 0], [], []>} : vector<9x8xbf16>, vector<9x8xbf16>, vector<9x9xf32> -> vector<9x9xf32>
    %cst_113 = arith.constant dense<0xFF800000> : vector<9xf32>
    %293 = vector.multi_reduction <maximumf>, %292, %cst_113 [1] : vector<9x9xf32> to vector<9xf32>
    %294 = vector.shape_cast %293 : vector<9xf32> to vector<9x1xf32>
    %295 = vector.broadcast %294 : vector<9x1xf32> to vector<9x9xf32>
    %296 = arith.subf %292, %295 : vector<9x9xf32>
    %297 = math.exp %296 : vector<9x9xf32>
    %cst_114 = arith.constant dense<0.000000e+00> : vector<9xf32>
    %298 = vector.multi_reduction <add>, %297, %cst_114 [1] : vector<9x9xf32> to vector<9xf32>
    %299 = vector.shape_cast %298 : vector<9xf32> to vector<9x1xf32>
    %300 = tpu.reciprocal %299 {approx = true} : vector<9x1xf32> -> vector<9x1xf32>
    %301 = vector.broadcast %300 : vector<9x1xf32> to vector<9x9xf32>
    %302 = arith.mulf %297, %301 : vector<9x9xf32>
    %303 = arith.truncf %302 : vector<9x9xf32> to vector<9x9xbf16>
    %cst_115 = arith.constant dense<0.000000e+00> : vector<9x8xf32>
    %304 = tpu.matmul %303, %291, %cst_115 {dimension_numbers = #tpu.dot_dimension_numbers<[1], [0], [0], [1], [0, 0, 1, 1], [], []>} : vector<9x9xbf16>, vector<9x8xbf16>, vector<9x8xf32> -> vector<9x8xf32>
    %305 = arith.truncf %304 : vector<9x8xf32> to vector<9x8xbf16>
    %306 = vector.extract_strided_slice %227 {offsets = [24, 0], sizes = [8, 32], strides = [1, 1]} : vector<32x32xbf16> to vector<8x32xbf16>
    %cst_116 = arith.constant dense<0.000000e+00> : vector<9x32xf32>
    %307 = tpu.matmul %305, %306, %cst_116 {dimension_numbers = #tpu.dot_dimension_numbers<[1], [0], [0], [1], [0, 0, 1, 1], [], []>} : vector<9x8xbf16>, vector<8x32xbf16>, vector<9x32xf32> -> vector<9x32xf32>
    %308 = arith.addf %288, %307 : vector<9x32xf32>
    %309 = arith.addf %187, %308 : vector<9x32xf32>
    %c1_117 = arith.constant 1 : index
    %c0_118 = arith.constant 0 : index
    %c0_119 = arith.constant 0 : index
    %310 = vector.load %arg8[%c1_117, %c0_118, %c0_119] : memref<2x1x32xf32, #tpu.memory_space<vmem>>, vector<1x1x32xf32>
    %311 = vector.shape_cast %310 : vector<1x1x32xf32> to vector<1x32xf32>
    %312 = vector.broadcast %311 : vector<1x32xf32> to vector<9x32xf32>
    %313 = arith.addf %309, %312 : vector<9x32xf32>
    %c1_120 = arith.constant 1 : index
    %c0_121 = arith.constant 0 : index
    %c0_122 = arith.constant 0 : index
    %314 = vector.load %arg9[%c1_120, %c0_121, %c0_122] : memref<2x1x32xf32, #tpu.memory_space<vmem>>, vector<1x1x32xf32>
    %315 = vector.shape_cast %314 : vector<1x1x32xf32> to vector<1x32xf32>
    %c1_123 = arith.constant 1 : index
    %c0_124 = arith.constant 0 : index
    %c0_125 = arith.constant 0 : index
    %316 = vector.load %arg10[%c1_123, %c0_124, %c0_125] : memref<2x1x32xf32, #tpu.memory_space<vmem>>, vector<1x1x32xf32>
    %317 = vector.shape_cast %316 : vector<1x1x32xf32> to vector<1x32xf32>
    %cst_126 = arith.constant dense<0.000000e+00> : vector<9xf32>
    %318 = vector.multi_reduction <add>, %313, %cst_126 [1] : vector<9x32xf32> to vector<9xf32>
    %319 = vector.shape_cast %318 : vector<9xf32> to vector<9x1xf32>
    %cst_127 = arith.constant 3.200000e+01 : f32
    %320 = vector.broadcast %cst_127 : f32 to vector<9x1xf32>
    %321 = arith.divf %319, %320 : vector<9x1xf32>
    %322 = vector.broadcast %321 : vector<9x1xf32> to vector<9x32xf32>
    %323 = arith.subf %313, %322 : vector<9x32xf32>
    %324 = arith.mulf %323, %323 : vector<9x32xf32>
    %cst_128 = arith.constant dense<0.000000e+00> : vector<9xf32>
    %325 = vector.multi_reduction <add>, %324, %cst_128 [1] : vector<9x32xf32> to vector<9xf32>
    %326 = vector.shape_cast %325 : vector<9xf32> to vector<9x1xf32>
    %cst_129 = arith.constant 3.200000e+01 : f32
    %327 = vector.broadcast %cst_129 : f32 to vector<9x1xf32>
    %328 = arith.divf %326, %327 : vector<9x1xf32>
    %329 = vector.broadcast %321 : vector<9x1xf32> to vector<9x32xf32>
    %330 = arith.subf %313, %329 : vector<9x32xf32>
    %cst_130 = arith.constant 9.99999974E-6 : f32
    %331 = vector.broadcast %cst_130 : f32 to vector<9x1xf32>
    %332 = arith.addf %328, %331 : vector<9x1xf32>
    %333 = math.rsqrt %332 : vector<9x1xf32>
    %334 = vector.broadcast %333 : vector<9x1xf32> to vector<9x32xf32>
    %335 = arith.mulf %330, %334 : vector<9x32xf32>
    %336 = vector.broadcast %315 : vector<1x32xf32> to vector<9x32xf32>
    %337 = arith.mulf %335, %336 : vector<9x32xf32>
    %338 = vector.broadcast %317 : vector<1x32xf32> to vector<9x32xf32>
    %339 = arith.addf %337, %338 : vector<9x32xf32>
    %340 = arith.truncf %339 : vector<9x32xf32> to vector<9x32xbf16>
    %c1_131 = arith.constant 1 : index
    %c0_132 = arith.constant 0 : index
    %c0_133 = arith.constant 0 : index
    %341 = vector.load %arg11[%c1_131, %c0_132, %c0_133] : memref<2x32x64xbf16, #tpu.memory_space<vmem>>, vector<1x32x64xbf16>
    %342 = vector.shape_cast %341 : vector<1x32x64xbf16> to vector<32x64xbf16>
    %cst_134 = arith.constant dense<0.000000e+00> : vector<9x64xf32>
    %343 = tpu.matmul %340, %342, %cst_134 {dimension_numbers = #tpu.dot_dimension_numbers<[1], [0], [0], [1], [0, 0, 1, 1], [], []>} : vector<9x32xbf16>, vector<32x64xbf16>, vector<9x64xf32> -> vector<9x64xf32>
    %c1_135 = arith.constant 1 : index
    %c0_136 = arith.constant 0 : index
    %c0_137 = arith.constant 0 : index
    %344 = vector.load %arg12[%c1_135, %c0_136, %c0_137] : memref<2x1x64xf32, #tpu.memory_space<vmem>>, vector<1x1x64xf32>
    %345 = vector.shape_cast %344 : vector<1x1x64xf32> to vector<1x64xf32>
    %346 = vector.broadcast %345 : vector<1x64xf32> to vector<9x64xf32>
    %347 = arith.addf %343, %346 : vector<9x64xf32>
    %348 = arith.mulf %347, %347 : vector<9x64xf32>
    %349 = arith.mulf %347, %348 : vector<9x64xf32>
    %cst_138 = arith.constant 4.471500e-02 : f32
    %350 = vector.broadcast %cst_138 : f32 to vector<9x64xf32>
    %351 = arith.mulf %350, %349 : vector<9x64xf32>
    %352 = arith.addf %347, %351 : vector<9x64xf32>
    %cst_139 = arith.constant 0.797884583 : f32
    %353 = vector.broadcast %cst_139 : f32 to vector<9x64xf32>
    %354 = arith.mulf %353, %352 : vector<9x64xf32>
    %355 = math.tanh %354 : vector<9x64xf32>
    %cst_140 = arith.constant 1.000000e+00 : f32
    %356 = vector.broadcast %cst_140 : f32 to vector<9x64xf32>
    %357 = arith.addf %356, %355 : vector<9x64xf32>
    %cst_141 = arith.constant 5.000000e-01 : f32
    %358 = vector.broadcast %cst_141 : f32 to vector<9x64xf32>
    %359 = arith.mulf %358, %357 : vector<9x64xf32>
    %360 = arith.mulf %347, %359 : vector<9x64xf32>
    %361 = arith.truncf %360 : vector<9x64xf32> to vector<9x64xbf16>
    %c1_142 = arith.constant 1 : index
    %c0_143 = arith.constant 0 : index
    %c0_144 = arith.constant 0 : index
    %362 = vector.load %arg13[%c1_142, %c0_143, %c0_144] : memref<2x64x32xbf16, #tpu.memory_space<vmem>>, vector<1x64x32xbf16>
    %363 = vector.shape_cast %362 : vector<1x64x32xbf16> to vector<64x32xbf16>
    %cst_145 = arith.constant dense<0.000000e+00> : vector<9x32xf32>
    %364 = tpu.matmul %361, %363, %cst_145 {dimension_numbers = #tpu.dot_dimension_numbers<[1], [0], [0], [1], [0, 0, 1, 1], [], []>} : vector<9x64xbf16>, vector<64x32xbf16>, vector<9x32xf32> -> vector<9x32xf32>
    %c1_146 = arith.constant 1 : index
    %c0_147 = arith.constant 0 : index
    %c0_148 = arith.constant 0 : index
    %365 = vector.load %arg14[%c1_146, %c0_147, %c0_148] : memref<2x1x32xf32, #tpu.memory_space<vmem>>, vector<1x1x32xf32>
    %366 = vector.shape_cast %365 : vector<1x1x32xf32> to vector<1x32xf32>
    %367 = vector.broadcast %366 : vector<1x32xf32> to vector<9x32xf32>
    %368 = arith.addf %364, %367 : vector<9x32xf32>
    %369 = arith.addf %313, %368 : vector<9x32xf32>
    %370 = vector.extract_strided_slice %369 {offsets = [0, 0], sizes = [1, 32], strides = [1, 1]} : vector<9x32xf32> to vector<1x32xf32>
    %c0_149 = arith.constant 0 : index
    %c0_150 = arith.constant 0 : index
    %371 = vector.load %arg15[%c0_149, %c0_150] : memref<1x32xf32, #tpu.memory_space<vmem>>, vector<1x32xf32>
    %c0_151 = arith.constant 0 : index
    %c0_152 = arith.constant 0 : index
    %372 = vector.load %arg16[%c0_151, %c0_152] : memref<1x32xf32, #tpu.memory_space<vmem>>, vector<1x32xf32>
    %cst_153 = arith.constant dense<0.000000e+00> : vector<1xf32>
    %373 = vector.multi_reduction <add>, %370, %cst_153 [1] : vector<1x32xf32> to vector<1xf32>
    %374 = vector.shape_cast %373 : vector<1xf32> to vector<1x1xf32>
    %cst_154 = arith.constant 3.200000e+01 : f32
    %375 = vector.broadcast %cst_154 : f32 to vector<1x1xf32>
    %376 = arith.divf %374, %375 : vector<1x1xf32>
    %377 = vector.broadcast %376 : vector<1x1xf32> to vector<1x32xf32>
    %378 = arith.subf %370, %377 : vector<1x32xf32>
    %379 = arith.mulf %378, %378 : vector<1x32xf32>
    %cst_155 = arith.constant dense<0.000000e+00> : vector<1xf32>
    %380 = vector.multi_reduction <add>, %379, %cst_155 [1] : vector<1x32xf32> to vector<1xf32>
    %381 = vector.shape_cast %380 : vector<1xf32> to vector<1x1xf32>
    %cst_156 = arith.constant 3.200000e+01 : f32
    %382 = vector.broadcast %cst_156 : f32 to vector<1x1xf32>
    %383 = arith.divf %381, %382 : vector<1x1xf32>
    %384 = vector.broadcast %376 : vector<1x1xf32> to vector<1x32xf32>
    %385 = arith.subf %370, %384 : vector<1x32xf32>
    %cst_157 = arith.constant 9.99999974E-6 : f32
    %386 = vector.broadcast %cst_157 : f32 to vector<1x1xf32>
    %387 = arith.addf %383, %386 : vector<1x1xf32>
    %388 = math.rsqrt %387 : vector<1x1xf32>
    %389 = vector.broadcast %388 : vector<1x1xf32> to vector<1x32xf32>
    %390 = arith.mulf %385, %389 : vector<1x32xf32>
    %391 = arith.mulf %390, %371 : vector<1x32xf32>
    %392 = arith.addf %391, %372 : vector<1x32xf32>
    %c0_158 = arith.constant 0 : index
    %c0_159 = arith.constant 0 : index
    %393 = vector.load %arg17[%c0_158, %c0_159] : memref<1x32xf32, #tpu.memory_space<vmem>>, vector<1x32xf32>
    %c0_160 = arith.constant 0 : index
    %c0_161 = arith.constant 0 : index
    %394 = vector.load %arg18[%c0_160, %c0_161] : memref<1x32xf32, #tpu.memory_space<vmem>>, vector<1x32xf32>
    %cst_162 = arith.constant dense<0.000000e+00> : vector<1xf32>
    %395 = vector.multi_reduction <add>, %392, %cst_162 [1] : vector<1x32xf32> to vector<1xf32>
    %396 = vector.shape_cast %395 : vector<1xf32> to vector<1x1xf32>
    %cst_163 = arith.constant 3.200000e+01 : f32
    %397 = vector.broadcast %cst_163 : f32 to vector<1x1xf32>
    %398 = arith.divf %396, %397 : vector<1x1xf32>
    %399 = vector.broadcast %398 : vector<1x1xf32> to vector<1x32xf32>
    %400 = arith.subf %392, %399 : vector<1x32xf32>
    %401 = arith.mulf %400, %400 : vector<1x32xf32>
    %cst_164 = arith.constant dense<0.000000e+00> : vector<1xf32>
    %402 = vector.multi_reduction <add>, %401, %cst_164 [1] : vector<1x32xf32> to vector<1xf32>
    %403 = vector.shape_cast %402 : vector<1xf32> to vector<1x1xf32>
    %cst_165 = arith.constant 3.200000e+01 : f32
    %404 = vector.broadcast %cst_165 : f32 to vector<1x1xf32>
    %405 = arith.divf %403, %404 : vector<1x1xf32>
    %406 = vector.broadcast %398 : vector<1x1xf32> to vector<1x32xf32>
    %407 = arith.subf %392, %406 : vector<1x32xf32>
    %cst_166 = arith.constant 9.99999974E-6 : f32
    %408 = vector.broadcast %cst_166 : f32 to vector<1x1xf32>
    %409 = arith.addf %405, %408 : vector<1x1xf32>
    %410 = math.rsqrt %409 : vector<1x1xf32>
    %411 = vector.broadcast %410 : vector<1x1xf32> to vector<1x32xf32>
    %412 = arith.mulf %407, %411 : vector<1x32xf32>
    %413 = arith.mulf %412, %393 : vector<1x32xf32>
    %414 = arith.addf %413, %394 : vector<1x32xf32>
    %415 = arith.truncf %414 : vector<1x32xf32> to vector<1x32xbf16>
    %c0_167 = arith.constant 0 : index
    %c0_168 = arith.constant 0 : index
    %416 = vector.load %arg19[%c0_167, %c0_168] : memref<32x10xbf16, #tpu.memory_space<vmem>>, vector<32x10xbf16>
    %cst_169 = arith.constant dense<0.000000e+00> : vector<1x10xf32>
    %417 = tpu.matmul %415, %416, %cst_169 {dimension_numbers = #tpu.dot_dimension_numbers<[1], [0], [0], [1], [0, 0, 1, 1], [], []>} : vector<1x32xbf16>, vector<32x10xbf16>, vector<1x10xf32> -> vector<1x10xf32>
    %c0_170 = arith.constant 0 : index
    %c0_171 = arith.constant 0 : index
    %418 = vector.load %arg20[%c0_170, %c0_171] : memref<1x10xf32, #tpu.memory_space<vmem>>, vector<1x10xf32>
    %419 = arith.addf %417, %418 : vector<1x10xf32>
    %c0_172 = arith.constant 0 : index
    %c0_173 = arith.constant 0 : index
    %c0_174 = arith.constant 0 : index
    %420 = vector.load %arg21[%c0_172, %c0_173, %c0_174] : memref<1x1x10xf32, #tpu.memory_space<vmem>>, vector<1x1x10xf32>
    %421 = vector.shape_cast %420 : vector<1x1x10xf32> to vector<1x10xf32>
    %422 = vector.shape_cast %419 : vector<1x10xf32> to vector<1x1x10xf32>
    tpu.vector_store %arg21[%c0_172, %c0_173, %c0_174], %422 {strides = array<i32>} : memref<1x1x10xf32, #tpu.memory_space<vmem>>, vector<1x1x10xf32>,
    return
  }
  func.func @transform_0(%arg0: i32) -> (i32, i32, i32) {
    %c0_i32 = arith.constant 0 : i32
    %c0_i32_0 = arith.constant 0 : i32
    %c0_i32_1 = arith.constant 0 : i32
    return %arg0, %c0_i32, %c0_i32_0 : i32, i32, i32
  }
  func.func @transform_1(%arg0: i32) -> (i32, i32) {
    %c0_i32 = arith.constant 0 : i32
    %c0_i32_0 = arith.constant 0 : i32
    %c0_i32_1 = arith.constant 0 : i32
    return %c0_i32, %c0_i32_0 : i32, i32
  }
  func.func @transform_2(%arg0: i32) -> (i32, i32) {
    %c0_i32 = arith.constant 0 : i32
    %c0_i32_0 = arith.constant 0 : i32
    %c0_i32_1 = arith.constant 0 : i32
    return %c0_i32, %c0_i32_0 : i32, i32
  }
  func.func @transform_3(%arg0: i32) -> (i32, i32, i32) {
    %c0_i32 = arith.constant 0 : i32
    %c0_i32_0 = arith.constant 0 : i32
    %c0_i32_1 = arith.constant 0 : i32
    %c0_i32_2 = arith.constant 0 : i32
    return %c0_i32, %c0_i32_0, %c0_i32_1 : i32, i32, i32
  }
  func.func @transform_4(%arg0: i32) -> (i32, i32, i32) {
    %c0_i32 = arith.constant 0 : i32
    %c0_i32_0 = arith.constant 0 : i32
    %c0_i32_1 = arith.constant 0 : i32
    %c0_i32_2 = arith.constant 0 : i32
    return %c0_i32, %c0_i32_0, %c0_i32_1 : i32, i32, i32
  }
  func.func @transform_5(%arg0: i32) -> (i32, i32, i32) {
    %c0_i32 = arith.constant 0 : i32
    %c0_i32_0 = arith.constant 0 : i32
    %c0_i32_1 = arith.constant 0 : i32
    %c0_i32_2 = arith.constant 0 : i32
    return %c0_i32, %c0_i32_0, %c0_i32_1 : i32, i32, i32
  }
  func.func @transform_6(%arg0: i32) -> (i32, i32, i32) {
    %c0_i32 = arith.constant 0 : i32
    %c0_i32_0 = arith.constant 0 : i32
    %c0_i32_1 = arith.constant 0 : i32
    %c0_i32_2 = arith.constant 0 : i32
    return %c0_i32, %c0_i32_0, %c0_i32_1 : i32, i32, i32
  }
  func.func @transform_7(%arg0: i32) -> (i32, i32, i32) {
    %c0_i32 = arith.constant 0 : i32
    %c0_i32_0 = arith.constant 0 : i32
    %c0_i32_1 = arith.constant 0 : i32
    %c0_i32_2 = arith.constant 0 : i32
    return %c0_i32, %c0_i32_0, %c0_i32_1 : i32, i32, i32
  }
  func.func @transform_8(%arg0: i32) -> (i32, i32, i32) {
    %c0_i32 = arith.constant 0 : i32
    %c0_i32_0 = arith.constant 0 : i32
    %c0_i32_1 = arith.constant 0 : i32
    %c0_i32_2 = arith.constant 0 : i32
    return %c0_i32, %c0_i32_0, %c0_i32_1 : i32, i32, i32
  }
  func.func @transform_9(%arg0: i32) -> (i32, i32, i32) {
    %c0_i32 = arith.constant 0 : i32
    %c0_i32_0 = arith.constant 0 : i32
    %c0_i32_1 = arith.constant 0 : i32
    %c0_i32_2 = arith.constant 0 : i32
    return %c0_i32, %c0_i32_0, %c0_i32_1 : i32, i32, i32
  }
  func.func @transform_10(%arg0: i32) -> (i32, i32, i32) {
    %c0_i32 = arith.constant 0 : i32
    %c0_i32_0 = arith.constant 0 : i32
    %c0_i32_1 = arith.constant 0 : i32
    %c0_i32_2 = arith.constant 0 : i32
    return %c0_i32, %c0_i32_0, %c0_i32_1 : i32, i32, i32
  }
  func.func @transform_11(%arg0: i32) -> (i32, i32, i32) {
    %c0_i32 = arith.constant 0 : i32
    %c0_i32_0 = arith.constant 0 : i32
    %c0_i32_1 = arith.constant 0 : i32
    %c0_i32_2 = arith.constant 0 : i32
    return %c0_i32, %c0_i32_0, %c0_i32_1 : i32, i32, i32
  }
  func.func @transform_12(%arg0: i32) -> (i32, i32, i32) {
    %c0_i32 = arith.constant 0 : i32
    %c0_i32_0 = arith.constant 0 : i32
    %c0_i32_1 = arith.constant 0 : i32
    %c0_i32_2 = arith.constant 0 : i32
    return %c0_i32, %c0_i32_0, %c0_i32_1 : i32, i32, i32
  }
  func.func @transform_13(%arg0: i32) -> (i32, i32, i32) {
    %c0_i32 = arith.constant 0 : i32
    %c0_i32_0 = arith.constant 0 : i32
    %c0_i32_1 = arith.constant 0 : i32
    %c0_i32_2 = arith.constant 0 : i32
    return %c0_i32, %c0_i32_0, %c0_i32_1 : i32, i32, i32
  }
  func.func @transform_14(%arg0: i32) -> (i32, i32) {
    %c0_i32 = arith.constant 0 : i32
    %c0_i32_0 = arith.constant 0 : i32
    %c0_i32_1 = arith.constant 0 : i32
    return %c0_i32, %c0_i32_0 : i32, i32
  }
  func.func @transform_15(%arg0: i32) -> (i32, i32) {
    %c0_i32 = arith.constant 0 : i32
    %c0_i32_0 = arith.constant 0 : i32
    %c0_i32_1 = arith.constant 0 : i32
    return %c0_i32, %c0_i32_0 : i32, i32
  }
  func.func @transform_16(%arg0: i32) -> (i32, i32) {
    %c0_i32 = arith.constant 0 : i32
    %c0_i32_0 = arith.constant 0 : i32
    %c0_i32_1 = arith.constant 0 : i32
    return %c0_i32, %c0_i32_0 : i32, i32
  }
  func.func @transform_17(%arg0: i32) -> (i32, i32) {
    %c0_i32 = arith.constant 0 : i32
    %c0_i32_0 = arith.constant 0 : i32
    %c0_i32_1 = arith.constant 0 : i32
    return %c0_i32, %c0_i32_0 : i32, i32
  }
  func.func @transform_18(%arg0: i32) -> (i32, i32) {
    %c0_i32 = arith.constant 0 : i32
    %c0_i32_0 = arith.constant 0 : i32
    %c0_i32_1 = arith.constant 0 : i32
    return %c0_i32, %c0_i32_0 : i32, i32
  }
  func.func @transform_19(%arg0: i32) -> (i32, i32) {
    %c0_i32 = arith.constant 0 : i32
    %c0_i32_0 = arith.constant 0 : i32
    %c0_i32_1 = arith.constant 0 : i32
    return %c0_i32, %c0_i32_0 : i32, i32
  }
  func.func @transform_20(%arg0: i32) -> (i32, i32, i32) {
    %c0_i32 = arith.constant 0 : i32
    %c0_i32_0 = arith.constant 0 : i32
    %c0_i32_1 = arith.constant 0 : i32
    return %arg0, %c0_i32, %c0_i32_0 : i32, i32, i32
  }
}

</mosaic_0001>

<llo_original>
// kernel: _lambda_.1
$region0: #{_lambda_.1}
  #allocation0 [shape = 'u32[]', space=smem, size = 0x4, offset = 0x4, fixed_abs, tag = 'smem constant byte address 0x4 - core index']
  #allocation1 [shape = 'u32[72,128]{1,0:T(1,128)}', space=vmem, size = 0x9000, scoped, tag = 'internal scratch']
  %s0 = inlined_call_operand.vmem [shape: bf16[2,9,768], index: 0, kind: input, shape index: {}]
  %s1 = inlined_call_operand.vmem [shape: bf16[768,32], index: 1, kind: input, shape index: {}]
  %s2 = inlined_call_operand.vmem [shape: f32[9,32], index: 2, kind: input, shape index: {}]
  %s3 = inlined_call_operand.vmem [shape: f32[2,1,32], index: 3, kind: input, shape index: {}]
  %s4 = inlined_call_operand.vmem [shape: f32[2,1,32], index: 4, kind: input, shape index: {}]
  %s5 = inlined_call_operand.vmem [shape: bf16[2,32,96], index: 5, kind: input, shape index: {}]
  %s6 = inlined_call_operand.vmem [shape: bf16[2,32,32], index: 6, kind: input, shape index: {}]
  %s7 = inlined_call_operand.vmem [shape: f32[2,1,32], index: 7, kind: input, shape index: {}]
  %s8 = inlined_call_operand.vmem [shape: f32[2,1,32], index: 8, kind: input, shape index: {}]
  %s9 = inlined_call_operand.vmem [shape: f32[2,1,32], index: 9, kind: input, shape index: {}]
  %s10 = inlined_call_operand.vmem [shape: bf16[2,32,64], index: 10, kind: input, shape index: {}]
  %s11 = inlined_call_operand.vmem [shape: f32[2,1,64], index: 11, kind: input, shape index: {}]
  %s12 = inlined_call_operand.vmem [shape: bf16[2,64,32], index: 12, kind: input, shape index: {}]
  %s13 = inlined_call_operand.vmem [shape: f32[2,1,32], index: 13, kind: input, shape index: {}]
  %s14 = inlined_call_operand.vmem [shape: f32[1,32], index: 14, kind: input, shape index: {}]
  %s15 = inlined_call_operand.vmem [shape: f32[1,32], index: 15, kind: input, shape index: {}]
  %s16 = inlined_call_operand.vmem [shape: f32[1,32], index: 16, kind: input, shape index: {}]
  %s17 = inlined_call_operand.vmem [shape: f32[1,32], index: 17, kind: input, shape index: {}]
  %s18 = inlined_call_operand.vmem [shape: bf16[32,10], index: 18, kind: input, shape index: {}]
  %s19 = inlined_call_operand.vmem [shape: f32[1,10], index: 19, kind: input, shape index: {}]
  %s20 = inlined_call_operand.hbm [shape: f32[2,1,10], index: 20, kind: output, shape index: {}]
  %s21 = sld [smem:[#allocation0]]
  $region113: #{_lambda_.1} parent=0
    _
  %s23 = ssub.s32 1, %s21
  %s24 = scalar_select 0, %s23, %s21
  $region1: #{_lambda_.1} parent=0
    #allocation2 [shape = 'u8[1024]{0}', space=vmem, size = 0x400, scoped, tag = 'output window, operand 0']
    #allocation3 [shape = 's32[2]{0}', space=sflag, size = 0x8, scoped, tag = 'scoped memory for _lambda_.1']
    %25 = vsyncpa [#allocation3], 0
    %s26 = scalar_lea.sflag [#allocation3], 1
    %27 = vsyncpa %s26, 0
    loop: start=0, step=1, limit=4
    $region2: #{_lambda_.1} parent=1 // loop_pre_header
      _
    $region3: #{_lambda_.1} parent=1 // loop_header
      %s29 = sphi 0, %s33
      %p30 = scmp.ge.s32.totalorder %s29, 4
      %s39 = sphi 0, %s41
      %s42 = sphi 0, %s39
      %s43 = sphi 0, %s42
      %s59 = sphi 0, %s43
      %s63 = sphi 0, %s63
      %s65 = sphi 0, %s63
      %s66 = sphi 0, %s65
      %s80 = sphi 0, %s66
      %s84 = sphi 0, %s84
      %s86 = sphi 0, %s84
      %s87 = sphi 0, %s86
      %s101 = sphi 0, %s87
      %s105 = sphi 0, %s105
      %s107 = sphi 0, %s105
      %s108 = sphi 0, %s107
      %s122 = sphi 0, %s108
      %s126 = sphi 0, %s126
      %s128 = sphi 0, %s126
      %s129 = sphi 0, %s128
      %s143 = sphi 0, %s129
      %s147 = sphi 0, %s147
      %s149 = sphi 0, %s147
      %s150 = sphi 0, %s149
      %s164 = sphi 0, %s150
      %s168 = sphi 0, %s168
      %s170 = sphi 0, %s168
      %s171 = sphi 0, %s170
      %s185 = sphi 0, %s171
      %s189 = sphi 0, %s189
      %s191 = sphi 0, %s189
      %s192 = sphi 0, %s191
      %s206 = sphi 0, %s192
      %s210 = sphi 0, %s210
      %s212 = sphi 0, %s210
      %s213 = sphi 0, %s212
      %s227 = sphi 0, %s213
      %s231 = sphi 0, %s231
      %s233 = sphi 0, %s231
      %s234 = sphi 0, %s233
      %s248 = sphi 0, %s234
      %s252 = sphi 0, %s252
      %s254 = sphi 0, %s252
      %s255 = sphi 0, %s254
      %s269 = sphi 0, %s255
      %s273 = sphi 0, %s273
      %s275 = sphi 0, %s273
      %s276 = sphi 0, %s275
      %s290 = sphi 0, %s276
      %s294 = sphi 0, %s294
      %s296 = sphi 0, %s294
      %s297 = sphi 0, %s296
      %s311 = sphi 0, %s297
      %s315 = sphi 0, %s315
      %s317 = sphi 0, %s315
      %s318 = sphi 0, %s317
      %s332 = sphi 0, %s318
      %s336 = sphi 0, %s336
      %s338 = sphi 0, %s336
      %s339 = sphi 0, %s338
      %s353 = sphi 0, %s339
      %s357 = sphi 0, %s357
      %s359 = sphi 0, %s357
      %s360 = sphi 0, %s359
      %s374 = sphi 0, %s360
      %s378 = sphi 0, %s378
      %s380 = sphi 0, %s378
      %s381 = sphi 0, %s380
      %s395 = sphi 0, %s381
      %s399 = sphi 0, %s399
      %s401 = sphi 0, %s399
      %s402 = sphi 0, %s401
      %s416 = sphi 0, %s402
      %s420 = sphi 0, %s420
      %s422 = sphi 0, %s420
      %s423 = sphi 0, %s422
      %s437 = sphi 0, %s423
      %s441 = sphi 0, %s441
      %s443 = sphi 0, %s441
      %s444 = sphi 0, %s443
      %s458 = sphi 0, %s444
      %s464 = sphi 0, %s466
      %s467 = sphi 0, %s464
      %s468 = sphi 0, %s467
      %s484 = sphi 0, %s468
    $region4: #{_lambda_.1} parent=1 // loop_header_branch
      %32 = sbr.rel (%p30) target = $region8
    $region5: #{_lambda_.1} parent=1 // loop_body
      %s34 = ssub.s32 %s29, 1
      %s35 = ssub.s32 %s29, 2
      %s36 = sadd.s32 %s29, 1
      %s37 = ssub.s32 %s29, %s36
      %p38 = scmp.eq.s32.totalorder %s37, 0
      %s40 = sadd.s32 %s39, 1
      %s41 = scalar_select %p38, %s39, %s40
      %p44 = pneg %p38
      %p45 = scmp.eq.s32.totalorder %s29, 1
      %p46 = por %p44, %p45
      %p47 = scmp.ne.s32.totalorder %s39, %s42
      %p48 = scmp.eq.s32.totalorder %s29, 0
      %p49 = por %p47, %p48
      %p50 = scmp.ne.s32.totalorder %s39, %s42
      %p51 = scmp.eq.s32.totalorder %s34, 1
      %p52 = por %p50, %p51
      %p53 = scmp.ne.s32.totalorder %s42, %s43
      %p54 = scmp.eq.s32.totalorder %s34, 0
      %p55 = por %p53, %p54
      %p56 = scmp.ne.s32.totalorder %s42, %s43
      %p57 = scmp.eq.s32.totalorder %s35, 1
      %p58 = por %p56, %p57
      %p60 = scmp.ne.s32.totalorder %s43, %s59
      %p61 = scmp.eq.s32.totalorder %s35, 0
      %p62 = por %p60, %p61
      %s64 = sadd.s32 %s63, 1
      %p67 = scmp.eq.s32.totalorder %s29, 1
      %p68 = scmp.ne.s32.totalorder %s63, %s65
      %p69 = scmp.eq.s32.totalorder %s29, 0
      %p70 = por %p68, %p69
      %p71 = scmp.ne.s32.totalorder %s63, %s65
      %p72 = scmp.eq.s32.totalorder %s34, 1
      %p73 = por %p71, %p72
      %p74 = scmp.ne.s32.totalorder %s65, %s66
      %p75 = scmp.eq.s32.totalorder %s34, 0
      %p76 = por %p74, %p75
      %p77 = scmp.ne.s32.totalorder %s65, %s66
      %p78 = scmp.eq.s32.totalorder %s35, 1
      %p79 = por %p77, %p78
      %p81 = scmp.ne.s32.totalorder %s66, %s80
      %p82 = scmp.eq.s32.totalorder %s35, 0
      %p83 = por %p81, %p82
      %s85 = sadd.s32 %s84, 1
      %p88 = scmp.eq.s32.totalorder %s29, 1
      %p89 = scmp.ne.s32.totalorder %s84, %s86
      %p90 = scmp.eq.s32.totalorder %s29, 0
      %p91 = por %p89, %p90
      %p92 = scmp.ne.s32.totalorder %s84, %s86
      %p93 = scmp.eq.s32.totalorder %s34, 1
      %p94 = por %p92, %p93
      %p95 = scmp.ne.s32.totalorder %s86, %s87
      %p96 = scmp.eq.s32.totalorder %s34, 0
      %p97 = por %p95, %p96
      %p98 = scmp.ne.s32.totalorder %s86, %s87
      %p99 = scmp.eq.s32.totalorder %s35, 1
      %p100 = por %p98, %p99
      %p102 = scmp.ne.s32.totalorder %s87, %s101
      %p103 = scmp.eq.s32.totalorder %s35, 0
      %p104 = por %p102, %p103
      %s106 = sadd.s32 %s105, 1
      %p109 = scmp.eq.s32.totalorder %s29, 1
      %p110 = scmp.ne.s32.totalorder %s105, %s107
      %p111 = scmp.eq.s32.totalorder %s29, 0
      %p112 = por %p110, %p111
      %p113 = scmp.ne.s32.totalorder %s105, %s107
      %p114 = scmp.eq.s32.totalorder %s34, 1
      %p115 = por %p113, %p114
      %p116 = scmp.ne.s32.totalorder %s107, %s108
      %p117 = scmp.eq.s32.totalorder %s34, 0
      %p118 = por %p116, %p117
      %p119 = scmp.ne.s32.totalorder %s107, %s108
      %p120 = scmp.eq.s32.totalorder %s35, 1
      %p121 = por %p119, %p120
      %p123 = scmp.ne.s32.totalorder %s108, %s122
      %p124 = scmp.eq.s32.totalorder %s35, 0
      %p125 = por %p123, %p124
      %s127 = sadd.s32 %s126, 1
      %p130 = scmp.eq.s32.totalorder %s29, 1
      %p131 = scmp.ne.s32.totalorder %s126, %s128
      %p132 = scmp.eq.s32.totalorder %s29, 0
      %p133 = por %p131, %p132
      %p134 = scmp.ne.s32.totalorder %s126, %s128
      %p135 = scmp.eq.s32.totalorder %s34, 1
      %p136 = por %p134, %p135
      %p137 = scmp.ne.s32.totalorder %s128, %s129
      %p138 = scmp.eq.s32.totalorder %s34, 0
      %p139 = por %p137, %p138
      %p140 = scmp.ne.s32.totalorder %s128, %s129
      %p141 = scmp.eq.s32.totalorder %s35, 1
      %p142 = por %p140, %p141
      %p144 = scmp.ne.s32.totalorder %s129, %s143
      %p145 = scmp.eq.s32.totalorder %s35, 0
      %p146 = por %p144, %p145
      %s148 = sadd.s32 %s147, 1
      %p151 = scmp.eq.s32.totalorder %s29, 1
      %p152 = scmp.ne.s32.totalorder %s147, %s149
      %p153 = scmp.eq.s32.totalorder %s29, 0
      %p154 = por %p152, %p153
      %p155 = scmp.ne.s32.totalorder %s147, %s149
      %p156 = scmp.eq.s32.totalorder %s34, 1
      %p157 = por %p155, %p156
      %p158 = scmp.ne.s32.totalorder %s149, %s150
      %p159 = scmp.eq.s32.totalorder %s34, 0
      %p160 = por %p158, %p159
      %p161 = scmp.ne.s32.totalorder %s149, %s150
      %p162 = scmp.eq.s32.totalorder %s35, 1
      %p163 = por %p161, %p162
      %p165 = scmp.ne.s32.totalorder %s150, %s164
      %p166 = scmp.eq.s32.totalorder %s35, 0
      %p167 = por %p165, %p166
      %s169 = sadd.s32 %s168, 1
      %p172 = scmp.eq.s32.totalorder %s29, 1
      %p173 = scmp.ne.s32.totalorder %s168, %s170
      %p174 = scmp.eq.s32.totalorder %s29, 0
      %p175 = por %p173, %p174
      %p176 = scmp.ne.s32.totalorder %s168, %s170
      %p177 = scmp.eq.s32.totalorder %s34, 1
      %p178 = por %p176, %p177
      %p179 = scmp.ne.s32.totalorder %s170, %s171
      %p180 = scmp.eq.s32.totalorder %s34, 0
      %p181 = por %p179, %p180
      %p182 = scmp.ne.s32.totalorder %s170, %s171
      %p183 = scmp.eq.s32.totalorder %s35, 1
      %p184 = por %p182, %p183
      %p186 = scmp.ne.s32.totalorder %s171, %s185
      %p187 = scmp.eq.s32.totalorder %s35, 0
      %p188 = por %p186, %p187
      %s190 = sadd.s32 %s189, 1
      %p193 = scmp.eq.s32.totalorder %s29, 1
      %p194 = scmp.ne.s32.totalorder %s189, %s191
      %p195 = scmp.eq.s32.totalorder %s29, 0
      %p196 = por %p194, %p195
      %p197 = scmp.ne.s32.totalorder %s189, %s191
      %p198 = scmp.eq.s32.totalorder %s34, 1
      %p199 = por %p197, %p198
      %p200 = scmp.ne.s32.totalorder %s191, %s192
      %p201 = scmp.eq.s32.totalorder %s34, 0
      %p202 = por %p200, %p201
      %p203 = scmp.ne.s32.totalorder %s191, %s192
      %p204 = scmp.eq.s32.totalorder %s35, 1
      %p205 = por %p203, %p204
      %p207 = scmp.ne.s32.totalorder %s192, %s206
      %p208 = scmp.eq.s32.totalorder %s35, 0
      %p209 = por %p207, %p208
      %s211 = sadd.s32 %s210, 1
      %p214 = scmp.eq.s32.totalorder %s29, 1
      %p215 = scmp.ne.s32.totalorder %s210, %s212
      %p216 = scmp.eq.s32.totalorder %s29, 0
      %p217 = por %p215, %p216
      %p218 = scmp.ne.s32.totalorder %s210, %s212
      %p219 = scmp.eq.s32.totalorder %s34, 1
      %p220 = por %p218, %p219
      %p221 = scmp.ne.s32.totalorder %s212, %s213
      %p222 = scmp.eq.s32.totalorder %s34, 0
      %p223 = por %p221, %p222
      %p224 = scmp.ne.s32.totalorder %s212, %s213
      %p225 = scmp.eq.s32.totalorder %s35, 1
      %p226 = por %p224, %p225
      %p228 = scmp.ne.s32.totalorder %s213, %s227
      %p229 = scmp.eq.s32.totalorder %s35, 0
      %p230 = por %p228, %p229
      %s232 = sadd.s32 %s231, 1
      %p235 = scmp.eq.s32.totalorder %s29, 1
      %p236 = scmp.ne.s32.totalorder %s231, %s233
      %p237 = scmp.eq.s32.totalorder %s29, 0
      %p238 = por %p236, %p237
      %p239 = scmp.ne.s32.totalorder %s231, %s233
      %p240 = scmp.eq.s32.totalorder %s34, 1
      %p241 = por %p239, %p240
      %p242 = scmp.ne.s32.totalorder %s233, %s234
      %p243 = scmp.eq.s32.totalorder %s34, 0
      %p244 = por %p242, %p243
      %p245 = scmp.ne.s32.totalorder %s233, %s234
      %p246 = scmp.eq.s32.totalorder %s35, 1
      %p247 = por %p245, %p246
      %p249 = scmp.ne.s32.totalorder %s234, %s248
      %p250 = scmp.eq.s32.totalorder %s35, 0
      %p251 = por %p249, %p250
      %s253 = sadd.s32 %s252, 1
      %p256 = scmp.eq.s32.totalorder %s29, 1
      %p257 = scmp.ne.s32.totalorder %s252, %s254
      %p258 = scmp.eq.s32.totalorder %s29, 0
      %p259 = por %p257, %p258
      %p260 = scmp.ne.s32.totalorder %s252, %s254
      %p261 = scmp.eq.s32.totalorder %s34, 1
      %p262 = por %p260, %p261
      %p263 = scmp.ne.s32.totalorder %s254, %s255
      %p264 = scmp.eq.s32.totalorder %s34, 0
      %p265 = por %p263, %p264
      %p266 = scmp.ne.s32.totalorder %s254, %s255
      %p267 = scmp.eq.s32.totalorder %s35, 1
      %p268 = por %p266, %p267
      %p270 = scmp.ne.s32.totalorder %s255, %s269
      %p271 = scmp.eq.s32.totalorder %s35, 0
      %p272 = por %p270, %p271
      %s274 = sadd.s32 %s273, 1
      %p277 = scmp.eq.s32.totalorder %s29, 1
      %p278 = scmp.ne.s32.totalorder %s273, %s275
      %p279 = scmp.eq.s32.totalorder %s29, 0
      %p280 = por %p278, %p279
      %p281 = scmp.ne.s32.totalorder %s273, %s275
      %p282 = scmp.eq.s32.totalorder %s34, 1
      %p283 = por %p281, %p282
      %p284 = scmp.ne.s32.totalorder %s275, %s276
      %p285 = scmp.eq.s32.totalorder %s34, 0
      %p286 = por %p284, %p285
      %p287 = scmp.ne.s32.totalorder %s275, %s276
      %p288 = scmp.eq.s32.totalorder %s35, 1
      %p289 = por %p287, %p288
      %p291 = scmp.ne.s32.totalorder %s276, %s290
      %p292 = scmp.eq.s32.totalorder %s35, 0
      %p293 = por %p291, %p292
      %s295 = sadd.s32 %s294, 1
      %p298 = scmp.eq.s32.totalorder %s29, 1
      %p299 = scmp.ne.s32.totalorder %s294, %s296
      %p300 = scmp.eq.s32.totalorder %s29, 0
      %p301 = por %p299, %p300
      %p302 = scmp.ne.s32.totalorder %s294, %s296
      %p303 = scmp.eq.s32.totalorder %s34, 1
      %p304 = por %p302, %p303
      %p305 = scmp.ne.s32.totalorder %s296, %s297
      %p306 = scmp.eq.s32.totalorder %s34, 0
      %p307 = por %p305, %p306
      %p308 = scmp.ne.s32.totalorder %s296, %s297
      %p309 = scmp.eq.s32.totalorder %s35, 1
      %p310 = por %p308, %p309
      %p312 = scmp.ne.s32.totalorder %s297, %s311
      %p313 = scmp.eq.s32.totalorder %s35, 0
      %p314 = por %p312, %p313
      %s316 = sadd.s32 %s315, 1
      %p319 = scmp.eq.s32.totalorder %s29, 1
      %p320 = scmp.ne.s32.totalorder %s315, %s317
      %p321 = scmp.eq.s32.totalorder %s29, 0
      %p322 = por %p320, %p321
      %p323 = scmp.ne.s32.totalorder %s315, %s317
      %p324 = scmp.eq.s32.totalorder %s34, 1
      %p325 = por %p323, %p324
      %p326 = scmp.ne.s32.totalorder %s317, %s318
      %p327 = scmp.eq.s32.totalorder %s34, 0
      %p328 = por %p326, %p327
      %p329 = scmp.ne.s32.totalorder %s317, %s318
      %p330 = scmp.eq.s32.totalorder %s35, 1
      %p331 = por %p329, %p330
      %p333 = scmp.ne.s32.totalorder %s318, %s332
      %p334 = scmp.eq.s32.totalorder %s35, 0
      %p335 = por %p333, %p334
      %s337 = sadd.s32 %s336, 1
      %p340 = scmp.eq.s32.totalorder %s29, 1
      %p341 = scmp.ne.s32.totalorder %s336, %s338
      %p342 = scmp.eq.s32.totalorder %s29, 0
      %p343 = por %p341, %p342
      %p344 = scmp.ne.s32.totalorder %s336, %s338
      %p345 = scmp.eq.s32.totalorder %s34, 1
      %p346 = por %p344, %p345
      %p347 = scmp.ne.s32.totalorder %s338, %s339
      %p348 = scmp.eq.s32.totalorder %s34, 0
      %p349 = por %p347, %p348
      %p350 = scmp.ne.s32.totalorder %s338, %s339
      %p351 = scmp.eq.s32.totalorder %s35, 1
      %p352 = por %p350, %p351
      %p354 = scmp.ne.s32.totalorder %s339, %s353
      %p355 = scmp.eq.s32.totalorder %s35, 0
      %p356 = por %p354, %p355
      %s358 = sadd.s32 %s357, 1
      %p361 = scmp.eq.s32.totalorder %s29, 1
      %p362 = scmp.ne.s32.totalorder %s357, %s359
      %p363 = scmp.eq.s32.totalorder %s29, 0
      %p364 = por %p362, %p363
      %p365 = scmp.ne.s32.totalorder %s357, %s359
      %p366 = scmp.eq.s32.totalorder %s34, 1
      %p367 = por %p365, %p366
      %p368 = scmp.ne.s32.totalorder %s359, %s360
      %p369 = scmp.eq.s32.totalorder %s34, 0
      %p370 = por %p368, %p369
      %p371 = scmp.ne.s32.totalorder %s359, %s360
      %p372 = scmp.eq.s32.totalorder %s35, 1
      %p373 = por %p371, %p372
      %p375 = scmp.ne.s32.totalorder %s360, %s374
      %p376 = scmp.eq.s32.totalorder %s35, 0
      %p377 = por %p375, %p376
      %s379 = sadd.s32 %s378, 1
      %p382 = scmp.eq.s32.totalorder %s29, 1
      %p383 = scmp.ne.s32.totalorder %s378, %s380
      %p384 = scmp.eq.s32.totalorder %s29, 0
      %p385 = por %p383, %p384
      %p386 = scmp.ne.s32.totalorder %s378, %s380
      %p387 = scmp.eq.s32.totalorder %s34, 1
      %p388 = por %p386, %p387
      %p389 = scmp.ne.s32.totalorder %s380, %s381
      %p390 = scmp.eq.s32.totalorder %s34, 0
      %p391 = por %p389, %p390
      %p392 = scmp.ne.s32.totalorder %s380, %s381
      %p393 = scmp.eq.s32.totalorder %s35, 1
      %p394 = por %p392, %p393
      %p396 = scmp.ne.s32.totalorder %s381, %s395
      %p397 = scmp.eq.s32.totalorder %s35, 0
      %p398 = por %p396, %p397
      %s400 = sadd.s32 %s399, 1
      %p403 = scmp.eq.s32.totalorder %s29, 1
      %p404 = scmp.ne.s32.totalorder %s399, %s401
      %p405 = scmp.eq.s32.totalorder %s29, 0
      %p406 = por %p404, %p405
      %p407 = scmp.ne.s32.totalorder %s399, %s401
      %p408 = scmp.eq.s32.totalorder %s34, 1
      %p409 = por %p407, %p408
      %p410 = scmp.ne.s32.totalorder %s401, %s402
      %p411 = scmp.eq.s32.totalorder %s34, 0
      %p412 = por %p410, %p411
      %p413 = scmp.ne.s32.totalorder %s401, %s402
      %p414 = scmp.eq.s32.totalorder %s35, 1
      %p415 = por %p413, %p414
      %p417 = scmp.ne.s32.totalorder %s402, %s416
      %p418 = scmp.eq.s32.totalorder %s35, 0
      %p419 = por %p417, %p418
      %s421 = sadd.s32 %s420, 1
      %p424 = scmp.eq.s32.totalorder %s29, 1
      %p425 = scmp.ne.s32.totalorder %s420, %s422
      %p426 = scmp.eq.s32.totalorder %s29, 0
      %p427 = por %p425, %p426
      %p428 = scmp.ne.s32.totalorder %s420, %s422
      %p429 = scmp.eq.s32.totalorder %s34, 1
      %p430 = por %p428, %p429
      %p431 = scmp.ne.s32.totalorder %s422, %s423
      %p432 = scmp.eq.s32.totalorder %s34, 0
      %p433 = por %p431, %p432
      %p434 = scmp.ne.s32.totalorder %s422, %s423
      %p435 = scmp.eq.s32.totalorder %s35, 1
      %p436 = por %p434, %p435
      %p438 = scmp.ne.s32.totalorder %s423, %s437
      %p439 = scmp.eq.s32.totalorder %s35, 0
      %p440 = por %p438, %p439
      %s442 = sadd.s32 %s441, 1
      %p445 = scmp.eq.s32.totalorder %s29, 1
      %p446 = scmp.ne.s32.totalorder %s441, %s443
      %p447 = scmp.eq.s32.totalorder %s29, 0
      %p448 = por %p446, %p447
      %p449 = scmp.ne.s32.totalorder %s441, %s443
      %p450 = scmp.eq.s32.totalorder %s34, 1
      %p451 = por %p449, %p450
      %p452 = scmp.ne.s32.totalorder %s443, %s444
      %p453 = scmp.eq.s32.totalorder %s34, 0
      %p454 = por %p452, %p453
      %p455 = scmp.ne.s32.totalorder %s443, %s444
      %p456 = scmp.eq.s32.totalorder %s35, 1
      %p457 = por %p455, %p456
      %p459 = scmp.ne.s32.totalorder %s444, %s458
      %p460 = scmp.eq.s32.totalorder %s35, 0
      %p461 = por %p459, %p460
      %s462 = ssub.s32 %s29, %s36
      %p463 = scmp.eq.s32.totalorder %s462, 0
      %s465 = sadd.s32 %s464, 1
      %s466 = scalar_select %p463, %s464, %s465
      %p469 = pneg %p463
      %p470 = scmp.eq.s32.totalorder %s29, 1
      %p471 = por %p469, %p470
      %p472 = scmp.ne.s32.totalorder %s464, %s467
      %p473 = scmp.eq.s32.totalorder %s29, 0
      %p474 = por %p472, %p473
      %p475 = scmp.ne.s32.totalorder %s464, %s467
      %p476 = scmp.eq.s32.totalorder %s34, 1
      %p477 = por %p475, %p476
      %p478 = scmp.ne.s32.totalorder %s467, %s468
      %p479 = scmp.eq.s32.totalorder %s34, 0
      %p480 = por %p478, %p479
      %p481 = scmp.ne.s32.totalorder %s467, %s468
      %p482 = scmp.eq.s32.totalorder %s35, 1
      %p483 = por %p481, %p482
      %p485 = scmp.ne.s32.totalorder %s468, %s484
      %p486 = scmp.eq.s32.totalorder %s35, 0
      %p487 = por %p485, %p486
      %p488 = scmp.le.s32.totalorder 1, %s29
      %p489 = scmp.lt.s32.totalorder %s29, 3
      %p490 = pnand %p488, %p489
      %p491 = pneg %p490
      // Predicated region
      $region9: #{_lambda_.1} parent=5 // pred_check
        _
      $region10: #{_lambda_.1} parent=5 // pred_check_branch
        %493 = sbr.rel (%p490) target = $region12
      $region11: #{_lambda_.1} parent=5 // pred_region
        %s494 = ssub.s32 %s29, 1
        // Predicated region
        $region13: #{_lambda_.1} parent=11 // pred_check
          %p495 = pneg %p76
        $region14: #{_lambda_.1} parent=11 // pred_check_branch
          %497 = sbr.rel (%p495) target = $region16
        $region15: #{_lambda_.1} parent=11 // pred_region
          _
        $region16: #{_lambda_.1} parent=11 // pred_fallthru
          _
        // Predicated region
        $region17: #{_lambda_.1} parent=11 // pred_check
          %p498 = pneg %p97
        $region18: #{_lambda_.1} parent=11 // pred_check_branch
          %500 = sbr.rel (%p498) target = $region20
        $region19: #{_lambda_.1} parent=11 // pred_region
          _
        $region20: #{_lambda_.1} parent=11 // pred_fallthru
          _
        // Predicated region
        $region21: #{_lambda_.1} parent=11 // pred_check
          %p501 = pneg %p118
        $region22: #{_lambda_.1} parent=11 // pred_check_branch
          %503 = sbr.rel (%p501) target = $region24
        $region23: #{_lambda_.1} parent=11 // pred_region
          _
        $region24: #{_lambda_.1} parent=11 // pred_fallthru
          _
        // Predicated region
        $region25: #{_lambda_.1} parent=11 // pred_check
          %p504 = pneg %p139
        $region26: #{_lambda_.1} parent=11 // pred_check_branch
          %506 = sbr.rel (%p504) target = $region28
        $region27: #{_lambda_.1} parent=11 // pred_region
          _
        $region28: #{_lambda_.1} parent=11 // pred_fallthru
          _
        // Predicated region
        $region29: #{_lambda_.1} parent=11 // pred_check
          %p507 = pneg %p160
        $region30: #{_lambda_.1} parent=11 // pred_check_branch
          %509 = sbr.rel (%p507) target = $region32
        $region31: #{_lambda_.1} parent=11 // pred_region
          _
        $region32: #{_lambda_.1} parent=11 // pred_fallthru
          _
        // Predicated region
        $region33: #{_lambda_.1} parent=11 // pred_check
          %p510 = pneg %p181
        $region34: #{_lambda_.1} parent=11 // pred_check_branch
          %512 = sbr.rel (%p510) target = $region36
        $region35: #{_lambda_.1} parent=11 // pred_region
          _
        $region36: #{_lambda_.1} parent=11 // pred_fallthru
          _
        // Predicated region
        $region37: #{_lambda_.1} parent=11 // pred_check
          %p513 = pneg %p202
        $region38: #{_lambda_.1} parent=11 // pred_check_branch
          %515 = sbr.rel (%p513) target = $region40
        $region39: #{_lambda_.1} parent=11 // pred_region
          _
        $region40: #{_lambda_.1} parent=11 // pred_fallthru
          _
        // Predicated region
        $region41: #{_lambda_.1} parent=11 // pred_check
          %p516 = pneg %p223
        $region42: #{_lambda_.1} parent=11 // pred_check_branch
          %518 = sbr.rel (%p516) target = $region44
        $region43: #{_lambda_.1} parent=11 // pred_region
          _
        $region44: #{_lambda_.1} parent=11 // pred_fallthru
          _
        // Predicated region
        $region45: #{_lambda_.1} parent=11 // pred_check
          %p519 = pneg %p244
        $region46: #{_lambda_.1} parent=11 // pred_check_branch
          %521 = sbr.rel (%p519) target = $region48
        $region47: #{_lambda_.1} parent=11 // pred_region
          _
        $region48: #{_lambda_.1} parent=11 // pred_fallthru
          _
        // Predicated region
        $region49: #{_lambda_.1} parent=11 // pred_check
          %p522 = pneg %p265
        $region50: #{_lambda_.1} parent=11 // pred_check_branch
          %524 = sbr.rel (%p522) target = $region52
        $region51: #{_lambda_.1} parent=11 // pred_region
          _
        $region52: #{_lambda_.1} parent=11 // pred_fallthru
          _
        // Predicated region
        $region53: #{_lambda_.1} parent=11 // pred_check
          %p525 = pneg %p286
        $region54: #{_lambda_.1} parent=11 // pred_check_branch
          %527 = sbr.rel (%p525) target = $region56
        $region55: #{_lambda_.1} parent=11 // pred_region
          _
        $region56: #{_lambda_.1} parent=11 // pred_fallthru
          _
        // Predicated region
        $region57: #{_lambda_.1} parent=11 // pred_check
          %p528 = pneg %p307
        $region58: #{_lambda_.1} parent=11 // pred_check_branch
          %530 = sbr.rel (%p528) target = $region60
        $region59: #{_lambda_.1} parent=11 // pred_region
          _
        $region60: #{_lambda_.1} parent=11 // pred_fallthru
          _
        // Predicated region
        $region61: #{_lambda_.1} parent=11 // pred_check
          %p531 = pneg %p328
        $region62: #{_lambda_.1} parent=11 // pred_check_branch
          %533 = sbr.rel (%p531) target = $region64
        $region63: #{_lambda_.1} parent=11 // pred_region
          _
        $region64: #{_lambda_.1} parent=11 // pred_fallthru
          _
        // Predicated region
        $region65: #{_lambda_.1} parent=11 // pred_check
          %p534 = pneg %p349
        $region66: #{_lambda_.1} parent=11 // pred_check_branch
          %536 = sbr.rel (%p534) target = $region68
        $region67: #{_lambda_.1} parent=11 // pred_region
          _
        $region68: #{_lambda_.1} parent=11 // pred_fallthru
          _
        // Predicated region
        $region69: #{_lambda_.1} parent=11 // pred_check
          %p537 = pneg %p370
        $region70: #{_lambda_.1} parent=11 // pred_check_branch
          %539 = sbr.rel (%p537) target = $region72
        $region71: #{_lambda_.1} parent=11 // pred_region
          _
        $region72: #{_lambda_.1} parent=11 // pred_fallthru
          _
        // Predicated region
        $region73: #{_lambda_.1} parent=11 // pred_check
          %p540 = pneg %p391
        $region74: #{_lambda_.1} parent=11 // pred_check_branch
          %542 = sbr.rel (%p540) target = $region76
        $region75: #{_lambda_.1} parent=11 // pred_region
          _
        $region76: #{_lambda_.1} parent=11 // pred_fallthru
          _
        // Predicated region
        $region77: #{_lambda_.1} parent=11 // pred_check
          %p543 = pneg %p412
        $region78: #{_lambda_.1} parent=11 // pred_check_branch
          %545 = sbr.rel (%p543) target = $region80
        $region79: #{_lambda_.1} parent=11 // pred_region
          _
        $region80: #{_lambda_.1} parent=11 // pred_fallthru
          _
        // Predicated region
        $region81: #{_lambda_.1} parent=11 // pred_check
          %p546 = pneg %p433
        $region82: #{_lambda_.1} parent=11 // pred_check_branch
          %548 = sbr.rel (%p546) target = $region84
        $region83: #{_lambda_.1} parent=11 // pred_region
          _
        $region84: #{_lambda_.1} parent=11 // pred_fallthru
          _
        // Predicated region
        $region85: #{_lambda_.1} parent=11 // pred_check
          %p549 = pneg %p454
        $region86: #{_lambda_.1} parent=11 // pred_check_branch
          %551 = sbr.rel (%p549) target = $region88
        $region87: #{_lambda_.1} parent=11 // pred_region
          _
        $region88: #{_lambda_.1} parent=11 // pred_fallthru
          _
      $region12: #{_lambda_.1} parent=5 // pred_fallthru
        _
      %p552 = scmp.lt.s32.totalorder %s29, 2
      // Predicated region
      $region89: #{_lambda_.1} parent=5 // pred_check
        %p553 = pneg %p552
      $region90: #{_lambda_.1} parent=5 // pred_check_branch
        %555 = sbr.rel (%p553) target = $region92
      $region91: #{_lambda_.1} parent=5 // pred_region
        // Predicated region
        $region93: #{_lambda_.1} parent=91 // pred_check
          %p556 = pneg %p49
        $region94: #{_lambda_.1} parent=91 // pred_check_branch
          %558 = sbr.rel (%p556) target = $region96
        $region95: #{_lambda_.1} parent=91 // pred_region
          %p559 = scmp.lt.s32.totalorder %s29, 1
          %s560 = scalar_select %p559, %s29, 1
          %s561 = smul.addr %s560, 12
          %s562 = smul.addr %s561, 4
          %s563 = scalar_lea.vmem %s0, %s562
        $region96: #{_lambda_.1} parent=91 // pred_fallthru
          _
      $region92: #{_lambda_.1} parent=5 // pred_fallthru
        _
      %p564 = scmp.le.s32.totalorder 1, %s29
      %p565 = scmp.lt.s32.totalorder %s29, 3
      %p566 = pnand %p564, %p565
      %p567 = pneg %p566
      // Predicated region
      $region97: #{_lambda_.1} parent=5 // pred_check
        _
      $region98: #{_lambda_.1} parent=5 // pred_check_branch
        %569 = sbr.rel (%p566) target = $region100
      $region99: #{_lambda_.1} parent=5 // pred_region
        %s570 = ssub.s32 %s29, 1
        %p571 = scmp.lt.s32.totalorder %s34, 1
        %s572 = scalar_select %p571, %s34, 1
        %s573 = smul.addr %s572, 12
        %s574 = smul.addr %s573, 4
        %s575 = scalar_lea.vmem %s0, %s574
        %p576 = pneg %p55
        %p577 = pneg %p52
        %p578 = pneg %p76
        %p579 = pneg %p73
        %p580 = pneg %p97
        %p581 = pneg %p94
        %p582 = pneg %p118
        %p583 = pneg %p115
        %p584 = pneg %p139
        %p585 = pneg %p136
        %p586 = pneg %p160
        %p587 = pneg %p157
        %p588 = pneg %p181
        %p589 = pneg %p178
        %p590 = pneg %p202
        %p591 = pneg %p199
        %p592 = pneg %p223
        %p593 = pneg %p220
        %p594 = pneg %p244
        %p595 = pneg %p241
        %p596 = pneg %p265
        %p597 = pneg %p262
        %p598 = pneg %p286
        %p599 = pneg %p283
        %p600 = pneg %p307
        %p601 = pneg %p304
        %p602 = pneg %p328
        %p603 = pneg %p325
        %p604 = pneg %p349
        %p605 = pneg %p346
        %p606 = pneg %p370
        %p607 = pneg %p367
        %p608 = pneg %p391
        %p609 = pneg %p388
        %p610 = pneg %p412
        %p611 = pneg %p409
        %p612 = pneg %p433
        %p613 = pneg %p430
        %p614 = pneg %p454
        %p615 = pneg %p451
        %p616 = pneg %p480
        %p617 = pneg %p477
        %s618 = sand.u32 %s467, 1
        %s619 = scalar_lea.sflag [#allocation3], %s618
        %s620 = sand.u32 %s467, 1
        %s621 = scalar_lea.vmem [#allocation2], %s620
        %p622 = scmp.lt.s32.totalorder %s34, 1
        %s623 = scalar_select %p622, %s34, 1
        %s624 = smul.addr %s623, 12
        %s625 = smul.addr %s624, 4
        %s626 = scalar_lea.vmem %s0, %s625
        %v628 = vld [vmem:[%s626] sm:$0xff]
        %v629 = vld [vmem:[%s626 + $0x8] sm:$0xff]
        %v630 = vld [vmem:[%s626 + $0x10] sm:$0xff]
        %v631 = vld [vmem:[%s626 + $0x18] sm:$0x11]
        %v632 = vld [vmem:[%s626 + $0x20] sm:$0x11]
        %v633 = vld [vmem:[%s626 + $0x28] sm:$0x11]
        %v634 = vld [vmem:[%s1] sm:$0xf]
        %v635 = vld [vmem:[%s1 + $0x4] sm:$0xf]
        %v636 = vld [vmem:[%s1 + $0x8] sm:$0xf]
        %v637 = vld [vmem:[%s1 + $0xc] sm:$0xf]
        %v638 = vld [vmem:[%s1 + $0x10] sm:$0xf]
        %v639 = vld [vmem:[%s1 + $0x14] sm:$0xf]
        %v640 = vld [vmem:[%s1 + $0x18] sm:$0xf]
        %v641 = vld [vmem:[%s1 + $0x1c] sm:$0xf]
        %v642 = vld [vmem:[%s1 + $0x20] sm:$0xf]
        %v643 = vld [vmem:[%s1 + $0x24] sm:$0xf]
        %v644 = vld [vmem:[%s1 + $0x28] sm:$0xf]
        %v645 = vld [vmem:[%s1 + $0x2c] sm:$0xf]
        %v646 = vld [vmem:[%s1 + $0x30] sm:$0xf]
        %v647 = vld [vmem:[%s1 + $0x34] sm:$0xf]
        %v648 = vld [vmem:[%s1 + $0x38] sm:$0xf]
        %v649 = vld [vmem:[%s1 + $0x3c] sm:$0xf]
        %v650 = vld [vmem:[%s1 + $0x40] sm:$0xf]
        %v651 = vld [vmem:[%s1 + $0x44] sm:$0xf]
        %v652 = vld [vmem:[%s1 + $0x48] sm:$0xf]
        %v653 = vld [vmem:[%s1 + $0x4c] sm:$0xf]
        %v654 = vld [vmem:[%s1 + $0x50] sm:$0xf]
        %v655 = vld [vmem:[%s1 + $0x54] sm:$0xf]
        %v656 = vld [vmem:[%s1 + $0x58] sm:$0xf]
        %v657 = vld [vmem:[%s1 + $0x5c] sm:$0xf]
        %v658 = vld [vmem:[%s1 + $0x60] sm:$0xf]
        %v659 = vld [vmem:[%s1 + $0x64] sm:$0xf]
        %v660 = vld [vmem:[%s1 + $0x68] sm:$0xf]
        %v661 = vld [vmem:[%s1 + $0x6c] sm:$0xf]
        %v662 = vld [vmem:[%s1 + $0x70] sm:$0xf]
        %v663 = vld [vmem:[%s1 + $0x74] sm:$0xf]
        %v664 = vld [vmem:[%s1 + $0x78] sm:$0xf]
        %v665 = vld [vmem:[%s1 + $0x7c] sm:$0xf]
        %v666 = vld [vmem:[%s1 + $0x80] sm:$0xf]
        %v667 = vld [vmem:[%s1 + $0x84] sm:$0xf]
        %v668 = vld [vmem:[%s1 + $0x88] sm:$0xf]
        %v669 = vld [vmem:[%s1 + $0x8c] sm:$0xf]
        %v670 = vld [vmem:[%s1 + $0x90] sm:$0xf]
        %v671 = vld [vmem:[%s1 + $0x94] sm:$0xf]
        %v672 = vld [vmem:[%s1 + $0x98] sm:$0xf]
        %v673 = vld [vmem:[%s1 + $0x9c] sm:$0xf]
        %v674 = vld [vmem:[%s1 + $0xa0] sm:$0xf]
        %v675 = vld [vmem:[%s1 + $0xa4] sm:$0xf]
        %v676 = vld [vmem:[%s1 + $0xa8] sm:$0xf]
        %v677 = vld [vmem:[%s1 + $0xac] sm:$0xf]
        %v678 = vld [vmem:[%s1 + $0xb0] sm:$0xf]
        %v679 = vld [vmem:[%s1 + $0xb4] sm:$0xf]
        %v680 = vld [vmem:[%s1 + $0xb8] sm:$0xf]
        %v681 = vld [vmem:[%s1 + $0xbc] sm:$0xf]
        %v682 = vld [vmem:[%s1 + $0xc0] sm:$0xf]
        %v683 = vld [vmem:[%s1 + $0xc4] sm:$0xf]
        %v684 = vld [vmem:[%s1 + $0xc8] sm:$0xf]
        %v685 = vld [vmem:[%s1 + $0xcc] sm:$0xf]
        %v686 = vld [vmem:[%s1 + $0xd0] sm:$0xf]
        %v687 = vld [vmem:[%s1 + $0xd4] sm:$0xf]
        %v688 = vld [vmem:[%s1 + $0xd8] sm:$0xf]
        %v689 = vld [vmem:[%s1 + $0xdc] sm:$0xf]
        %v690 = vld [vmem:[%s1 + $0xe0] sm:$0xf]
        %v691 = vld [vmem:[%s1 + $0xe4] sm:$0xf]
        %v692 = vld [vmem:[%s1 + $0xe8] sm:$0xf]
        %v693 = vld [vmem:[%s1 + $0xec] sm:$0xf]
        %v694 = vld [vmem:[%s1 + $0xf0] sm:$0xf]
        %v695 = vld [vmem:[%s1 + $0xf4] sm:$0xf]
        %v696 = vld [vmem:[%s1 + $0xf8] sm:$0xf]
        %v697 = vld [vmem:[%s1 + $0xfc] sm:$0xf]
        %v698 = vld [vmem:[%s1 + $0x100] sm:$0xf]
        %v699 = vld [vmem:[%s1 + $0x104] sm:$0xf]
        %v700 = vld [vmem:[%s1 + $0x108] sm:$0xf]
        %v701 = vld [vmem:[%s1 + $0x10c] sm:$0xf]
        %v702 = vld [vmem:[%s1 + $0x110] sm:$0xf]
        %v703 = vld [vmem:[%s1 + $0x114] sm:$0xf]
        %v704 = vld [vmem:[%s1 + $0x118] sm:$0xf]
        %v705 = vld [vmem:[%s1 + $0x11c] sm:$0xf]
        %v706 = vld [vmem:[%s1 + $0x120] sm:$0xf]
        %v707 = vld [vmem:[%s1 + $0x124] sm:$0xf]
        %v708 = vld [vmem:[%s1 + $0x128] sm:$0xf]
        %v709 = vld [vmem:[%s1 + $0x12c] sm:$0xf]
        %v710 = vld [vmem:[%s1 + $0x130] sm:$0xf]
        %v711 = vld [vmem:[%s1 + $0x134] sm:$0xf]
        %v712 = vld [vmem:[%s1 + $0x138] sm:$0xf]
        %v713 = vld [vmem:[%s1 + $0x13c] sm:$0xf]
        %v714 = vld [vmem:[%s1 + $0x140] sm:$0xf]
        %v715 = vld [vmem:[%s1 + $0x144] sm:$0xf]
        %v716 = vld [vmem:[%s1 + $0x148] sm:$0xf]
        %v717 = vld [vmem:[%s1 + $0x14c] sm:$0xf]
        %v718 = vld [vmem:[%s1 + $0x150] sm:$0xf]
        %v719 = vld [vmem:[%s1 + $0x154] sm:$0xf]
        %v720 = vld [vmem:[%s1 + $0x158] sm:$0xf]
        %v721 = vld [vmem:[%s1 + $0x15c] sm:$0xf]
        %v722 = vld [vmem:[%s1 + $0x160] sm:$0xf]
        %v723 = vld [vmem:[%s1 + $0x164] sm:$0xf]
        %v724 = vld [vmem:[%s1 + $0x168] sm:$0xf]
        %v725 = vld [vmem:[%s1 + $0x16c] sm:$0xf]
        %v726 = vld [vmem:[%s1 + $0x170] sm:$0xf]
        %v727 = vld [vmem:[%s1 + $0x174] sm:$0xf]
        %v728 = vld [vmem:[%s1 + $0x178] sm:$0xf]
        %v729 = vld [vmem:[%s1 + $0x17c] sm:$0xf]
        %v730 = vld [vmem:[%s2] sm:$0xff]
        %v731 = vld [vmem:[%s2 + $0x8] sm:$0x1]
        %v738 = vunpack.c.l.b16 %v628
        %v739 = vunpack.c.h.b16 %v628
        %v740 = vunpack.c.l.b16 %v629
        %v741 = vunpack.c.h.b16 %v629
        %v742 = vunpack.c.l.b16 %v630
        %v743 = vunpack.c.h.b16 %v630
        %v744 = vunpack.c.l.b16 %v631
        %v745 = vunpack.c.h.b16 %v631
        %v746 = vunpack.c.l.b16 %v632
        %v747 = vunpack.c.h.b16 %v632
        %v748 = vunpack.c.l.b16 %v633
        %v749 = vunpack.c.h.b16 %v633
        %v750 = vpack.c.b16 %v744, %v738
        %v751 = vpack.c.b16 %v745, %v739
        %v752 = vpack.c.b16 %v746, %v740
        %v753 = vpack.c.b16 %v747, %v741
        %v754 = vpack.c.b16 %v748, %v742
        %v755 = vpack.c.b16 %v749, %v743
        %v858 = vunpack.c.l.b16 %v634
        %v859 = vunpack.c.l.b16 %v635
        %v860 = vunpack.c.l.b16 %v636
        %v861 = vunpack.c.l.b16 %v637
        %v862 = vunpack.c.l.b16 %v638
        %v863 = vunpack.c.l.b16 %v639
        %v864 = vunpack.c.l.b16 %v640
        %v865 = vunpack.c.l.b16 %v641
        %v866 = vunpack.c.l.b16 %v642
        %v867 = vunpack.c.l.b16 %v643
        %v868 = vunpack.c.l.b16 %v644
        %v869 = vunpack.c.l.b16 %v645
        %v870 = vunpack.c.l.b16 %v646
        %v871 = vunpack.c.l.b16 %v647
        %v872 = vunpack.c.l.b16 %v648
        %v873 = vunpack.c.l.b16 %v649
        %v874 = vunpack.c.l.b16 %v650
        %v875 = vunpack.c.l.b16 %v651
        %v876 = vunpack.c.l.b16 %v652
        %v877 = vunpack.c.l.b16 %v653
        %v878 = vunpack.c.l.b16 %v654
        %v879 = vunpack.c.l.b16 %v655
        %v880 = vunpack.c.l.b16 %v656
        %v881 = vunpack.c.l.b16 %v657
        %v882 = vunpack.c.l.b16 %v658
        %v883 = vunpack.c.l.b16 %v659
        %v884 = vunpack.c.l.b16 %v660
        %v885 = vunpack.c.l.b16 %v661
        %v886 = vunpack.c.l.b16 %v662
        %v887 = vunpack.c.l.b16 %v663
        %v888 = vunpack.c.l.b16 %v664
        %v889 = vunpack.c.l.b16 %v665
        %v890 = vunpack.c.l.b16 %v666
        %v891 = vunpack.c.l.b16 %v667
        %v892 = vunpack.c.l.b16 %v668
        %v893 = vunpack.c.l.b16 %v669
        %v894 = vunpack.c.l.b16 %v670
        %v895 = vunpack.c.l.b16 %v671
        %v896 = vunpack.c.l.b16 %v672
        %v897 = vunpack.c.l.b16 %v673
        %v898 = vunpack.c.l.b16 %v674
        %v899 = vunpack.c.l.b16 %v675
        %v900 = vunpack.c.l.b16 %v676
        %v901 = vunpack.c.l.b16 %v677
        %v902 = vunpack.c.l.b16 %v678
        %v903 = vunpack.c.l.b16 %v679
        %v904 = vunpack.c.l.b16 %v680
        %v905 = vunpack.c.l.b16 %v681
        %v906 = vunpack.c.l.b16 %v682
        %v907 = vunpack.c.l.b16 %v683
        %v908 = vunpack.c.l.b16 %v684
        %v909 = vunpack.c.l.b16 %v685
        %v910 = vunpack.c.l.b16 %v686
        %v911 = vunpack.c.l.b16 %v687
        %v912 = vunpack.c.l.b16 %v688
        %v913 = vunpack.c.l.b16 %v689
        %v914 = vunpack.c.l.b16 %v690
        %v915 = vunpack.c.l.b16 %v691
        %v916 = vunpack.c.l.b16 %v692
        %v917 = vunpack.c.l.b16 %v693
        %v918 = vunpack.c.l.b16 %v694
        %v919 = vunpack.c.l.b16 %v695
        %v920 = vunpack.c.l.b16 %v696
        %v921 = vunpack.c.l.b16 %v697
        %v922 = vunpack.c.l.b16 %v698
        %v923 = vunpack.c.l.b16 %v699
        %v924 = vunpack.c.l.b16 %v700
        %v925 = vunpack.c.l.b16 %v701
        %v926 = vunpack.c.l.b16 %v702
        %v927 = vunpack.c.l.b16 %v703
        %v928 = vunpack.c.l.b16 %v704
        %v929 = vunpack.c.l.b16 %v705
        %v930 = vunpack.c.l.b16 %v706
        %v931 = vunpack.c.l.b16 %v707
        %v932 = vunpack.c.l.b16 %v708
        %v933 = vunpack.c.l.b16 %v709
        %v934 = vunpack.c.l.b16 %v710
        %v935 = vunpack.c.l.b16 %v711
        %v936 = vunpack.c.l.b16 %v712
        %v937 = vunpack.c.l.b16 %v713
        %v938 = vunpack.c.l.b16 %v714
        %v939 = vunpack.c.l.b16 %v715
        %v940 = vunpack.c.l.b16 %v716
        %v941 = vunpack.c.l.b16 %v717
        %v942 = vunpack.c.l.b16 %v718
        %v943 = vunpack.c.l.b16 %v719
        %v944 = vunpack.c.l.b16 %v720
        %v945 = vunpack.c.l.b16 %v721
        %v946 = vunpack.c.l.b16 %v722
        %v947 = vunpack.c.l.b16 %v723
        %v948 = vunpack.c.l.b16 %v724
        %v949 = vunpack.c.l.b16 %v725
        %v950 = vunpack.c.l.b16 %v726
        %v951 = vunpack.c.l.b16 %v727
        %v952 = vunpack.c.l.b16 %v728
        %v953 = vunpack.c.l.b16 %v729
        %v954 = vpack.c.b16 %v859, %v858
        %v955 = vpack.c.b16 %v861, %v860
        %v956 = vpack.c.b16 %v863, %v862
        %v957 = vpack.c.b16 %v865, %v864
        %v958 = vpack.c.b16 %v867, %v866
        %v959 = vpack.c.b16 %v869, %v868
        %v960 = vpack.c.b16 %v871, %v870
        %v961 = vpack.c.b16 %v873, %v872
        %v962 = vpack.c.b16 %v875, %v874
        %v963 = vpack.c.b16 %v877, %v876
        %v964 = vpack.c.b16 %v879, %v878
        %v965 = vpack.c.b16 %v881, %v880
        %v966 = vpack.c.b16 %v883, %v882
        %v967 = vpack.c.b16 %v885, %v884
        %v968 = vpack.c.b16 %v887, %v886
        %v969 = vpack.c.b16 %v889, %v888
        %v970 = vpack.c.b16 %v891, %v890
        %v971 = vpack.c.b16 %v893, %v892
        %v972 = vpack.c.b16 %v895, %v894
        %v973 = vpack.c.b16 %v897, %v896
        %v974 = vpack.c.b16 %v899, %v898
        %v975 = vpack.c.b16 %v901, %v900
        %v976 = vpack.c.b16 %v903, %v902
        %v977 = vpack.c.b16 %v905, %v904
        %v978 = vpack.c.b16 %v907, %v906
        %v979 = vpack.c.b16 %v909, %v908
        %v980 = vpack.c.b16 %v911, %v910
        %v981 = vpack.c.b16 %v913, %v912
        %v982 = vpack.c.b16 %v915, %v914
        %v983 = vpack.c.b16 %v917, %v916
        %v984 = vpack.c.b16 %v919, %v918
        %v985 = vpack.c.b16 %v921, %v920
        %v986 = vpack.c.b16 %v923, %v922
        %v987 = vpack.c.b16 %v925, %v924
        %v988 = vpack.c.b16 %v927, %v926
        %v989 = vpack.c.b16 %v929, %v928
        %v990 = vpack.c.b16 %v931, %v930
        %v991 = vpack.c.b16 %v933, %v932
        %v992 = vpack.c.b16 %v935, %v934
        %v993 = vpack.c.b16 %v937, %v936
        %v994 = vpack.c.b16 %v939, %v938
        %v995 = vpack.c.b16 %v941, %v940
        %v996 = vpack.c.b16 %v943, %v942
        %v997 = vpack.c.b16 %v945, %v944
        %v998 = vpack.c.b16 %v947, %v946
        %v999 = vpack.c.b16 %v949, %v948
        %v1000 = vpack.c.b16 %v951, %v950
        %v1001 = vpack.c.b16 %v953, %v952
        %1050 = vmatpush.bf16.msra.mxu0 %v961
        %1051 = vmatpush.bf16.msra.mxu0 %v960
        %1052 = vmatpush.bf16.msra.mxu0 %v959
        %1053 = vmatpush.bf16.msra.mxu0 %v958
        %1054 = vmatpush.bf16.msra.mxu0 %v957
        %1055 = vmatpush.bf16.msra.mxu0 %v956
        %1056 = vmatpush.bf16.msra.mxu0 %v955
        %1057 = vmatpush.bf16.msra.mxu0 %v954
        %1058 = vmatmul.bf16.gmra.mxu0 %v750
        %v1059 = vpop.f32.mrf.mxu0
        %v1060 = vadd.f32 %v730, %v1059
        %v1061 = vpop.f32.mrf.mxu0
        %v1062 = vadd.f32 %v731, %v1061
        %1063 = vdwg.mxu0
        %1064 = vmatpush.bf16.msra.mxu0 %v969
        %1065 = vmatpush.bf16.msra.mxu0 %v968
        %1066 = vmatpush.bf16.msra.mxu0 %v967
        %1067 = vmatpush.bf16.msra.mxu0 %v966
        %1068 = vmatpush.bf16.msra.mxu0 %v965
        %1069 = vmatpush.bf16.msra.mxu0 %v964
        %1070 = vmatpush.bf16.msra.mxu0 %v963
        %1071 = vmatpush.bf16.msra.mxu0 %v962
        %1072 = vmatmul.bf16.gmra.mxu0 %v751
        %v1073 = vpop.f32.mrf.mxu0
        %v1074 = vadd.f32 %v1060, %v1073
        %v1075 = vpop.f32.mrf.mxu0
        %v1076 = vadd.f32 %v1062, %v1075
        %1077 = vdwg.mxu0
        %1078 = vmatpush.bf16.msra.mxu0 %v977
        %1079 = vmatpush.bf16.msra.mxu0 %v976
        %1080 = vmatpush.bf16.msra.mxu0 %v975
        %1081 = vmatpush.bf16.msra.mxu0 %v974
        %1082 = vmatpush.bf16.msra.mxu0 %v973
        %1083 = vmatpush.bf16.msra.mxu0 %v972
        %1084 = vmatpush.bf16.msra.mxu0 %v971
        %1085 = vmatpush.bf16.msra.mxu0 %v970
        %1086 = vmatmul.bf16.gmra.mxu0 %v752
        %v1087 = vpop.f32.mrf.mxu0
        %v1088 = vadd.f32 %v1074, %v1087
        %v1089 = vpop.f32.mrf.mxu0
        %v1090 = vadd.f32 %v1076, %v1089
        %1091 = vdwg.mxu0
        %1092 = vmatpush.bf16.msra.mxu0 %v985
        %1093 = vmatpush.bf16.msra.mxu0 %v984
        %1094 = vmatpush.bf16.msra.mxu0 %v983
        %1095 = vmatpush.bf16.msra.mxu0 %v982
        %1096 = vmatpush.bf16.msra.mxu0 %v981
        %1097 = vmatpush.bf16.msra.mxu0 %v980
        %1098 = vmatpush.bf16.msra.mxu0 %v979
        %1099 = vmatpush.bf16.msra.mxu0 %v978
        %1100 = vmatmul.bf16.gmra.mxu0 %v753
        %v1101 = vpop.f32.mrf.mxu0
        %v1102 = vadd.f32 %v1088, %v1101
        %v1103 = vpop.f32.mrf.mxu0
        %v1104 = vadd.f32 %v1090, %v1103
        %1105 = vdwg.mxu0
        %1106 = vmatpush.bf16.msra.mxu0 %v993
        %1107 = vmatpush.bf16.msra.mxu0 %v992
        %1108 = vmatpush.bf16.msra.mxu0 %v991
        %1109 = vmatpush.bf16.msra.mxu0 %v990
        %1110 = vmatpush.bf16.msra.mxu0 %v989
        %1111 = vmatpush.bf16.msra.mxu0 %v988
        %1112 = vmatpush.bf16.msra.mxu0 %v987
        %1113 = vmatpush.bf16.msra.mxu0 %v986
        %1114 = vmatmul.bf16.gmra.mxu0 %v754
        %v1115 = vpop.f32.mrf.mxu0
        %v1116 = vadd.f32 %v1102, %v1115
        %v1117 = vpop.f32.mrf.mxu0
        %v1118 = vadd.f32 %v1104, %v1117
        %1119 = vdwg.mxu0
        %1120 = vmatpush.bf16.msra.mxu0 %v1001
        %1121 = vmatpush.bf16.msra.mxu0 %v1000
        %1122 = vmatpush.bf16.msra.mxu0 %v999
        %1123 = vmatpush.bf16.msra.mxu0 %v998
        %1124 = vmatpush.bf16.msra.mxu0 %v997
        %1125 = vmatpush.bf16.msra.mxu0 %v996
        %1126 = vmatpush.bf16.msra.mxu0 %v995
        %1127 = vmatpush.bf16.msra.mxu0 %v994
        %1128 = vmatmul.bf16.gmra.mxu0 %v755
        %v1129 = vpop.f32.mrf.mxu0
        %v1130 = vadd.f32 %v1116, %v1129
        %v1131 = vpop.f32.mrf.mxu0
        %v1132 = vadd.f32 %v1118, %v1131
        %1133 = vdwg.mxu0
        %v1134 = vld [vmem:[%s3] sm:$0x1]
        %v1135 = vld [vmem:[%s4] sm:$0x1]
        %vm1136 = vcmask 261120
        %v1137 = vsel %vm1136, %v1130, 0.0
        %1138 = vadd.xlane.f32.xlu0 %v1137
        %v1139 = vpop.xlane.xlu0 %1138
        %vm1140 = vcmask 253952
        %v1141 = vsel %vm1140, %v1132, 0.0
        %1142 = vadd.xlane.f32.xlu0 %v1141
        %v1143 = vpop.xlane.xlu0 %1142
        %v1144 = vrcp.pop 32.0
        %v1145 = vmul.f32 32.0, %v1144
        %v1146 = vsub.f32 1.0, %v1145
        %v1147 = vmul.f32 %v1144, %v1146
        %v1148 = vadd.f32 %v1144, %v1147
        %vm1149 = vweird.f32 %v1144
        %v1150 = vsel %vm1149, %v1144, %v1148
        %v1151 = vmul.f32 %v1139, %v1150
        %v1152 = vmul.f32 %v1143, %v1150
        %v1153 = vsub.f32 %v1130, %v1151
        %v1154 = vsub.f32 %v1132, %v1152
        %v1155 = vmul.f32 %v1153, %v1153
        %v1156 = vmul.f32 %v1154, %v1154
        %v1157 = vsel %vm1136, %v1155, 0.0
        %1158 = vadd.xlane.f32.xlu0 %v1157
        %v1159 = vpop.xlane.xlu0 %1158
        %v1160 = vsel %vm1140, %v1156, 0.0
        %1161 = vadd.xlane.f32.xlu0 %v1160
        %v1162 = vpop.xlane.xlu0 %1161
        %v1163 = vmul.f32 %v1159, %v1150
        %v1164 = vmul.f32 %v1162, %v1150
        %v1165 = vadd.f32 %v1163, 1e-05
        %v1166 = vadd.f32 %v1164, 1e-05
        %v1167 = vrsqrt.pop %v1165
        %v1168 = vmul.f32 %v1167, %v1165
        %v1169 = vmul.f32 %v1168, %v1167
        %v1170 = vmul.f32 0.5, %v1169
        %v1171 = vsub.f32 1.5, %v1170
        %v1172 = vmul.f32 %v1167, %v1171
        %vm1173 = vweird.f32 %v1165
        %vm1174 = vweird.f32 %v1167
        %vm1175 = vmor %vm1173, %vm1174
        %v1176 = vsel %vm1175, %v1167, %v1172
        %v1177 = vrsqrt.pop %v1166
        %v1178 = vmul.f32 %v1177, %v1166
        %v1179 = vmul.f32 %v1178, %v1177
        %v1180 = vmul.f32 0.5, %v1179
        %v1181 = vsub.f32 1.5, %v1180
        %v1182 = vmul.f32 %v1177, %v1181
        %vm1183 = vweird.f32 %v1166
        %vm1184 = vweird.f32 %v1177
        %vm1185 = vmor %vm1183, %vm1184
        %v1186 = vsel %vm1185, %v1177, %v1182
        %v1187 = vmul.f32 %v1153, %v1176
        %v1188 = vmul.f32 %v1154, %v1186
        %v1190 = vperm.slane %v1134, 0
        %v1192 = vmul.f32 %v1187, %v1190
        %v1193 = vmul.f32 %v1188, %v1190
        %v1195 = vperm.slane %v1135, 0
        %v1197 = vadd.f32 %v1192, %v1195
        %v1198 = vadd.f32 %v1193, %v1195
        %v1199 = vpack.c.bf16 %v1198, %v1197
        %v1200 = vld [vmem:[%s5] sm:$0xf]
        %v1201 = vld [vmem:[%s5 + $0x4] sm:$0xf]
        %v1202 = vld [vmem:[%s5 + $0x8] sm:$0xf]
        %v1203 = vld [vmem:[%s5 + $0xc] sm:$0xf]
        %v1208 = vunpack.c.l.b16 %v1200
        %v1209 = vunpack.c.l.b16 %v1201
        %v1210 = vunpack.c.l.b16 %v1202
        %v1211 = vunpack.c.l.b16 %v1203
        %v1212 = vpack.c.b16 %v1209, %v1208
        %v1213 = vpack.c.b16 %v1211, %v1210
        %v1217 = vsel %vm1136, %v1199, 0
        %1219 = vmatpush.bf16.msra.mxu0 0
        %1220 = vmatpush.bf16.msra.mxu0 0
        %1221 = vmatpush.bf16.msra.mxu0 0
        %1222 = vmatpush.bf16.msra.mxu0 0
        %1223 = vmatpush.bf16.msra.mxu0 0
        %1224 = vmatpush.bf16.msra.mxu0 0
        %1225 = vmatpush.bf16.msra.mxu0 %v1213
        %1226 = vmatpush.bf16.msra.mxu0 %v1212
        %1227 = vmatmul.bf16.gmra.mxu0 %v1217
        %v1228 = vpop.f32.mrf.mxu0
        %v1229 = vadd.f32 0.0, %v1228
        %v1230 = vpop.f32.mrf.mxu0
        %v1231 = vadd.f32 0.0, %v1230
        %1232 = vdwg.mxu0
        %v1233 = vmul.f32 %v1229, 0.35355338
        %v1234 = vmul.f32 %v1231, 0.35355338
        %v1235 = vpack.c.bf16 %v1233, %v1233
        %v1236 = vpack.c.bf16 %v1234, %v1234
        %v1237 = vpack.c.bf16 %v1229, %v1229
        %v1238 = vpack.c.bf16 %v1231, %v1231
        %v1239 = vld [vmem:[%s6] sm:$0xf]
        %v1240 = vld [vmem:[%s6 + $0x4] sm:$0xf]
        %v1241 = vld [vmem:[%s6 + $0x8] sm:$0xf]
        %v1242 = vld [vmem:[%s6 + $0xc] sm:$0xf]
        %v1245 = vunpack.c.l.b16 %v1235
        %v1246 = vunpack.c.l.b16 %v1236
        %v1247 = vpack.c.b16 %v1246, %v1245
        %v1250 = vunpack.c.l.b16 %v1237
        %v1251 = vunpack.c.l.b16 %v1238
        %v1252 = vpack.c.b16 %v1251, %v1250
        %1253 = vrot.lane.b32.xlu0 %v1252, 96
        %v1254 = vpop.permute.xlu0 %1253
        %vm1255 = vcmask 64512
        %v1257 = vsel %vm1255, %v1247, 0
        %v1260 = vsel %vm1255, %v1254, 0
        %1262 = vmatpush.bf16.xpose.msra.mxu0 0
        %1263 = vmatpush.bf16.xpose.msra.mxu0 0
        %1264 = vmatpush.bf16.xpose.msra.mxu0 0
        %1265 = vmatpush.bf16.xpose.msra.mxu0 0
        %1266 = vmatpush.bf16.xpose.msra.mxu0 0
        %1267 = vmatpush.bf16.xpose.msra.mxu0 0
        %1268 = vmatpush.bf16.xpose.msra.mxu0 0
        %1269 = vmatpush.bf16.xpose.msra.mxu0 %v1260
        %1270 = vmatmul.bf16.gmra.mxu0 %v1257
        %v1271 = vpop.f32.mrf.mxu0
        %v1272 = vadd.f32 0.0, %v1271
        %v1273 = vpop.f32.mrf.mxu0
        %v1274 = vadd.f32 0.0, %v1273
        %1275 = vdwg.mxu0
        %vm1276 = vcmask 72704
        %v1277 = vsel %vm1276, %v1272, -inf
        %1278 = vmax.xlane.f32.xlu0 %v1277
        %v1279 = vpop.xlane.xlu0 %1278
        %vm1280 = vcmask 65536
        %v1281 = vsel %vm1280, %v1274, -inf
        %1282 = vmax.xlane.f32.xlu0 %v1281
        %v1283 = vpop.xlane.xlu0 %1282
        %v1284 = vsub.f32 %v1272, %v1279
        %v1285 = vsub.f32 %v1274, %v1283
        %v1286 = vmul.f32 %v1284, 1.442695
        %v1287 = vpow.pop %v1286
        %v1288 = vmul.f32 %v1285, 1.442695
        %v1289 = vpow.pop %v1288
        %v1290 = vsel %vm1276, %v1287, 0.0
        %1291 = vadd.xlane.f32.xlu0 %v1290
        %v1292 = vpop.xlane.xlu0 %1291
        %v1293 = vsel %vm1280, %v1289, 0.0
        %1294 = vadd.xlane.f32.xlu0 %v1293
        %v1295 = vpop.xlane.xlu0 %1294
        %v1296 = vrcp.pop %v1292
        %v1297 = vrcp.pop %v1295
        %v1298 = vmul.f32 %v1287, %v1296
        %v1299 = vmul.f32 %v1289, %v1297
        %v1300 = vpack.c.bf16 %v1299, %v1298
        %1301 = vrot.lane.b32.xlu0 %v1252, 64
        %v1302 = vpop.permute.xlu0 %1301
        %v1304 = vsel %vm1276, %v1300, 0
        %vm1306 = vcmask 1043456
        %vm1307 = vcmask 1044480
        %v1308 = vsel %vm1306, 4294967295, 65535
        %v1309 = vsel %vm1307, %v1308, 0
        %v1311 = vand.u32 %v1302, %v1309
        %1313 = vmatpush.bf16.msra.mxu0 0
        %1314 = vmatpush.bf16.msra.mxu0 0
        %1315 = vmatpush.bf16.msra.mxu0 0
        %1316 = vmatpush.bf16.msra.mxu0 0
        %1317 = vmatpush.bf16.msra.mxu0 0
        %1318 = vmatpush.bf16.msra.mxu0 0
        %1319 = vmatpush.bf16.msra.mxu0 0
        %1320 = vmatpush.bf16.msra.mxu0 %v1311
        %1321 = vmatmul.bf16.gmra.mxu0 %v1304
        %v1322 = vpop.f32.mrf.mxu0
        %v1323 = vadd.f32 0.0, %v1322
        %v1324 = vpop.f32.mrf.mxu0
        %v1325 = vadd.f32 0.0, %v1324
        %1326 = vdwg.mxu0
        %v1327 = vpack.c.bf16 %v1325, %v1323
        %1328 = vrot.lane.b32.xlu0 %v1247, 120
        %v1329 = vpop.permute.xlu0 %1328
        %1330 = vrot.lane.b32.xlu0 %v1252, 88
        %v1331 = vpop.permute.xlu0 %1330
        %v1333 = vsel %vm1255, %v1329, 0
        %v1336 = vsel %vm1255, %v1331, 0
        %1338 = vmatpush.bf16.xpose.msra.mxu0 0
        %1339 = vmatpush.bf16.xpose.msra.mxu0 0
        %1340 = vmatpush.bf16.xpose.msra.mxu0 0
        %1341 = vmatpush.bf16.xpose.msra.mxu0 0
        %1342 = vmatpush.bf16.xpose.msra.mxu0 0
        %1343 = vmatpush.bf16.xpose.msra.mxu0 0
        %1344 = vmatpush.bf16.xpose.msra.mxu0 0
        %1345 = vmatpush.bf16.xpose.msra.mxu0 %v1336
        %1346 = vmatmul.bf16.gmra.mxu0 %v1333
        %v1347 = vpop.f32.mrf.mxu0
        %v1348 = vadd.f32 0.0, %v1347
        %v1349 = vpop.f32.mrf.mxu0
        %v1350 = vadd.f32 0.0, %v1349
        %1351 = vdwg.mxu0
        %v1352 = vsel %vm1276, %v1348, -inf
        %1353 = vmax.xlane.f32.xlu0 %v1352
        %v1354 = vpop.xlane.xlu0 %1353
        %v1355 = vsel %vm1280, %v1350, -inf
        %1356 = vmax.xlane.f32.xlu0 %v1355
        %v1357 = vpop.xlane.xlu0 %1356
        %v1358 = vsub.f32 %v1348, %v1354
        %v1359 = vsub.f32 %v1350, %v1357
        %v1360 = vmul.f32 %v1358, 1.442695
        %v1361 = vpow.pop %v1360
        %v1362 = vmul.f32 %v1359, 1.442695
        %v1363 = vpow.pop %v1362
        %v1364 = vsel %vm1276, %v1361, 0.0
        %1365 = vadd.xlane.f32.xlu0 %v1364
        %v1366 = vpop.xlane.xlu0 %1365
        %v1367 = vsel %vm1280, %v1363, 0.0
        %1368 = vadd.xlane.f32.xlu0 %v1367
        %v1369 = vpop.xlane.xlu0 %1368
        %v1370 = vrcp.pop %v1366
        %v1371 = vrcp.pop %v1369
        %v1372 = vmul.f32 %v1361, %v1370
        %v1373 = vmul.f32 %v1363, %v1371
        %v1374 = vpack.c.bf16 %v1373, %v1372
        %1375 = vrot.lane.b32.xlu0 %v1252, 56
        %v1376 = vpop.permute.xlu0 %1375
        %v1378 = vsel %vm1276, %v1374, 0
        %v1381 = vand.u32 %v1376, %v1309
        %1383 = vmatpush.bf16.msra.mxu0 0
        %1384 = vmatpush.bf16.msra.mxu0 0
        %1385 = vmatpush.bf16.msra.mxu0 0
        %1386 = vmatpush.bf16.msra.mxu0 0
        %1387 = vmatpush.bf16.msra.mxu0 0
        %1388 = vmatpush.bf16.msra.mxu0 0
        %1389 = vmatpush.bf16.msra.mxu0 0
        %1390 = vmatpush.bf16.msra.mxu0 %v1381
        %1391 = vmatmul.bf16.gmra.mxu0 %v1378
        %v1392 = vpop.f32.mrf.mxu0
        %v1393 = vadd.f32 0.0, %v1392
        %v1394 = vpop.f32.mrf.mxu0
        %v1395 = vadd.f32 0.0, %v1394
        %1396 = vdwg.mxu0
        %v1397 = vpack.c.bf16 %v1395, %v1393
        %v1399 = vsel %vm1255, %v1397, 0
        %v1402 = vsel %vm1306, %v1240, 0
        %1404 = vmatpush.bf16.msra.mxu0 0
        %1405 = vmatpush.bf16.msra.mxu0 0
        %1406 = vmatpush.bf16.msra.mxu0 0
        %1407 = vmatpush.bf16.msra.mxu0 0
        %1408 = vmatpush.bf16.msra.mxu0 0
        %1409 = vmatpush.bf16.msra.mxu0 0
        %1410 = vmatpush.bf16.msra.mxu0 0
        %1411 = vmatpush.bf16.msra.mxu0 %v1402
        %1412 = vmatmul.bf16.gmra.mxu0 %v1399
        %v1413 = vpop.f32.mrf.mxu0
        %v1414 = vadd.f32 0.0, %v1413
        %v1415 = vpop.f32.mrf.mxu0
        %v1416 = vadd.f32 0.0, %v1415
        %1417 = vdwg.mxu0
        %v1419 = vsel %vm1255, %v1327, 0
        %v1422 = vsel %vm1306, %v1239, 0
        %1424 = vmatpush.bf16.msra.mxu0 0
        %1425 = vmatpush.bf16.msra.mxu0 0
        %1426 = vmatpush.bf16.msra.mxu0 0
        %1427 = vmatpush.bf16.msra.mxu0 0
        %1428 = vmatpush.bf16.msra.mxu0 0
        %1429 = vmatpush.bf16.msra.mxu0 0
        %1430 = vmatpush.bf16.msra.mxu0 0
        %1431 = vmatpush.bf16.msra.mxu0 %v1422
        %1432 = vmatmul.bf16.gmra.mxu0 %v1419
        %v1433 = vpop.f32.mrf.mxu0
        %v1434 = vadd.f32 %v1414, %v1433
        %v1435 = vpop.f32.mrf.mxu0
        %v1436 = vadd.f32 %v1416, %v1435
        %1437 = vdwg.mxu0
        %1438 = vrot.lane.b32.xlu0 %v1247, 112
        %v1439 = vpop.permute.xlu0 %1438
        %1440 = vrot.lane.b32.xlu0 %v1252, 80
        %v1441 = vpop.permute.xlu0 %1440
        %v1443 = vsel %vm1255, %v1439, 0
        %v1446 = vsel %vm1255, %v1441, 0
        %1448 = vmatpush.bf16.xpose.msra.mxu0 0
        %1449 = vmatpush.bf16.xpose.msra.mxu0 0
        %1450 = vmatpush.bf16.xpose.msra.mxu0 0
        %1451 = vmatpush.bf16.xpose.msra.mxu0 0
        %1452 = vmatpush.bf16.xpose.msra.mxu0 0
        %1453 = vmatpush.bf16.xpose.msra.mxu0 0
        %1454 = vmatpush.bf16.xpose.msra.mxu0 0
        %1455 = vmatpush.bf16.xpose.msra.mxu0 %v1446
        %1456 = vmatmul.bf16.gmra.mxu0 %v1443
        %v1457 = vpop.f32.mrf.mxu0
        %v1458 = vadd.f32 0.0, %v1457
        %v1459 = vpop.f32.mrf.mxu0
        %v1460 = vadd.f32 0.0, %v1459
        %1461 = vdwg.mxu0
        %v1462 = vsel %vm1276, %v1458, -inf
        %1463 = vmax.xlane.f32.xlu0 %v1462
        %v1464 = vpop.xlane.xlu0 %1463
        %v1465 = vsel %vm1280, %v1460, -inf
        %1466 = vmax.xlane.f32.xlu0 %v1465
        %v1467 = vpop.xlane.xlu0 %1466
        %v1468 = vsub.f32 %v1458, %v1464
        %v1469 = vsub.f32 %v1460, %v1467
        %v1470 = vmul.f32 %v1468, 1.442695
        %v1471 = vpow.pop %v1470
        %v1472 = vmul.f32 %v1469, 1.442695
        %v1473 = vpow.pop %v1472
        %v1474 = vsel %vm1276, %v1471, 0.0
        %1475 = vadd.xlane.f32.xlu0 %v1474
        %v1476 = vpop.xlane.xlu0 %1475
        %v1477 = vsel %vm1280, %v1473, 0.0
        %1478 = vadd.xlane.f32.xlu0 %v1477
        %v1479 = vpop.xlane.xlu0 %1478
        %v1480 = vrcp.pop %v1476
        %v1481 = vrcp.pop %v1479
        %v1482 = vmul.f32 %v1471, %v1480
        %v1483 = vmul.f32 %v1473, %v1481
        %v1484 = vpack.c.bf16 %v1483, %v1482
        %1485 = vrot.lane.b32.xlu0 %v1252, 48
        %v1486 = vpop.permute.xlu0 %1485
        %v1488 = vsel %vm1276, %v1484, 0
        %v1491 = vand.u32 %v1486, %v1309
        %1493 = vmatpush.bf16.msra.mxu0 0
        %1494 = vmatpush.bf16.msra.mxu0 0
        %1495 = vmatpush.bf16.msra.mxu0 0
        %1496 = vmatpush.bf16.msra.mxu0 0
        %1497 = vmatpush.bf16.msra.mxu0 0
        %1498 = vmatpush.bf16.msra.mxu0 0
        %1499 = vmatpush.bf16.msra.mxu0 0
        %1500 = vmatpush.bf16.msra.mxu0 %v1491
        %1501 = vmatmul.bf16.gmra.mxu0 %v1488
        %v1502 = vpop.f32.mrf.mxu0
        %v1503 = vadd.f32 0.0, %v1502
        %v1504 = vpop.f32.mrf.mxu0
        %v1505 = vadd.f32 0.0, %v1504
        %1506 = vdwg.mxu0
        %v1507 = vpack.c.bf16 %v1505, %v1503
        %v1509 = vsel %vm1255, %v1507, 0
        %v1512 = vsel %vm1306, %v1241, 0
        %1514 = vmatpush.bf16.msra.mxu0 0
        %1515 = vmatpush.bf16.msra.mxu0 0
        %1516 = vmatpush.bf16.msra.mxu0 0
        %1517 = vmatpush.bf16.msra.mxu0 0
        %1518 = vmatpush.bf16.msra.mxu0 0
        %1519 = vmatpush.bf16.msra.mxu0 0
        %1520 = vmatpush.bf16.msra.mxu0 0
        %1521 = vmatpush.bf16.msra.mxu0 %v1512
        %1522 = vmatmul.bf16.gmra.mxu0 %v1509
        %v1523 = vpop.f32.mrf.mxu0
        %v1524 = vadd.f32 0.0, %v1523
        %v1525 = vpop.f32.mrf.mxu0
        %v1526 = vadd.f32 0.0, %v1525
        %1527 = vdwg.mxu0
        %v1528 = vadd.f32 %v1434, %v1524
        %v1529 = vadd.f32 %v1436, %v1526
        %1530 = vrot.lane.b32.xlu0 %v1247, 104
        %v1531 = vpop.permute.xlu0 %1530
        %1532 = vrot.lane.b32.xlu0 %v1252, 72
        %v1533 = vpop.permute.xlu0 %1532
        %v1535 = vsel %vm1255, %v1531, 0
        %v1538 = vsel %vm1255, %v1533, 0
        %1540 = vmatpush.bf16.xpose.msra.mxu0 0
        %1541 = vmatpush.bf16.xpose.msra.mxu0 0
        %1542 = vmatpush.bf16.xpose.msra.mxu0 0
        %1543 = vmatpush.bf16.xpose.msra.mxu0 0
        %1544 = vmatpush.bf16.xpose.msra.mxu0 0
        %1545 = vmatpush.bf16.xpose.msra.mxu0 0
        %1546 = vmatpush.bf16.xpose.msra.mxu0 0
        %1547 = vmatpush.bf16.xpose.msra.mxu0 %v1538
        %1548 = vmatmul.bf16.gmra.mxu0 %v1535
        %v1549 = vpop.f32.mrf.mxu0
        %v1550 = vadd.f32 0.0, %v1549
        %v1551 = vpop.f32.mrf.mxu0
        %v1552 = vadd.f32 0.0, %v1551
        %1553 = vdwg.mxu0
        %v1554 = vsel %vm1276, %v1550, -inf
        %1555 = vmax.xlane.f32.xlu0 %v1554
        %v1556 = vpop.xlane.xlu0 %1555
        %v1557 = vsel %vm1280, %v1552, -inf
        %1558 = vmax.xlane.f32.xlu0 %v1557
        %v1559 = vpop.xlane.xlu0 %1558
        %v1560 = vsub.f32 %v1550, %v1556
        %v1561 = vsub.f32 %v1552, %v1559
        %v1562 = vmul.f32 %v1560, 1.442695
        %v1563 = vpow.pop %v1562
        %v1564 = vmul.f32 %v1561, 1.442695
        %v1565 = vpow.pop %v1564
        %v1566 = vsel %vm1276, %v1563, 0.0
        %1567 = vadd.xlane.f32.xlu0 %v1566
        %v1568 = vpop.xlane.xlu0 %1567
        %v1569 = vsel %vm1280, %v1565, 0.0
        %1570 = vadd.xlane.f32.xlu0 %v1569
        %v1571 = vpop.xlane.xlu0 %1570
        %v1572 = vrcp.pop %v1568
        %v1573 = vrcp.pop %v1571
        %v1574 = vmul.f32 %v1563, %v1572
        %v1575 = vmul.f32 %v1565, %v1573
        %v1576 = vpack.c.bf16 %v1575, %v1574
        %1577 = vrot.lane.b32.xlu0 %v1252, 40
        %v1578 = vpop.permute.xlu0 %1577
        %v1580 = vsel %vm1276, %v1576, 0
        %v1583 = vand.u32 %v1578, %v1309
        %1585 = vmatpush.bf16.msra.mxu0 0
        %1586 = vmatpush.bf16.msra.mxu0 0
        %1587 = vmatpush.bf16.msra.mxu0 0
        %1588 = vmatpush.bf16.msra.mxu0 0
        %1589 = vmatpush.bf16.msra.mxu0 0
        %1590 = vmatpush.bf16.msra.mxu0 0
        %1591 = vmatpush.bf16.msra.mxu0 0
        %1592 = vmatpush.bf16.msra.mxu0 %v1583
        %1593 = vmatmul.bf16.gmra.mxu0 %v1580
        %v1594 = vpop.f32.mrf.mxu0
        %v1595 = vadd.f32 0.0, %v1594
        %v1596 = vpop.f32.mrf.mxu0
        %v1597 = vadd.f32 0.0, %v1596
        %1598 = vdwg.mxu0
        %v1599 = vpack.c.bf16 %v1597, %v1595
        %v1601 = vsel %vm1255, %v1599, 0
        %v1604 = vsel %vm1306, %v1242, 0
        %1606 = vmatpush.bf16.msra.mxu0 0
        %1607 = vmatpush.bf16.msra.mxu0 0
        %1608 = vmatpush.bf16.msra.mxu0 0
        %1609 = vmatpush.bf16.msra.mxu0 0
        %1610 = vmatpush.bf16.msra.mxu0 0
        %1611 = vmatpush.bf16.msra.mxu0 0
        %1612 = vmatpush.bf16.msra.mxu0 0
        %1613 = vmatpush.bf16.msra.mxu0 %v1604
        %1614 = vmatmul.bf16.gmra.mxu0 %v1601
        %v1615 = vpop.f32.mrf.mxu0
        %v1616 = vadd.f32 0.0, %v1615
        %v1617 = vpop.f32.mrf.mxu0
        %v1618 = vadd.f32 0.0, %v1617
        %1619 = vdwg.mxu0
        %v1620 = vadd.f32 %v1528, %v1616
        %v1621 = vadd.f32 %v1529, %v1618
        %v1622 = vadd.f32 %v1130, %v1620
        %v1623 = vadd.f32 %v1132, %v1621
        %v1624 = vld [vmem:[%s7] sm:$0x1]
        %v1626 = vperm.slane %v1624, 0
        %v1628 = vadd.f32 %v1622, %v1626
        %v1629 = vadd.f32 %v1623, %v1626
        %v1630 = vld [vmem:[%s8] sm:$0x1]
        %v1631 = vld [vmem:[%s9] sm:$0x1]
        %v1632 = vsel %vm1136, %v1628, 0.0
        %1633 = vadd.xlane.f32.xlu0 %v1632
        %v1634 = vpop.xlane.xlu0 %1633
        %v1635 = vsel %vm1140, %v1629, 0.0
        %1636 = vadd.xlane.f32.xlu0 %v1635
        %v1637 = vpop.xlane.xlu0 %1636
        %v1638 = vmul.f32 %v1634, %v1150
        %v1639 = vmul.f32 %v1637, %v1150
        %v1640 = vsub.f32 %v1628, %v1638
        %v1641 = vsub.f32 %v1629, %v1639
        %v1642 = vmul.f32 %v1640, %v1640
        %v1643 = vmul.f32 %v1641, %v1641
        %v1644 = vsel %vm1136, %v1642, 0.0
        %1645 = vadd.xlane.f32.xlu0 %v1644
        %v1646 = vpop.xlane.xlu0 %1645
        %v1647 = vsel %vm1140, %v1643, 0.0
        %1648 = vadd.xlane.f32.xlu0 %v1647
        %v1649 = vpop.xlane.xlu0 %1648
        %v1650 = vmul.f32 %v1646, %v1150
        %v1651 = vmul.f32 %v1649, %v1150
        %v1652 = vadd.f32 %v1650, 1e-05
        %v1653 = vadd.f32 %v1651, 1e-05
        %v1654 = vrsqrt.pop %v1652
        %v1655 = vmul.f32 %v1654, %v1652
        %v1656 = vmul.f32 %v1655, %v1654
        %v1657 = vmul.f32 0.5, %v1656
        %v1658 = vsub.f32 1.5, %v1657
        %v1659 = vmul.f32 %v1654, %v1658
        %vm1660 = vweird.f32 %v1652
        %vm1661 = vweird.f32 %v1654
        %vm1662 = vmor %vm1660, %vm1661
        %v1663 = vsel %vm1662, %v1654, %v1659
        %v1664 = vrsqrt.pop %v1653
        %v1665 = vmul.f32 %v1664, %v1653
        %v1666 = vmul.f32 %v1665, %v1664
        %v1667 = vmul.f32 0.5, %v1666
        %v1668 = vsub.f32 1.5, %v1667
        %v1669 = vmul.f32 %v1664, %v1668
        %vm1670 = vweird.f32 %v1653
        %vm1671 = vweird.f32 %v1664
        %vm1672 = vmor %vm1670, %vm1671
        %v1673 = vsel %vm1672, %v1664, %v1669
        %v1674 = vmul.f32 %v1640, %v1663
        %v1675 = vmul.f32 %v1641, %v1673
        %v1677 = vperm.slane %v1630, 0
        %v1679 = vmul.f32 %v1674, %v1677
        %v1680 = vmul.f32 %v1675, %v1677
        %v1682 = vperm.slane %v1631, 0
        %v1684 = vadd.f32 %v1679, %v1682
        %v1685 = vadd.f32 %v1680, %v1682
        %v1686 = vpack.c.bf16 %v1685, %v1684
        %v1687 = vld [vmem:[%s10] sm:$0xf]
        %v1688 = vld [vmem:[%s10 + $0x4] sm:$0xf]
        %v1689 = vld [vmem:[%s10 + $0x8] sm:$0xf]
        %v1690 = vld [vmem:[%s10 + $0xc] sm:$0xf]
        %v1691 = vld [vmem:[%s11] sm:$0x1]
        %v1693 = vperm.slane %v1691, 0
        %v1699 = vunpack.c.l.b16 %v1687
        %v1700 = vunpack.c.l.b16 %v1688
        %v1701 = vunpack.c.l.b16 %v1689
        %v1702 = vunpack.c.l.b16 %v1690
        %v1703 = vpack.c.b16 %v1700, %v1699
        %v1704 = vpack.c.b16 %v1702, %v1701
        %v1708 = vsel %vm1136, %v1686, 0
        %1710 = vmatpush.bf16.msra.mxu0 0
        %1711 = vmatpush.bf16.msra.mxu0 0
        %1712 = vmatpush.bf16.msra.mxu0 0
        %1713 = vmatpush.bf16.msra.mxu0 0
        %1714 = vmatpush.bf16.msra.mxu0 0
        %1715 = vmatpush.bf16.msra.mxu0 0
        %1716 = vmatpush.bf16.msra.mxu0 %v1704
        %1717 = vmatpush.bf16.msra.mxu0 %v1703
        %1718 = vmatmul.bf16.gmra.mxu0 %v1708
        %v1719 = vpop.f32.mrf.mxu0
        %v1720 = vadd.f32 %v1693, %v1719
        %v1721 = vpop.f32.mrf.mxu0
        %v1722 = vadd.f32 %v1693, %v1721
        %1723 = vdwg.mxu0
        %v1724 = vmul.f32 %v1720, %v1720
        %v1725 = vmul.f32 %v1722, %v1722
        %v1726 = vmul.f32 %v1720, %v1724
        %v1727 = vmul.f32 %v1722, %v1725
        %v1728 = vmul.f32 %v1726, 0.044715
        %v1729 = vmul.f32 %v1727, 0.044715
        %v1730 = vadd.f32 %v1720, %v1728
        %v1731 = vadd.f32 %v1722, %v1729
        %v1732 = vmul.f32 %v1730, 0.7978846
        %v1733 = vmul.f32 %v1731, 0.7978846
        %v1734 = vtanh.pop %v1732
        %v1735 = vtanh.pop %v1733
        %v1736 = vadd.f32 %v1734, 1.0
        %v1737 = vadd.f32 %v1735, 1.0
        %v1738 = vmul.f32 %v1736, 0.5
        %v1739 = vmul.f32 %v1737, 0.5
        %v1740 = vmul.f32 %v1720, %v1738
        %v1741 = vmul.f32 %v1722, %v1739
        %v1742 = vpack.c.bf16 %v1741, %v1740
        %v1743 = vld [vmem:[%s12] sm:$0xf]
        %v1744 = vld [vmem:[%s12 + $0x4] sm:$0xf]
        %v1745 = vld [vmem:[%s12 + $0x8] sm:$0xf]
        %v1746 = vld [vmem:[%s12 + $0xc] sm:$0xf]
        %v1747 = vld [vmem:[%s12 + $0x10] sm:$0xf]
        %v1748 = vld [vmem:[%s12 + $0x14] sm:$0xf]
        %v1749 = vld [vmem:[%s12 + $0x18] sm:$0xf]
        %v1750 = vld [vmem:[%s12 + $0x1c] sm:$0xf]
        %v1751 = vld [vmem:[%s13] sm:$0x1]
        %v1753 = vperm.slane %v1751, 0
        %v1763 = vunpack.c.l.b16 %v1743
        %v1764 = vunpack.c.l.b16 %v1744
        %v1765 = vunpack.c.l.b16 %v1745
        %v1766 = vunpack.c.l.b16 %v1746
        %v1767 = vunpack.c.l.b16 %v1747
        %v1768 = vunpack.c.l.b16 %v1748
        %v1769 = vunpack.c.l.b16 %v1749
        %v1770 = vunpack.c.l.b16 %v1750
        %v1771 = vpack.c.b16 %v1764, %v1763
        %v1772 = vpack.c.b16 %v1766, %v1765
        %v1773 = vpack.c.b16 %v1768, %v1767
        %v1774 = vpack.c.b16 %v1770, %v1769
        %vm1779 = vcmask 523264
        %v1781 = vsel %vm1779, %v1742, 0
        %1783 = vmatpush.bf16.msra.mxu0 0
        %1784 = vmatpush.bf16.msra.mxu0 0
        %1785 = vmatpush.bf16.msra.mxu0 0
        %1786 = vmatpush.bf16.msra.mxu0 0
        %1787 = vmatpush.bf16.msra.mxu0 %v1774
        %1788 = vmatpush.bf16.msra.mxu0 %v1773
        %1789 = vmatpush.bf16.msra.mxu0 %v1772
        %1790 = vmatpush.bf16.msra.mxu0 %v1771
        %1791 = vmatmul.bf16.gmra.mxu0 %v1781
        %v1792 = vpop.f32.mrf.mxu0
        %v1793 = vadd.f32 %v1753, %v1792
        %v1794 = vpop.f32.mrf.mxu0
        %v1795 = vadd.f32 %v1753, %v1794
        %1796 = vdwg.mxu0
        %v1797 = vadd.f32 %v1628, %v1793
        %v1798 = vadd.f32 %v1629, %v1795
        %s1799 = scalar_lea.vmem %s3, 1
        %v1800 = vld [vmem:[%s1799] sm:$0x1]
        %s1801 = scalar_lea.vmem %s4, 1
        %v1802 = vld [vmem:[%s1801] sm:$0x1]
        %v1803 = vsel %vm1136, %v1797, 0.0
        %1804 = vadd.xlane.f32.xlu0 %v1803
        %v1805 = vpop.xlane.xlu0 %1804
        %v1806 = vsel %vm1140, %v1798, 0.0
        %1807 = vadd.xlane.f32.xlu0 %v1806
        %v1808 = vpop.xlane.xlu0 %1807
        %v1809 = vmul.f32 %v1805, %v1150
        %v1810 = vmul.f32 %v1808, %v1150
        %v1811 = vsub.f32 %v1797, %v1809
        %v1812 = vsub.f32 %v1798, %v1810
        %v1813 = vmul.f32 %v1811, %v1811
        %v1814 = vmul.f32 %v1812, %v1812
        %v1815 = vsel %vm1136, %v1813, 0.0
        %1816 = vadd.xlane.f32.xlu0 %v1815
        %v1817 = vpop.xlane.xlu0 %1816
        %v1818 = vsel %vm1140, %v1814, 0.0
        %1819 = vadd.xlane.f32.xlu0 %v1818
        %v1820 = vpop.xlane.xlu0 %1819
        %v1821 = vmul.f32 %v1817, %v1150
        %v1822 = vmul.f32 %v1820, %v1150
        %v1823 = vadd.f32 %v1821, 1e-05
        %v1824 = vadd.f32 %v1822, 1e-05
        %v1825 = vrsqrt.pop %v1823
        %v1826 = vmul.f32 %v1825, %v1823
        %v1827 = vmul.f32 %v1826, %v1825
        %v1828 = vmul.f32 0.5, %v1827
        %v1829 = vsub.f32 1.5, %v1828
        %v1830 = vmul.f32 %v1825, %v1829
        %vm1831 = vweird.f32 %v1823
        %vm1832 = vweird.f32 %v1825
        %vm1833 = vmor %vm1831, %vm1832
        %v1834 = vsel %vm1833, %v1825, %v1830
        %v1835 = vrsqrt.pop %v1824
        %v1836 = vmul.f32 %v1835, %v1824
        %v1837 = vmul.f32 %v1836, %v1835
        %v1838 = vmul.f32 0.5, %v1837
        %v1839 = vsub.f32 1.5, %v1838
        %v1840 = vmul.f32 %v1835, %v1839
        %vm1841 = vweird.f32 %v1824
        %vm1842 = vweird.f32 %v1835
        %vm1843 = vmor %vm1841, %vm1842
        %v1844 = vsel %vm1843, %v1835, %v1840
        %v1845 = vmul.f32 %v1811, %v1834
        %v1846 = vmul.f32 %v1812, %v1844
        %v1848 = vperm.slane %v1800, 0
        %v1850 = vmul.f32 %v1845, %v1848
        %v1851 = vmul.f32 %v1846, %v1848
        %v1853 = vperm.slane %v1802, 0
        %v1855 = vadd.f32 %v1850, %v1853
        %v1856 = vadd.f32 %v1851, %v1853
        %v1857 = vpack.c.bf16 %v1856, %v1855
        %s1858 = scalar_lea.vmem %s5, 16
        %v1859 = vld [vmem:[%s1858] sm:$0xf]
        %v1860 = vld [vmem:[%s1858 + $0x4] sm:$0xf]
        %v1861 = vld [vmem:[%s1858 + $0x8] sm:$0xf]
        %v1862 = vld [vmem:[%s1858 + $0xc] sm:$0xf]
        %v1867 = vunpack.c.l.b16 %v1859
        %v1868 = vunpack.c.l.b16 %v1860
        %v1869 = vunpack.c.l.b16 %v1861
        %v1870 = vunpack.c.l.b16 %v1862
        %v1871 = vpack.c.b16 %v1868, %v1867
        %v1872 = vpack.c.b16 %v1870, %v1869
        %v1876 = vsel %vm1136, %v1857, 0
        %1878 = vmatpush.bf16.msra.mxu0 0
        %1879 = vmatpush.bf16.msra.mxu0 0
        %1880 = vmatpush.bf16.msra.mxu0 0
        %1881 = vmatpush.bf16.msra.mxu0 0
        %1882 = vmatpush.bf16.msra.mxu0 0
        %1883 = vmatpush.bf16.msra.mxu0 0
        %1884 = vmatpush.bf16.msra.mxu0 %v1872
        %1885 = vmatpush.bf16.msra.mxu0 %v1871
        %1886 = vmatmul.bf16.gmra.mxu0 %v1876
        %v1887 = vpop.f32.mrf.mxu0
        %v1888 = vadd.f32 0.0, %v1887
        %v1889 = vpop.f32.mrf.mxu0
        %v1890 = vadd.f32 0.0, %v1889
        %1891 = vdwg.mxu0
        %v1892 = vmul.f32 %v1888, 0.35355338
        %v1893 = vmul.f32 %v1890, 0.35355338
        %v1894 = vpack.c.bf16 %v1892, %v1892
        %v1895 = vpack.c.bf16 %v1893, %v1893
        %v1896 = vpack.c.bf16 %v1888, %v1888
        %v1897 = vpack.c.bf16 %v1890, %v1890
        %s1898 = scalar_lea.vmem %s6, 16
        %v1899 = vld [vmem:[%s1898] sm:$0xf]
        %v1900 = vld [vmem:[%s1898 + $0x4] sm:$0xf]
        %v1901 = vld [vmem:[%s1898 + $0x8] sm:$0xf]
        %v1902 = vld [vmem:[%s1898 + $0xc] sm:$0xf]
        %v1905 = vunpack.c.l.b16 %v1894
        %v1906 = vunpack.c.l.b16 %v1895
        %v1907 = vpack.c.b16 %v1906, %v1905
        %v1910 = vunpack.c.l.b16 %v1896
        %v1911 = vunpack.c.l.b16 %v1897
        %v1912 = vpack.c.b16 %v1911, %v1910
        %1913 = vrot.lane.b32.xlu0 %v1912, 96
        %v1914 = vpop.permute.xlu0 %1913
        %v1916 = vsel %vm1255, %v1907, 0
        %v1919 = vsel %vm1255, %v1914, 0
        %1921 = vmatpush.bf16.xpose.msra.mxu0 0
        %1922 = vmatpush.bf16.xpose.msra.mxu0 0
        %1923 = vmatpush.bf16.xpose.msra.mxu0 0
        %1924 = vmatpush.bf16.xpose.msra.mxu0 0
        %1925 = vmatpush.bf16.xpose.msra.mxu0 0
        %1926 = vmatpush.bf16.xpose.msra.mxu0 0
        %1927 = vmatpush.bf16.xpose.msra.mxu0 0
        %1928 = vmatpush.bf16.xpose.msra.mxu0 %v1919
        %1929 = vmatmul.bf16.gmra.mxu0 %v1916
        %v1930 = vpop.f32.mrf.mxu0
        %v1931 = vadd.f32 0.0, %v1930
        %v1932 = vpop.f32.mrf.mxu0
        %v1933 = vadd.f32 0.0, %v1932
        %1934 = vdwg.mxu0
        %v1935 = vsel %vm1276, %v1931, -inf
        %1936 = vmax.xlane.f32.xlu0 %v1935
        %v1937 = vpop.xlane.xlu0 %1936
        %v1938 = vsel %vm1280, %v1933, -inf
        %1939 = vmax.xlane.f32.xlu0 %v1938
        %v1940 = vpop.xlane.xlu0 %1939
        %v1941 = vsub.f32 %v1931, %v1937
        %v1942 = vsub.f32 %v1933, %v1940
        %v1943 = vmul.f32 %v1941, 1.442695
        %v1944 = vpow.pop %v1943
        %v1945 = vmul.f32 %v1942, 1.442695
        %v1946 = vpow.pop %v1945
        %v1947 = vsel %vm1276, %v1944, 0.0
        %1948 = vadd.xlane.f32.xlu0 %v1947
        %v1949 = vpop.xlane.xlu0 %1948
        %v1950 = vsel %vm1280, %v1946, 0.0
        %1951 = vadd.xlane.f32.xlu0 %v1950
        %v1952 = vpop.xlane.xlu0 %1951
        %v1953 = vrcp.pop %v1949
        %v1954 = vrcp.pop %v1952
        %v1955 = vmul.f32 %v1944, %v1953
        %v1956 = vmul.f32 %v1946, %v1954
        %v1957 = vpack.c.bf16 %v1956, %v1955
        %1958 = vrot.lane.b32.xlu0 %v1912, 64
        %v1959 = vpop.permute.xlu0 %1958
        %v1961 = vsel %vm1276, %v1957, 0
        %v1964 = vand.u32 %v1959, %v1309
        %1966 = vmatpush.bf16.msra.mxu0 0
        %1967 = vmatpush.bf16.msra.mxu0 0
        %1968 = vmatpush.bf16.msra.mxu0 0
        %1969 = vmatpush.bf16.msra.mxu0 0
        %1970 = vmatpush.bf16.msra.mxu0 0
        %1971 = vmatpush.bf16.msra.mxu0 0
        %1972 = vmatpush.bf16.msra.mxu0 0
        %1973 = vmatpush.bf16.msra.mxu0 %v1964
        %1974 = vmatmul.bf16.gmra.mxu0 %v1961
        %v1975 = vpop.f32.mrf.mxu0
        %v1976 = vadd.f32 0.0, %v1975
        %v1977 = vpop.f32.mrf.mxu0
        %v1978 = vadd.f32 0.0, %v1977
        %1979 = vdwg.mxu0
        %v1980 = vpack.c.bf16 %v1978, %v1976
        %1981 = vrot.lane.b32.xlu0 %v1907, 120
        %v1982 = vpop.permute.xlu0 %1981
        %1983 = vrot.lane.b32.xlu0 %v1912, 88
        %v1984 = vpop.permute.xlu0 %1983
        %v1986 = vsel %vm1255, %v1982, 0
        %v1989 = vsel %vm1255, %v1984, 0
        %1991 = vmatpush.bf16.xpose.msra.mxu0 0
        %1992 = vmatpush.bf16.xpose.msra.mxu0 0
        %1993 = vmatpush.bf16.xpose.msra.mxu0 0
        %1994 = vmatpush.bf16.xpose.msra.mxu0 0
        %1995 = vmatpush.bf16.xpose.msra.mxu0 0
        %1996 = vmatpush.bf16.xpose.msra.mxu0 0
        %1997 = vmatpush.bf16.xpose.msra.mxu0 0
        %1998 = vmatpush.bf16.xpose.msra.mxu0 %v1989
        %1999 = vmatmul.bf16.gmra.mxu0 %v1986
        %v2000 = vpop.f32.mrf.mxu0
        %v2001 = vadd.f32 0.0, %v2000
        %v2002 = vpop.f32.mrf.mxu0
        %v2003 = vadd.f32 0.0, %v2002
        %2004 = vdwg.mxu0
        %v2005 = vsel %vm1276, %v2001, -inf
        %2006 = vmax.xlane.f32.xlu0 %v2005
        %v2007 = vpop.xlane.xlu0 %2006
        %v2008 = vsel %vm1280, %v2003, -inf
        %2009 = vmax.xlane.f32.xlu0 %v2008
        %v2010 = vpop.xlane.xlu0 %2009
        %v2011 = vsub.f32 %v2001, %v2007
        %v2012 = vsub.f32 %v2003, %v2010
        %v2013 = vmul.f32 %v2011, 1.442695
        %v2014 = vpow.pop %v2013
        %v2015 = vmul.f32 %v2012, 1.442695
        %v2016 = vpow.pop %v2015
        %v2017 = vsel %vm1276, %v2014, 0.0
        %2018 = vadd.xlane.f32.xlu0 %v2017
        %v2019 = vpop.xlane.xlu0 %2018
        %v2020 = vsel %vm1280, %v2016, 0.0
        %2021 = vadd.xlane.f32.xlu0 %v2020
        %v2022 = vpop.xlane.xlu0 %2021
        %v2023 = vrcp.pop %v2019
        %v2024 = vrcp.pop %v2022
        %v2025 = vmul.f32 %v2014, %v2023
        %v2026 = vmul.f32 %v2016, %v2024
        %v2027 = vpack.c.bf16 %v2026, %v2025
        %2028 = vrot.lane.b32.xlu0 %v1912, 56
        %v2029 = vpop.permute.xlu0 %2028
        %v2031 = vsel %vm1276, %v2027, 0
        %v2034 = vand.u32 %v2029, %v1309
        %2036 = vmatpush.bf16.msra.mxu0 0
        %2037 = vmatpush.bf16.msra.mxu0 0
        %2038 = vmatpush.bf16.msra.mxu0 0
        %2039 = vmatpush.bf16.msra.mxu0 0
        %2040 = vmatpush.bf16.msra.mxu0 0
        %2041 = vmatpush.bf16.msra.mxu0 0
        %2042 = vmatpush.bf16.msra.mxu0 0
        %2043 = vmatpush.bf16.msra.mxu0 %v2034
        %2044 = vmatmul.bf16.gmra.mxu0 %v2031
        %v2045 = vpop.f32.mrf.mxu0
        %v2046 = vadd.f32 0.0, %v2045
        %v2047 = vpop.f32.mrf.mxu0
        %v2048 = vadd.f32 0.0, %v2047
        %2049 = vdwg.mxu0
        %v2050 = vpack.c.bf16 %v2048, %v2046
        %v2052 = vsel %vm1255, %v2050, 0
        %v2055 = vsel %vm1306, %v1900, 0
        %2057 = vmatpush.bf16.msra.mxu0 0
        %2058 = vmatpush.bf16.msra.mxu0 0
        %2059 = vmatpush.bf16.msra.mxu0 0
        %2060 = vmatpush.bf16.msra.mxu0 0
        %2061 = vmatpush.bf16.msra.mxu0 0
        %2062 = vmatpush.bf16.msra.mxu0 0
        %2063 = vmatpush.bf16.msra.mxu0 0
        %2064 = vmatpush.bf16.msra.mxu0 %v2055
        %2065 = vmatmul.bf16.gmra.mxu0 %v2052
        %v2066 = vpop.f32.mrf.mxu0
        %v2067 = vadd.f32 0.0, %v2066
        %v2068 = vpop.f32.mrf.mxu0
        %v2069 = vadd.f32 0.0, %v2068
        %2070 = vdwg.mxu0
        %v2072 = vsel %vm1255, %v1980, 0
        %v2075 = vsel %vm1306, %v1899, 0
        %2077 = vmatpush.bf16.msra.mxu0 0
        %2078 = vmatpush.bf16.msra.mxu0 0
        %2079 = vmatpush.bf16.msra.mxu0 0
        %2080 = vmatpush.bf16.msra.mxu0 0
        %2081 = vmatpush.bf16.msra.mxu0 0
        %2082 = vmatpush.bf16.msra.mxu0 0
        %2083 = vmatpush.bf16.msra.mxu0 0
        %2084 = vmatpush.bf16.msra.mxu0 %v2075
        %2085 = vmatmul.bf16.gmra.mxu0 %v2072
        %v2086 = vpop.f32.mrf.mxu0
        %v2087 = vadd.f32 %v2067, %v2086
        %v2088 = vpop.f32.mrf.mxu0
        %v2089 = vadd.f32 %v2069, %v2088
        %2090 = vdwg.mxu0
        %2091 = vrot.lane.b32.xlu0 %v1907, 112
        %v2092 = vpop.permute.xlu0 %2091
        %2093 = vrot.lane.b32.xlu0 %v1912, 80
        %v2094 = vpop.permute.xlu0 %2093
        %v2096 = vsel %vm1255, %v2092, 0
        %v2099 = vsel %vm1255, %v2094, 0
        %2101 = vmatpush.bf16.xpose.msra.mxu0 0
        %2102 = vmatpush.bf16.xpose.msra.mxu0 0
        %2103 = vmatpush.bf16.xpose.msra.mxu0 0
        %2104 = vmatpush.bf16.xpose.msra.mxu0 0
        %2105 = vmatpush.bf16.xpose.msra.mxu0 0
        %2106 = vmatpush.bf16.xpose.msra.mxu0 0
        %2107 = vmatpush.bf16.xpose.msra.mxu0 0
        %2108 = vmatpush.bf16.xpose.msra.mxu0 %v2099
        %2109 = vmatmul.bf16.gmra.mxu0 %v2096
        %v2110 = vpop.f32.mrf.mxu0
        %v2111 = vadd.f32 0.0, %v2110
        %v2112 = vpop.f32.mrf.mxu0
        %v2113 = vadd.f32 0.0, %v2112
        %2114 = vdwg.mxu0
        %v2115 = vsel %vm1276, %v2111, -inf
        %2116 = vmax.xlane.f32.xlu0 %v2115
        %v2117 = vpop.xlane.xlu0 %2116
        %v2118 = vsel %vm1280, %v2113, -inf
        %2119 = vmax.xlane.f32.xlu0 %v2118
        %v2120 = vpop.xlane.xlu0 %2119
        %v2121 = vsub.f32 %v2111, %v2117
        %v2122 = vsub.f32 %v2113, %v2120
        %v2123 = vmul.f32 %v2121, 1.442695
        %v2124 = vpow.pop %v2123
        %v2125 = vmul.f32 %v2122, 1.442695
        %v2126 = vpow.pop %v2125
        %v2127 = vsel %vm1276, %v2124, 0.0
        %2128 = vadd.xlane.f32.xlu0 %v2127
        %v2129 = vpop.xlane.xlu0 %2128
        %v2130 = vsel %vm1280, %v2126, 0.0
        %2131 = vadd.xlane.f32.xlu0 %v2130
        %v2132 = vpop.xlane.xlu0 %2131
        %v2133 = vrcp.pop %v2129
        %v2134 = vrcp.pop %v2132
        %v2135 = vmul.f32 %v2124, %v2133
        %v2136 = vmul.f32 %v2126, %v2134
        %v2137 = vpack.c.bf16 %v2136, %v2135
        %2138 = vrot.lane.b32.xlu0 %v1912, 48
        %v2139 = vpop.permute.xlu0 %2138
        %v2141 = vsel %vm1276, %v2137, 0
        %v2144 = vand.u32 %v2139, %v1309
        %2146 = vmatpush.bf16.msra.mxu0 0
        %2147 = vmatpush.bf16.msra.mxu0 0
        %2148 = vmatpush.bf16.msra.mxu0 0
        %2149 = vmatpush.bf16.msra.mxu0 0
        %2150 = vmatpush.bf16.msra.mxu0 0
        %2151 = vmatpush.bf16.msra.mxu0 0
        %2152 = vmatpush.bf16.msra.mxu0 0
        %2153 = vmatpush.bf16.msra.mxu0 %v2144
        %2154 = vmatmul.bf16.gmra.mxu0 %v2141
        %v2155 = vpop.f32.mrf.mxu0
        %v2156 = vadd.f32 0.0, %v2155
        %v2157 = vpop.f32.mrf.mxu0
        %v2158 = vadd.f32 0.0, %v2157
        %2159 = vdwg.mxu0
        %v2160 = vpack.c.bf16 %v2158, %v2156
        %v2162 = vsel %vm1255, %v2160, 0
        %v2165 = vsel %vm1306, %v1901, 0
        %2167 = vmatpush.bf16.msra.mxu0 0
        %2168 = vmatpush.bf16.msra.mxu0 0
        %2169 = vmatpush.bf16.msra.mxu0 0
        %2170 = vmatpush.bf16.msra.mxu0 0
        %2171 = vmatpush.bf16.msra.mxu0 0
        %2172 = vmatpush.bf16.msra.mxu0 0
        %2173 = vmatpush.bf16.msra.mxu0 0
        %2174 = vmatpush.bf16.msra.mxu0 %v2165
        %2175 = vmatmul.bf16.gmra.mxu0 %v2162
        %v2176 = vpop.f32.mrf.mxu0
        %v2177 = vadd.f32 0.0, %v2176
        %v2178 = vpop.f32.mrf.mxu0
        %v2179 = vadd.f32 0.0, %v2178
        %2180 = vdwg.mxu0
        %v2181 = vadd.f32 %v2087, %v2177
        %v2182 = vadd.f32 %v2089, %v2179
        %2183 = vrot.lane.b32.xlu0 %v1907, 104
        %v2184 = vpop.permute.xlu0 %2183
        %2185 = vrot.lane.b32.xlu0 %v1912, 72
        %v2186 = vpop.permute.xlu0 %2185
        %v2188 = vsel %vm1255, %v2184, 0
        %v2191 = vsel %vm1255, %v2186, 0
        %2193 = vmatpush.bf16.xpose.msra.mxu0 0
        %2194 = vmatpush.bf16.xpose.msra.mxu0 0
        %2195 = vmatpush.bf16.xpose.msra.mxu0 0
        %2196 = vmatpush.bf16.xpose.msra.mxu0 0
        %2197 = vmatpush.bf16.xpose.msra.mxu0 0
        %2198 = vmatpush.bf16.xpose.msra.mxu0 0
        %2199 = vmatpush.bf16.xpose.msra.mxu0 0
        %2200 = vmatpush.bf16.xpose.msra.mxu0 %v2191
        %2201 = vmatmul.bf16.gmra.mxu0 %v2188
        %v2202 = vpop.f32.mrf.mxu0
        %v2203 = vadd.f32 0.0, %v2202
        %v2204 = vpop.f32.mrf.mxu0
        %v2205 = vadd.f32 0.0, %v2204
        %2206 = vdwg.mxu0
        %v2207 = vsel %vm1276, %v2203, -inf
        %2208 = vmax.xlane.f32.xlu0 %v2207
        %v2209 = vpop.xlane.xlu0 %2208
        %v2210 = vsel %vm1280, %v2205, -inf
        %2211 = vmax.xlane.f32.xlu0 %v2210
        %v2212 = vpop.xlane.xlu0 %2211
        %v2213 = vsub.f32 %v2203, %v2209
        %v2214 = vsub.f32 %v2205, %v2212
        %v2215 = vmul.f32 %v2213, 1.442695
        %v2216 = vpow.pop %v2215
        %v2217 = vmul.f32 %v2214, 1.442695
        %v2218 = vpow.pop %v2217
        %v2219 = vsel %vm1276, %v2216, 0.0
        %2220 = vadd.xlane.f32.xlu0 %v2219
        %v2221 = vpop.xlane.xlu0 %2220
        %v2222 = vsel %vm1280, %v2218, 0.0
        %2223 = vadd.xlane.f32.xlu0 %v2222
        %v2224 = vpop.xlane.xlu0 %2223
        %v2225 = vrcp.pop %v2221
        %v2226 = vrcp.pop %v2224
        %v2227 = vmul.f32 %v2216, %v2225
        %v2228 = vmul.f32 %v2218, %v2226
        %v2229 = vpack.c.bf16 %v2228, %v2227
        %2230 = vrot.lane.b32.xlu0 %v1912, 40
        %v2231 = vpop.permute.xlu0 %2230
        %v2233 = vsel %vm1276, %v2229, 0
        %v2236 = vand.u32 %v2231, %v1309
        %2238 = vmatpush.bf16.msra.mxu0 0
        %2239 = vmatpush.bf16.msra.mxu0 0
        %2240 = vmatpush.bf16.msra.mxu0 0
        %2241 = vmatpush.bf16.msra.mxu0 0
        %2242 = vmatpush.bf16.msra.mxu0 0
        %2243 = vmatpush.bf16.msra.mxu0 0
        %2244 = vmatpush.bf16.msra.mxu0 0
        %2245 = vmatpush.bf16.msra.mxu0 %v2236
        %2246 = vmatmul.bf16.gmra.mxu0 %v2233
        %v2247 = vpop.f32.mrf.mxu0
        %v2248 = vadd.f32 0.0, %v2247
        %v2249 = vpop.f32.mrf.mxu0
        %v2250 = vadd.f32 0.0, %v2249
        %2251 = vdwg.mxu0
        %v2252 = vpack.c.bf16 %v2250, %v2248
        %v2254 = vsel %vm1255, %v2252, 0
        %v2257 = vsel %vm1306, %v1902, 0
        %2259 = vmatpush.bf16.msra.mxu0 0
        %2260 = vmatpush.bf16.msra.mxu0 0
        %2261 = vmatpush.bf16.msra.mxu0 0
        %2262 = vmatpush.bf16.msra.mxu0 0
        %2263 = vmatpush.bf16.msra.mxu0 0
        %2264 = vmatpush.bf16.msra.mxu0 0
        %2265 = vmatpush.bf16.msra.mxu0 0
        %2266 = vmatpush.bf16.msra.mxu0 %v2257
        %2267 = vmatmul.bf16.gmra.mxu0 %v2254
        %v2268 = vpop.f32.mrf.mxu0
        %v2269 = vadd.f32 0.0, %v2268
        %v2270 = vpop.f32.mrf.mxu0
        %v2271 = vadd.f32 0.0, %v2270
        %2272 = vdwg.mxu0
        %v2273 = vadd.f32 %v2181, %v2269
        %v2274 = vadd.f32 %v2182, %v2271
        %v2275 = vadd.f32 %v1797, %v2273
        %v2276 = vadd.f32 %v1798, %v2274
        %s2277 = scalar_lea.vmem %s7, 1
        %v2278 = vld [vmem:[%s2277] sm:$0x1]
        %v2280 = vperm.slane %v2278, 0
        %v2282 = vadd.f32 %v2275, %v2280
        %v2283 = vadd.f32 %v2276, %v2280
        %s2284 = scalar_lea.vmem %s8, 1
        %v2285 = vld [vmem:[%s2284] sm:$0x1]
        %s2286 = scalar_lea.vmem %s9, 1
        %v2287 = vld [vmem:[%s2286] sm:$0x1]
        %v2288 = vsel %vm1136, %v2282, 0.0
        %2289 = vadd.xlane.f32.xlu0 %v2288
        %v2290 = vpop.xlane.xlu0 %2289
        %v2291 = vsel %vm1140, %v2283, 0.0
        %2292 = vadd.xlane.f32.xlu0 %v2291
        %v2293 = vpop.xlane.xlu0 %2292
        %v2294 = vmul.f32 %v2290, %v1150
        %v2295 = vmul.f32 %v2293, %v1150
        %v2296 = vsub.f32 %v2282, %v2294
        %v2297 = vsub.f32 %v2283, %v2295
        %v2298 = vmul.f32 %v2296, %v2296
        %v2299 = vmul.f32 %v2297, %v2297
        %v2300 = vsel %vm1136, %v2298, 0.0
        %2301 = vadd.xlane.f32.xlu0 %v2300
        %v2302 = vpop.xlane.xlu0 %2301
        %v2303 = vsel %vm1140, %v2299, 0.0
        %2304 = vadd.xlane.f32.xlu0 %v2303
        %v2305 = vpop.xlane.xlu0 %2304
        %v2306 = vmul.f32 %v2302, %v1150
        %v2307 = vmul.f32 %v2305, %v1150
        %v2308 = vadd.f32 %v2306, 1e-05
        %v2309 = vadd.f32 %v2307, 1e-05
        %v2310 = vrsqrt.pop %v2308
        %v2311 = vmul.f32 %v2310, %v2308
        %v2312 = vmul.f32 %v2311, %v2310
        %v2313 = vmul.f32 0.5, %v2312
        %v2314 = vsub.f32 1.5, %v2313
        %v2315 = vmul.f32 %v2310, %v2314
        %vm2316 = vweird.f32 %v2308
        %vm2317 = vweird.f32 %v2310
        %vm2318 = vmor %vm2316, %vm2317
        %v2319 = vsel %vm2318, %v2310, %v2315
        %v2320 = vrsqrt.pop %v2309
        %v2321 = vmul.f32 %v2320, %v2309
        %v2322 = vmul.f32 %v2321, %v2320
        %v2323 = vmul.f32 0.5, %v2322
        %v2324 = vsub.f32 1.5, %v2323
        %v2325 = vmul.f32 %v2320, %v2324
        %vm2326 = vweird.f32 %v2309
        %vm2327 = vweird.f32 %v2320
        %vm2328 = vmor %vm2326, %vm2327
        %v2329 = vsel %vm2328, %v2320, %v2325
        %v2330 = vmul.f32 %v2296, %v2319
        %v2331 = vmul.f32 %v2297, %v2329
        %v2333 = vperm.slane %v2285, 0
        %v2335 = vmul.f32 %v2330, %v2333
        %v2336 = vmul.f32 %v2331, %v2333
        %v2338 = vperm.slane %v2287, 0
        %v2340 = vadd.f32 %v2335, %v2338
        %v2341 = vadd.f32 %v2336, %v2338
        %v2342 = vpack.c.bf16 %v2341, %v2340
        %s2343 = scalar_lea.vmem %s10, 16
        %v2344 = vld [vmem:[%s2343] sm:$0xf]
        %v2345 = vld [vmem:[%s2343 + $0x4] sm:$0xf]
        %v2346 = vld [vmem:[%s2343 + $0x8] sm:$0xf]
        %v2347 = vld [vmem:[%s2343 + $0xc] sm:$0xf]
        %s2348 = scalar_lea.vmem %s11, 1
        %v2349 = vld [vmem:[%s2348] sm:$0x1]
        %v2351 = vperm.slane %v2349, 0
        %v2357 = vunpack.c.l.b16 %v2344
        %v2358 = vunpack.c.l.b16 %v2345
        %v2359 = vunpack.c.l.b16 %v2346
        %v2360 = vunpack.c.l.b16 %v2347
        %v2361 = vpack.c.b16 %v2358, %v2357
        %v2362 = vpack.c.b16 %v2360, %v2359
        %v2366 = vsel %vm1136, %v2342, 0
        %2368 = vmatpush.bf16.msra.mxu0 0
        %2369 = vmatpush.bf16.msra.mxu0 0
        %2370 = vmatpush.bf16.msra.mxu0 0
        %2371 = vmatpush.bf16.msra.mxu0 0
        %2372 = vmatpush.bf16.msra.mxu0 0
        %2373 = vmatpush.bf16.msra.mxu0 0
        %2374 = vmatpush.bf16.msra.mxu0 %v2362
        %2375 = vmatpush.bf16.msra.mxu0 %v2361
        %2376 = vmatmul.bf16.gmra.mxu0 %v2366
        %v2377 = vpop.f32.mrf.mxu0
        %v2378 = vadd.f32 %v2351, %v2377
        %v2379 = vpop.f32.mrf.mxu0
        %v2380 = vadd.f32 %v2351, %v2379
        %2381 = vdwg.mxu0
        %v2382 = vmul.f32 %v2378, %v2378
        %v2383 = vmul.f32 %v2380, %v2380
        %v2384 = vmul.f32 %v2378, %v2382
        %v2385 = vmul.f32 %v2380, %v2383
        %v2386 = vmul.f32 %v2384, 0.044715
        %v2387 = vmul.f32 %v2385, 0.044715
        %v2388 = vadd.f32 %v2378, %v2386
        %v2389 = vadd.f32 %v2380, %v2387
        %v2390 = vmul.f32 %v2388, 0.7978846
        %v2391 = vmul.f32 %v2389, 0.7978846
        %v2392 = vtanh.pop %v2390
        %v2393 = vtanh.pop %v2391
        %v2394 = vadd.f32 %v2392, 1.0
        %v2395 = vadd.f32 %v2393, 1.0
        %v2396 = vmul.f32 %v2394, 0.5
        %v2397 = vmul.f32 %v2395, 0.5
        %v2398 = vmul.f32 %v2378, %v2396
        %v2399 = vmul.f32 %v2380, %v2397
        %v2400 = vpack.c.bf16 %v2399, %v2398
        %s2401 = scalar_lea.vmem %s12, 32
        %v2402 = vld [vmem:[%s2401] sm:$0xf]
        %v2403 = vld [vmem:[%s2401 + $0x4] sm:$0xf]
        %v2404 = vld [vmem:[%s2401 + $0x8] sm:$0xf]
        %v2405 = vld [vmem:[%s2401 + $0xc] sm:$0xf]
        %v2406 = vld [vmem:[%s2401 + $0x10] sm:$0xf]
        %v2407 = vld [vmem:[%s2401 + $0x14] sm:$0xf]
        %v2408 = vld [vmem:[%s2401 + $0x18] sm:$0xf]
        %v2409 = vld [vmem:[%s2401 + $0x1c] sm:$0xf]
        %s2410 = scalar_lea.vmem %s13, 1
        %v2411 = vld [vmem:[%s2410] sm:$0x1]
        %v2413 = vperm.slane %v2411, 0
        %v2423 = vunpack.c.l.b16 %v2402
        %v2424 = vunpack.c.l.b16 %v2403
        %v2425 = vunpack.c.l.b16 %v2404
        %v2426 = vunpack.c.l.b16 %v2405
        %v2427 = vunpack.c.l.b16 %v2406
        %v2428 = vunpack.c.l.b16 %v2407
        %v2429 = vunpack.c.l.b16 %v2408
        %v2430 = vunpack.c.l.b16 %v2409
        %v2431 = vpack.c.b16 %v2424, %v2423
        %v2432 = vpack.c.b16 %v2426, %v2425
        %v2433 = vpack.c.b16 %v2428, %v2427
        %v2434 = vpack.c.b16 %v2430, %v2429
        %v2440 = vsel %vm1779, %v2400, 0
        %2442 = vmatpush.bf16.msra.mxu0 0
        %2443 = vmatpush.bf16.msra.mxu0 0
        %2444 = vmatpush.bf16.msra.mxu0 0
        %2445 = vmatpush.bf16.msra.mxu0 0
        %2446 = vmatpush.bf16.msra.mxu0 %v2434
        %2447 = vmatpush.bf16.msra.mxu0 %v2433
        %2448 = vmatpush.bf16.msra.mxu0 %v2432
        %2449 = vmatpush.bf16.msra.mxu0 %v2431
        %2450 = vmatmul.bf16.gmra.mxu0 %v2440
        %v2451 = vpop.f32.mrf.mxu0
        %v2452 = vadd.f32 %v2413, %v2451
        %v2453 = vpop.f32.mrf.mxu0
        %2454 = vdwg.mxu0
        %v2455 = vadd.f32 %v2282, %v2452
        %v2456 = vld [vmem:[%s14] sm:$0x1]
        %v2457 = vld [vmem:[%s15] sm:$0x1]
        %v2458 = vsel %vm1140, %v2455, 0.0
        %2459 = vadd.xlane.f32.xlu0 %v2458
        %v2460 = vpop.xlane.xlu0 %2459
        %v2461 = vmul.f32 %v2460, %v1150
        %v2462 = vsub.f32 %v2455, %v2461
        %v2463 = vmul.f32 %v2462, %v2462
        %v2464 = vsel %vm1140, %v2463, 0.0
        %2465 = vadd.xlane.f32.xlu0 %v2464
        %v2466 = vpop.xlane.xlu0 %2465
        %v2467 = vmul.f32 %v2466, %v1150
        %v2468 = vadd.f32 %v2467, 1e-05
        %v2469 = vrsqrt.pop %v2468
        %v2470 = vmul.f32 %v2469, %v2468
        %v2471 = vmul.f32 %v2470, %v2469
        %v2472 = vmul.f32 0.5, %v2471
        %v2473 = vsub.f32 1.5, %v2472
        %v2474 = vmul.f32 %v2469, %v2473
        %vm2475 = vweird.f32 %v2468
        %vm2476 = vweird.f32 %v2469
        %vm2477 = vmor %vm2475, %vm2476
        %v2478 = vsel %vm2477, %v2469, %v2474
        %v2479 = vmul.f32 %v2462, %v2478
        %v2480 = vmul.f32 %v2479, %v2456
        %v2481 = vadd.f32 %v2480, %v2457
        %v2482 = vld [vmem:[%s16] sm:$0x1]
        %v2483 = vld [vmem:[%s17] sm:$0x1]
        %v2484 = vsel %vm1140, %v2481, 0.0
        %2485 = vadd.xlane.f32.xlu0 %v2484
        %v2486 = vpop.xlane.xlu0 %2485
        %v2487 = vmul.f32 %v2486, %v1150
        %v2488 = vsub.f32 %v2481, %v2487
        %v2489 = vmul.f32 %v2488, %v2488
        %v2490 = vsel %vm1140, %v2489, 0.0
        %2491 = vadd.xlane.f32.xlu0 %v2490
        %v2492 = vpop.xlane.xlu0 %2491
        %v2493 = vmul.f32 %v2492, %v1150
        %v2494 = vadd.f32 %v2493, 1e-05
        %v2495 = vrsqrt.pop %v2494
        %v2496 = vmul.f32 %v2495, %v2494
        %v2497 = vmul.f32 %v2496, %v2495
        %v2498 = vmul.f32 0.5, %v2497
        %v2499 = vsub.f32 1.5, %v2498
        %v2500 = vmul.f32 %v2495, %v2499
        %vm2501 = vweird.f32 %v2494
        %vm2502 = vweird.f32 %v2495
        %vm2503 = vmor %vm2501, %vm2502
        %v2504 = vsel %vm2503, %v2495, %v2500
        %v2505 = vmul.f32 %v2488, %v2504
        %v2506 = vmul.f32 %v2505, %v2482
        %v2507 = vadd.f32 %v2506, %v2483
        %v2508 = vpack.c.bf16 %v2507, %v2507
        %v2509 = vld [vmem:[%s18] sm:$0xf]
        %v2510 = vld [vmem:[%s18 + $0x4] sm:$0xf]
        %v2511 = vld [vmem:[%s18 + $0x8] sm:$0xf]
        %v2512 = vld [vmem:[%s18 + $0xc] sm:$0xf]
        %v2513 = vld [vmem:[%s19] sm:$0x1]
        %v2518 = vunpack.c.l.b16 %v2509
        %v2519 = vunpack.c.l.b16 %v2510
        %v2520 = vunpack.c.l.b16 %v2511
        %v2521 = vunpack.c.l.b16 %v2512
        %v2522 = vpack.c.b16 %v2519, %v2518
        %v2523 = vpack.c.b16 %v2521, %v2520
        %v2527 = vsel %vm1136, %v2508, 0
        %2529 = vmatpush.bf16.msra.mxu0 0
        %2530 = vmatpush.bf16.msra.mxu0 0
        %2531 = vmatpush.bf16.msra.mxu0 0
        %2532 = vmatpush.bf16.msra.mxu0 0
        %2533 = vmatpush.bf16.msra.mxu0 0
        %2534 = vmatpush.bf16.msra.mxu0 0
        %2535 = vmatpush.bf16.msra.mxu0 %v2523
        %2536 = vmatpush.bf16.msra.mxu0 %v2522
        %2537 = vmatmul.bf16.gmra.mxu0 %v2527
        %v2538 = vpop.f32.mrf.mxu0
        %v2539 = vadd.f32 %v2513, %v2538
        %v2540 = vpop.f32.mrf.mxu0
        %2541 = vdwg.mxu0
        %vm2542 = vcmask 73728
        %2543 = vst.msk [vmem:[%s621] sm:$0x1] %vm2542, %v2539
        %s2544 = sand.u32 %s467, 1
        %s2545 = scalar_lea.sflag [#allocation3], %s2544
        %s2546 = sand.u32 %s467, 1
        %s2547 = scalar_lea.vmem [#allocation2], %s2546
        // Predicated region
        $region101: #{_lambda_.1} parent=99 // pred_check
          %p2548 = pneg %p477
        $region102: #{_lambda_.1} parent=99 // pred_check_branch
          %2550 = sbr.rel (%p2548) target = $region104
        $region103: #{_lambda_.1} parent=99 // pred_region
          %2552 = vsyncadd %s2545, 0
          %s2553 = scalar_lea.hbm %s20, %s34
          %s2555 = sshll.u32 %s2547, 4
          %s2556 = int_to_ptr.vmem [resolvable:$true] %s2555
          %s2557 = sshll.u32 %s2553, 4
          %s2558 = int_to_ptr.hbm [resolvable:$true] %s2557
          %2560 = dma.vmem_to_hbm [thread:$0]  %s2556, 16, %s2558, %s2545
        $region104: #{_lambda_.1} parent=99 // pred_fallthru
          _
      $region100: #{_lambda_.1} parent=5 // pred_fallthru
        _
      %p2561 = scmp.le.s32.totalorder 2, %s29
      // Predicated region
      $region105: #{_lambda_.1} parent=5 // pred_check
        %p2562 = pneg %p2561
      $region106: #{_lambda_.1} parent=5 // pred_check_branch
        %2564 = sbr.rel (%p2562) target = $region108
      $region107: #{_lambda_.1} parent=5 // pred_region
        %s2565 = ssub.s32 %s29, 2
        // Predicated region
        $region109: #{_lambda_.1} parent=107 // pred_check
          %p2566 = pneg %p483
        $region110: #{_lambda_.1} parent=107 // pred_check_branch
          %2568 = sbr.rel (%p2566) target = $region112
        $region111: #{_lambda_.1} parent=107 // pred_region
          %s2569 = sand.u32 %s468, 1
          %s2570 = scalar_lea.sflag [#allocation3], %s2569
          %s2571 = sand.u32 %s468, 1
          %s2572 = scalar_lea.vmem [#allocation2], %s2571
          %2574 = dma.done %s2570, 16
        $region112: #{_lambda_.1} parent=107 // pred_fallthru
          _
      $region108: #{_lambda_.1} parent=5 // pred_fallthru
        _
    $region6: #{_lambda_.1} parent=1 // loop_footer
      %s33 = sadd.s32 1, %s29
    $region7: #{_lambda_.1} parent=1 // loop_footer_branch
      %28 = sbr.rel target = $region3
    $region8: #{_lambda_.1} parent=1 // loop_exit
      _
    %2575 = vsyncpa [#allocation3], 1
    %s2576 = scalar_lea.sflag [#allocation3], 1
    %2577 = vsyncpa %s2576, 1

</llo_original>
